<compile_context>
chip_gen: v5e
topology: v5e:2x2
jax: 0.10.0
libtpu: 0.0.40
codegen_flags: <defaults>
</compile_context>

<pallas_src>
import jax
import jax.numpy as jnp
from jax.experimental import pallas as pl
from jax.experimental.pallas import tpu as pltpu

VMEM_SPEC = pl.BlockSpec(memory_space=pltpu.MemorySpace.VMEM)


# ---------------- Pallas kernels ----------------

def _conv_pool_relu_kernel(p_ref, w_ref, b_ref, o_ref):
    # p_ref: (4, K, Mblk) bf16  -- the 4 pooling-window quadrants of im2col
    # w_ref: (OC, K)     bf16  -- PyTorch conv weight reshaped (OC, C*KH*KW)
    # b_ref: (OC, 1)     f32
    # o_ref: (OC, Mblk)  f32   -- pooled+ReLU activations, OC-major (== NCHW)
    w = w_ref[...]
    z0 = jnp.dot(w, p_ref[0], preferred_element_type=jnp.float32)
    z1 = jnp.dot(w, p_ref[1], preferred_element_type=jnp.float32)
    z2 = jnp.dot(w, p_ref[2], preferred_element_type=jnp.float32)
    z3 = jnp.dot(w, p_ref[3], preferred_element_type=jnp.float32)
    z = jnp.maximum(jnp.maximum(z0, z1), jnp.maximum(z2, z3))  # 2x2 max-pool
    z = z + b_ref[...]
    o_ref[...] = jnp.maximum(z, 0.0)                           # ReLU


def _mlp_head_kernel(x_ref, w1_ref, b1_ref, w2_ref, b2_ref, o_ref):
    # Fused Linear(800->500) + ReLU + Linear(500->10) + LogSoftmax.
    # Both weight matrices are resident in VMEM for the whole kernel.
    h = jnp.dot(x_ref[...], w1_ref[...], preferred_element_type=jnp.float32)
    h = jnp.maximum(h + b1_ref[...], 0.0)
    z = jnp.dot(h.astype(w2_ref.dtype), w2_ref[...],
                preferred_element_type=jnp.float32)
    z = z + b2_ref[...]
    m = jnp.max(z, axis=1, keepdims=True)
    e = jnp.exp(z - m)
    lse = jnp.log(jnp.sum(e, axis=1, keepdims=True)) + m
    o_ref[...] = z - lse


# ---------------- JAX glue (patch extraction only) ----------------

def im2col_pool_quadrants(x_cnhw, kh, kw):
    # x: (C, N, H, W) channel-major activations.
    # Returns P: (4, C*kh*kw, N*Ho*Wo) where axis 0 indexes the 4 positions of
    # each 2x2 pooling window; feature order is (c, kh, kw) to match the
    # PyTorch Conv2d weight layout reshaped as (OC, C*KH*KW).
    C, N, H, W = x_cnhw.shape
    OH, OW = H - kh + 1, W - kw + 1
    Ho, Wo = OH // 2, OW // 2
    taps = []
    for i in range(kh):
        for j in range(kw):
            taps.append(x_cnhw[:, :, i:i + OH, j:j + OW])      # (C, N, OH, OW)
    p = jnp.stack(taps, axis=1)                                # (C, kh*kw, N, OH, OW)
    p = p.reshape(C, kh * kw, N, Ho, 2, Wo, 2)
    p = p.transpose(4, 6, 0, 1, 2, 3, 5)                       # (2, 2, C, kh*kw, N, Ho, Wo)
    p = p.reshape(4, C * kh * kw, N * Ho * Wo)
    return p, Ho, Wo


# ---------------- wrappers ----------------

def conv_pool_relu(x_cnhw, w, b):
    # Fused Conv2d(valid, stride 1) + MaxPool2d(2) + ReLU.
    # x_cnhw: (C, N, H, W); w: (OC, C, KH, KW) (PyTorch); returns (OC, N, Ho, Wo).
    OC, C, KH, KW = w.shape
    _, N, _, _ = x_cnhw.shape
    K = C * KH * KW

    p, Ho, Wo = im2col_pool_quadrants(x_cnhw.astype(jnp.bfloat16), KH, KW)
    M4 = N * Ho * Wo

    # M-tiling: whole array for tiny batches; 128-aligned tiles when the
    # spatial/batch extent grows (keeps VMEM bounded on v7x, shards across TCs).
    m_blk = M4
    for cand in (2048, 1024, 512, 256, 128):
        if M4 > cand and M4 % cand == 0:
            m_blk = cand
            break
    grid = (M4 // m_blk,)

    out = pl.pallas_call(
        _conv_pool_relu_kernel,
        out_shape=jax.ShapeDtypeStruct((OC, M4), jnp.float32),
        grid=grid,
        in_specs=[
            pl.BlockSpec((4, K, m_blk), lambda m: (0, 0, m)),
            pl.BlockSpec((OC, K), lambda m: (0, 0)),
            pl.BlockSpec((OC, 1), lambda m: (0, 0)),
        ],
        out_specs=pl.BlockSpec((OC, m_blk), lambda m: (0, m)),
        compiler_params=pltpu.CompilerParams(
            dimension_semantics=("parallel",)),
    )(p, w.reshape(OC, K).astype(jnp.bfloat16), b.reshape(OC, 1).astype(jnp.float32))

    return out.reshape(OC, N, Ho, Wo)   # channel-major (C, N, H, W) layout


def mlp_head(x, w1, b1, w2, b2):
    # x: (N, 800) -> log-softmax logits (N, 10), single fused pallas_call.
    N = x.shape[0]
    num_classes = w2.shape[1]
    return pl.pallas_call(
        _mlp_head_kernel,
        out_shape=jax.ShapeDtypeStruct((N, num_classes), jnp.float32),
        in_specs=[VMEM_SPEC] * 5,
        out_specs=VMEM_SPEC,
    )(x.astype(jnp.bfloat16),
      w1.astype(jnp.bfloat16), b1.reshape(1, -1).astype(jnp.float32),
      w2.astype(jnp.bfloat16), b2.reshape(1, -1).astype(jnp.float32))


# ---------------- model ----------------

def init_params(key):
    # Deterministic synthetic init (PyTorch-style uniform(+-1/sqrt(fan_in))).
    ks = jax.random.split(key, 8)

    def u(k, shape, fan_in):
        bound = 1.0 / jnp.sqrt(jnp.float32(fan_in))
        return jax.random.uniform(k, shape, jnp.float32, -bound, bound)

    return {
        "conv1_w": u(ks[0], (20, 1, 5, 5), 25),
        "conv1_b": u(ks[1], (20,), 25),
        "conv2_w": u(ks[2], (50, 20, 5, 5), 500),
        "conv2_b": u(ks[3], (50,), 500),
        "fc1_w": u(ks[4], (800, 500), 800),   # stored as (in, out)
        "fc1_b": u(ks[5], (500,), 800),
        "fc2_w": u(ks[6], (500, 10), 500),
        "fc2_b": u(ks[7], (10,), 500),
    }


def convnet_forward(params, x):
    # x: (N, 1, 28, 28) NCHW.  Activations kept channel-major (C, N, H, W)
    # between the two fused conv kernels (no per-layer NHWC/NCHW transposes).
    N = x.shape[0]
    h = jnp.transpose(x, (1, 0, 2, 3))                              # (1, N, 28, 28)
    h = conv_pool_relu(h, params["conv1_w"], params["conv1_b"])     # (20, N, 12, 12)
    h = conv_pool_relu(h, params["conv2_w"], params["conv2_b"])     # (50, N, 4, 4)
    # flatten to the torch .reshape(-1, 800) feature order (c, h, w) per sample
    h = jnp.transpose(h, (1, 0, 2, 3)).reshape(N, -1)               # (N, 800)
    return mlp_head(h, params["fc1_w"], params["fc1_b"],
                    params["fc2_w"], params["fc2_b"])


if __name__ == "__main__":
    key = jax.random.PRNGKey(0)
    pkey, xkey = jax.random.split(key)
    params = init_params(pkey)
    # The module implies MNIST-style input: 28x28 single channel => 800 flat feats.
    x = jax.random.normal(xkey, (2, 1, 28, 28), jnp.float32)
    out = jax.jit(convnet_forward)(params, x)
    out = jax.block_until_ready(out)
    assert out.shape == (2, 10)
    # log-softmax rows must exponentiate to ~1
    assert bool(jnp.allclose(jnp.exp(out).sum(axis=1), 1.0, atol=1e-4))
    print("KERNEL_OK")
</pallas_src>

<mosaic_0001>
module attributes {stable_mosaic.version = 11 : i64} {
  func.func @_conv_pool_relu_kernel(%arg0: i32, %arg1: memref<4x25x288xbf16, #tpu.memory_space<vmem>>, %arg2: memref<20x25xbf16, #tpu.memory_space<vmem>>, %arg3: memref<20x1xf32, #tpu.memory_space<vmem>>, %arg4: memref<20x288xf32, #tpu.memory_space<vmem>>) attributes {dimension_semantics = [#tpu.dimension_semantics<parallel>], iteration_bounds = array<i64: 1>, scalar_prefetch = 0 : i64, scratch_operands = 0 : i64, tpu.core_type = #tpu.core_type<tc>, window_params = [{transform_indices = @transform_0, window_bounds = array<i64: 4, 25, 288>}, {pipeline_mode = #tpu.pipeline_mode<synchronous>, transform_indices = @transform_1, window_bounds = array<i64: 20, 25>}, {pipeline_mode = #tpu.pipeline_mode<synchronous>, transform_indices = @transform_2, window_bounds = array<i64: 20, 1>}, {transform_indices = @transform_3, window_bounds = array<i64: 20, 288>}]} {
    %c0 = arith.constant 0 : index
    %c0_0 = arith.constant 0 : index
    %0 = vector.load %arg2[%c0, %c0_0] : memref<20x25xbf16, #tpu.memory_space<vmem>>, vector<20x25xbf16>
    %c0_1 = arith.constant 0 : index
    %c0_2 = arith.constant 0 : index
    %c0_3 = arith.constant 0 : index
    %1 = vector.load %arg1[%c0_1, %c0_2, %c0_3] : memref<4x25x288xbf16, #tpu.memory_space<vmem>>, vector<1x25x288xbf16>
    %2 = vector.shape_cast %1 : vector<1x25x288xbf16> to vector<25x288xbf16>
    %cst = arith.constant dense<0.000000e+00> : vector<20x288xf32>
    %3 = tpu.matmul %0, %2, %cst {dimension_numbers = #tpu.dot_dimension_numbers<[1], [0], [0], [1], [0, 0, 1, 1], [], []>} : vector<20x25xbf16>, vector<25x288xbf16>, vector<20x288xf32> -> vector<20x288xf32>
    %c1 = arith.constant 1 : index
    %c0_4 = arith.constant 0 : index
    %c0_5 = arith.constant 0 : index
    %4 = vector.load %arg1[%c1, %c0_4, %c0_5] : memref<4x25x288xbf16, #tpu.memory_space<vmem>>, vector<1x25x288xbf16>
    %5 = vector.shape_cast %4 : vector<1x25x288xbf16> to vector<25x288xbf16>
    %cst_6 = arith.constant dense<0.000000e+00> : vector<20x288xf32>
    %6 = tpu.matmul %0, %5, %cst_6 {dimension_numbers = #tpu.dot_dimension_numbers<[1], [0], [0], [1], [0, 0, 1, 1], [], []>} : vector<20x25xbf16>, vector<25x288xbf16>, vector<20x288xf32> -> vector<20x288xf32>
    %c2 = arith.constant 2 : index
    %c0_7 = arith.constant 0 : index
    %c0_8 = arith.constant 0 : index
    %7 = vector.load %arg1[%c2, %c0_7, %c0_8] : memref<4x25x288xbf16, #tpu.memory_space<vmem>>, vector<1x25x288xbf16>
    %8 = vector.shape_cast %7 : vector<1x25x288xbf16> to vector<25x288xbf16>
    %cst_9 = arith.constant dense<0.000000e+00> : vector<20x288xf32>
    %9 = tpu.matmul %0, %8, %cst_9 {dimension_numbers = #tpu.dot_dimension_numbers<[1], [0], [0], [1], [0, 0, 1, 1], [], []>} : vector<20x25xbf16>, vector<25x288xbf16>, vector<20x288xf32> -> vector<20x288xf32>
    %c3 = arith.constant 3 : index
    %c0_10 = arith.constant 0 : index
    %c0_11 = arith.constant 0 : index
    %10 = vector.load %arg1[%c3, %c0_10, %c0_11] : memref<4x25x288xbf16, #tpu.memory_space<vmem>>, vector<1x25x288xbf16>
    %11 = vector.shape_cast %10 : vector<1x25x288xbf16> to vector<25x288xbf16>
    %cst_12 = arith.constant dense<0.000000e+00> : vector<20x288xf32>
    %12 = tpu.matmul %0, %11, %cst_12 {dimension_numbers = #tpu.dot_dimension_numbers<[1], [0], [0], [1], [0, 0, 1, 1], [], []>} : vector<20x25xbf16>, vector<25x288xbf16>, vector<20x288xf32> -> vector<20x288xf32>
    %13 = arith.maximumf %3, %6 : vector<20x288xf32>
    %14 = arith.maximumf %9, %12 : vector<20x288xf32>
    %15 = arith.maximumf %13, %14 : vector<20x288xf32>
    %c0_13 = arith.constant 0 : index
    %c0_14 = arith.constant 0 : index
    %16 = vector.load %arg3[%c0_13, %c0_14] : memref<20x1xf32, #tpu.memory_space<vmem>>, vector<20x1xf32>
    %17 = vector.broadcast %16 : vector<20x1xf32> to vector<20x288xf32>
    %18 = arith.addf %15, %17 : vector<20x288xf32>
    %cst_15 = arith.constant 0.000000e+00 : f32
    %19 = vector.broadcast %cst_15 : f32 to vector<20x288xf32>
    %20 = arith.maximumf %18, %19 : vector<20x288xf32>
    %c0_16 = arith.constant 0 : index
    %c0_17 = arith.constant 0 : index
    %21 = vector.load %arg4[%c0_16, %c0_17] : memref<20x288xf32, #tpu.memory_space<vmem>>, vector<20x288xf32>
    tpu.vector_store %arg4[%c0_16, %c0_17], %20 {strides = array<i32>} : memref<20x288xf32, #tpu.memory_space<vmem>>, vector<20x288xf32>,
    return
  }
  func.func @transform_0(%arg0: i32) -> (i32, i32, i32) {
    %c0_i32 = arith.constant 0 : i32
    %c0_i32_0 = arith.constant 0 : i32
    %c0_i32_1 = arith.constant 0 : i32
    return %c0_i32, %c0_i32_0, %arg0 : i32, i32, i32
  }
  func.func @transform_1(%arg0: i32) -> (i32, i32) {
    %c0_i32 = arith.constant 0 : i32
    %c0_i32_0 = arith.constant 0 : i32
    %c0_i32_1 = arith.constant 0 : i32
    return %c0_i32, %c0_i32_0 : i32, i32
  }
  func.func @transform_2(%arg0: i32) -> (i32, i32) {
    %c0_i32 = arith.constant 0 : i32
    %c0_i32_0 = arith.constant 0 : i32
    %c0_i32_1 = arith.constant 0 : i32
    return %c0_i32, %c0_i32_0 : i32, i32
  }
  func.func @transform_3(%arg0: i32) -> (i32, i32) {
    %c0_i32 = arith.constant 0 : i32
    %c0_i32_0 = arith.constant 0 : i32
    return %c0_i32, %arg0 : i32, i32
  }
}

module attributes {stable_mosaic.version = 11 : i64} {
  func.func @_conv_pool_relu_kernel(%arg0: i32, %arg1: memref<4x500x32xbf16, #tpu.memory_space<vmem>>, %arg2: memref<50x500xbf16, #tpu.memory_space<vmem>>, %arg3: memref<50x1xf32, #tpu.memory_space<vmem>>, %arg4: memref<50x32xf32, #tpu.memory_space<vmem>>) attributes {dimension_semantics = [#tpu.dimension_semantics<parallel>], iteration_bounds = array<i64: 1>, scalar_prefetch = 0 : i64, scratch_operands = 0 : i64, tpu.core_type = #tpu.core_type<tc>, window_params = [{transform_indices = @transform_0, window_bounds = array<i64: 4, 500, 32>}, {pipeline_mode = #tpu.pipeline_mode<synchronous>, transform_indices = @transform_1, window_bounds = array<i64: 50, 500>}, {pipeline_mode = #tpu.pipeline_mode<synchronous>, transform_indices = @transform_2, window_bounds = array<i64: 50, 1>}, {transform_indices = @transform_3, window_bounds = array<i64: 50, 32>}]} {
    %c0 = arith.constant 0 : index
    %c0_0 = arith.constant 0 : index
    %0 = vector.load %arg2[%c0, %c0_0] : memref<50x500xbf16, #tpu.memory_space<vmem>>, vector<50x500xbf16>
    %c0_1 = arith.constant 0 : index
    %c0_2 = arith.constant 0 : index
    %c0_3 = arith.constant 0 : index
    %1 = vector.load %arg1[%c0_1, %c0_2, %c0_3] : memref<4x500x32xbf16, #tpu.memory_space<vmem>>, vector<1x500x32xbf16>
    %2 = vector.shape_cast %1 : vector<1x500x32xbf16> to vector<500x32xbf16>
    %cst = arith.constant dense<0.000000e+00> : vector<50x32xf32>
    %3 = tpu.matmul %0, %2, %cst {dimension_numbers = #tpu.dot_dimension_numbers<[1], [0], [0], [1], [0, 0, 1, 1], [], []>} : vector<50x500xbf16>, vector<500x32xbf16>, vector<50x32xf32> -> vector<50x32xf32>
    %c1 = arith.constant 1 : index
    %c0_4 = arith.constant 0 : index
    %c0_5 = arith.constant 0 : index
    %4 = vector.load %arg1[%c1, %c0_4, %c0_5] : memref<4x500x32xbf16, #tpu.memory_space<vmem>>, vector<1x500x32xbf16>
    %5 = vector.shape_cast %4 : vector<1x500x32xbf16> to vector<500x32xbf16>
    %cst_6 = arith.constant dense<0.000000e+00> : vector<50x32xf32>
    %6 = tpu.matmul %0, %5, %cst_6 {dimension_numbers = #tpu.dot_dimension_numbers<[1], [0], [0], [1], [0, 0, 1, 1], [], []>} : vector<50x500xbf16>, vector<500x32xbf16>, vector<50x32xf32> -> vector<50x32xf32>
    %c2 = arith.constant 2 : index
    %c0_7 = arith.constant 0 : index
    %c0_8 = arith.constant 0 : index
    %7 = vector.load %arg1[%c2, %c0_7, %c0_8] : memref<4x500x32xbf16, #tpu.memory_space<vmem>>, vector<1x500x32xbf16>
    %8 = vector.shape_cast %7 : vector<1x500x32xbf16> to vector<500x32xbf16>
    %cst_9 = arith.constant dense<0.000000e+00> : vector<50x32xf32>
    %9 = tpu.matmul %0, %8, %cst_9 {dimension_numbers = #tpu.dot_dimension_numbers<[1], [0], [0], [1], [0, 0, 1, 1], [], []>} : vector<50x500xbf16>, vector<500x32xbf16>, vector<50x32xf32> -> vector<50x32xf32>
    %c3 = arith.constant 3 : index
    %c0_10 = arith.constant 0 : index
    %c0_11 = arith.constant 0 : index
    %10 = vector.load %arg1[%c3, %c0_10, %c0_11] : memref<4x500x32xbf16, #tpu.memory_space<vmem>>, vector<1x500x32xbf16>
    %11 = vector.shape_cast %10 : vector<1x500x32xbf16> to vector<500x32xbf16>
    %cst_12 = arith.constant dense<0.000000e+00> : vector<50x32xf32>
    %12 = tpu.matmul %0, %11, %cst_12 {dimension_numbers = #tpu.dot_dimension_numbers<[1], [0], [0], [1], [0, 0, 1, 1], [], []>} : vector<50x500xbf16>, vector<500x32xbf16>, vector<50x32xf32> -> vector<50x32xf32>
    %13 = arith.maximumf %3, %6 : vector<50x32xf32>
    %14 = arith.maximumf %9, %12 : vector<50x32xf32>
    %15 = arith.maximumf %13, %14 : vector<50x32xf32>
    %c0_13 = arith.constant 0 : index
    %c0_14 = arith.constant 0 : index
    %16 = vector.load %arg3[%c0_13, %c0_14] : memref<50x1xf32, #tpu.memory_space<vmem>>, vector<50x1xf32>
    %17 = vector.broadcast %16 : vector<50x1xf32> to vector<50x32xf32>
    %18 = arith.addf %15, %17 : vector<50x32xf32>
    %cst_15 = arith.constant 0.000000e+00 : f32
    %19 = vector.broadcast %cst_15 : f32 to vector<50x32xf32>
    %20 = arith.maximumf %18, %19 : vector<50x32xf32>
    %c0_16 = arith.constant 0 : index
    %c0_17 = arith.constant 0 : index
    %21 = vector.load %arg4[%c0_16, %c0_17] : memref<50x32xf32, #tpu.memory_space<vmem>>, vector<50x32xf32>
    tpu.vector_store %arg4[%c0_16, %c0_17], %20 {strides = array<i32>} : memref<50x32xf32, #tpu.memory_space<vmem>>, vector<50x32xf32>,
    return
  }
  func.func @transform_0(%arg0: i32) -> (i32, i32, i32) {
    %c0_i32 = arith.constant 0 : i32
    %c0_i32_0 = arith.constant 0 : i32
    %c0_i32_1 = arith.constant 0 : i32
    return %c0_i32, %c0_i32_0, %arg0 : i32, i32, i32
  }
  func.func @transform_1(%arg0: i32) -> (i32, i32) {
    %c0_i32 = arith.constant 0 : i32
    %c0_i32_0 = arith.constant 0 : i32
    %c0_i32_1 = arith.constant 0 : i32
    return %c0_i32, %c0_i32_0 : i32, i32
  }
  func.func @transform_2(%arg0: i32) -> (i32, i32) {
    %c0_i32 = arith.constant 0 : i32
    %c0_i32_0 = arith.constant 0 : i32
    %c0_i32_1 = arith.constant 0 : i32
    return %c0_i32, %c0_i32_0 : i32, i32
  }
  func.func @transform_3(%arg0: i32) -> (i32, i32) {
    %c0_i32 = arith.constant 0 : i32
    %c0_i32_0 = arith.constant 0 : i32
    return %c0_i32, %arg0 : i32, i32
  }
}

module attributes {stable_mosaic.version = 11 : i64} {
  func.func @_mlp_head_kernel(%arg0: memref<2x800xbf16, #tpu.memory_space<vmem>>, %arg1: memref<800x500xbf16, #tpu.memory_space<vmem>>, %arg2: memref<1x500xf32, #tpu.memory_space<vmem>>, %arg3: memref<500x10xbf16, #tpu.memory_space<vmem>>, %arg4: memref<1x10xf32, #tpu.memory_space<vmem>>, %arg5: memref<2x10xf32, #tpu.memory_space<vmem>>) attributes {dimension_semantics = [], scalar_prefetch = 0 : i64, scratch_operands = 0 : i64, tpu.core_type = #tpu.core_type<tc>} {
    %c0 = arith.constant 0 : index
    %c0_0 = arith.constant 0 : index
    %0 = vector.load %arg0[%c0, %c0_0] : memref<2x800xbf16, #tpu.memory_space<vmem>>, vector<2x800xbf16>
    %c0_1 = arith.constant 0 : index
    %c0_2 = arith.constant 0 : index
    %1 = vector.load %arg1[%c0_1, %c0_2] : memref<800x500xbf16, #tpu.memory_space<vmem>>, vector<800x500xbf16>
    %cst = arith.constant dense<0.000000e+00> : vector<2x500xf32>
    %2 = tpu.matmul %0, %1, %cst {dimension_numbers = #tpu.dot_dimension_numbers<[1], [0], [0], [1], [0, 0, 1, 1], [], []>} : vector<2x800xbf16>, vector<800x500xbf16>, vector<2x500xf32> -> vector<2x500xf32>
    %c0_3 = arith.constant 0 : index
    %c0_4 = arith.constant 0 : index
    %3 = vector.load %arg2[%c0_3, %c0_4] : memref<1x500xf32, #tpu.memory_space<vmem>>, vector<1x500xf32>
    %4 = vector.broadcast %3 : vector<1x500xf32> to vector<2x500xf32>
    %5 = arith.addf %2, %4 : vector<2x500xf32>
    %cst_5 = arith.constant 0.000000e+00 : f32
    %6 = vector.broadcast %cst_5 : f32 to vector<2x500xf32>
    %7 = arith.maximumf %5, %6 : vector<2x500xf32>
    %8 = arith.truncf %7 : vector<2x500xf32> to vector<2x500xbf16>
    %c0_6 = arith.constant 0 : index
    %c0_7 = arith.constant 0 : index
    %9 = vector.load %arg3[%c0_6, %c0_7] : memref<500x10xbf16, #tpu.memory_space<vmem>>, vector<500x10xbf16>
    %cst_8 = arith.constant dense<0.000000e+00> : vector<2x10xf32>
    %10 = tpu.matmul %8, %9, %cst_8 {dimension_numbers = #tpu.dot_dimension_numbers<[1], [0], [0], [1], [0, 0, 1, 1], [], []>} : vector<2x500xbf16>, vector<500x10xbf16>, vector<2x10xf32> -> vector<2x10xf32>
    %c0_9 = arith.constant 0 : index
    %c0_10 = arith.constant 0 : index
    %11 = vector.load %arg4[%c0_9, %c0_10] : memref<1x10xf32, #tpu.memory_space<vmem>>, vector<1x10xf32>
    %12 = vector.broadcast %11 : vector<1x10xf32> to vector<2x10xf32>
    %13 = arith.addf %10, %12 : vector<2x10xf32>
    %cst_11 = arith.constant dense<0xFF800000> : vector<2xf32>
    %14 = vector.multi_reduction <maximumf>, %13, %cst_11 [1] : vector<2x10xf32> to vector<2xf32>
    %15 = vector.shape_cast %14 : vector<2xf32> to vector<2x1xf32>
    %16 = vector.broadcast %15 : vector<2x1xf32> to vector<2x10xf32>
    %17 = arith.subf %13, %16 : vector<2x10xf32>
    %18 = math.exp %17 : vector<2x10xf32>
    %cst_12 = arith.constant dense<0.000000e+00> : vector<2xf32>
    %19 = vector.multi_reduction <add>, %18, %cst_12 [1] : vector<2x10xf32> to vector<2xf32>
    %20 = vector.shape_cast %19 : vector<2xf32> to vector<2x1xf32>
    %21 = math.log %20 : vector<2x1xf32>
    %22 = arith.addf %21, %15 : vector<2x1xf32>
    %23 = vector.broadcast %22 : vector<2x1xf32> to vector<2x10xf32>
    %24 = arith.subf %13, %23 : vector<2x10xf32>
    %c0_13 = arith.constant 0 : index
    %c0_14 = arith.constant 0 : index
    %25 = vector.load %arg5[%c0_13, %c0_14] : memref<2x10xf32, #tpu.memory_space<vmem>>, vector<2x10xf32>
    tpu.vector_store %arg5[%c0_13, %c0_14], %24 {strides = array<i32>} : memref<2x10xf32, #tpu.memory_space<vmem>>, vector<2x10xf32>,
    return
  }
}

</mosaic_0001>

<llo_original>
// kernel: convnet_forward.3
$region0: #{convnet_forward.3}
  #allocation0 [shape = 'u32[]', space=smem, size = 0x4, offset = 0x4, fixed_abs, tag = 'smem constant byte address 0x4 - core index']
  #allocation1 [shape = 'u32[72,128]{1,0:T(1,128)}', space=vmem, size = 0x9000, scoped, tag = 'internal scratch']
  %s0 = inlined_call_operand.vmem [shape: bf16[4,25,288], index: 0, kind: input, shape index: {}]
  %s1 = inlined_call_operand.vmem [shape: bf16[20,25], index: 1, kind: input, shape index: {}]
  %s2 = inlined_call_operand.vmem [shape: f32[20,1], index: 2, kind: input, shape index: {}]
  %s3 = inlined_call_operand.vmem [shape: f32[20,288], index: 3, kind: output, shape index: {}]
  %s4 = sld [smem:[#allocation0]]
  $region22: #{convnet_forward.3} parent=0
    _
  %s6 = ssub.s32 1, %s4
  %s7 = scalar_select 0, %s6, %s4
  // Predicated region
  $region2: #{convnet_forward.3} parent=0 // pred_check
    _
  $region3: #{convnet_forward.3} parent=0 // pred_check_branch
    %9 = sbr.rel (0) target = $region5
  $region4: #{convnet_forward.3} parent=0 // pred_region
    _
  $region5: #{convnet_forward.3} parent=0 // pred_fallthru
    _
  // Predicated region
  $region6: #{convnet_forward.3} parent=0 // pred_check
    _
  $region7: #{convnet_forward.3} parent=0 // pred_check_branch
    %11 = sbr.rel (0) target = $region9
  $region8: #{convnet_forward.3} parent=0 // pred_region
    _
  $region9: #{convnet_forward.3} parent=0 // pred_fallthru
    _
  // Predicated region
  $region10: #{convnet_forward.3} parent=0 // pred_check
    _
  $region11: #{convnet_forward.3} parent=0 // pred_check_branch
    %13 = sbr.rel (0) target = $region13
  $region12: #{convnet_forward.3} parent=0 // pred_region
    _
  $region13: #{convnet_forward.3} parent=0 // pred_fallthru
    _
  %v15 = vld [vmem:[%s1] sm:$0xf]
  %v16 = vld [vmem:[%s1 + $0x4] sm:$0xf]
  %v17 = vld [vmem:[%s1 + $0x8] sm:$0x3]
  %v18 = vld [vmem:[%s0] sm:$0xff]
  %v19 = vld [vmem:[%s0 + $0x8] sm:$0xf]
  %v20 = vld [vmem:[%s0 + $0xc] sm:$0xff]
  %v21 = vld [vmem:[%s0 + $0x14] sm:$0xf]
  %v22 = vld [vmem:[%s0 + $0x18] sm:$0xff]
  %v23 = vld [vmem:[%s0 + $0x20] sm:$0xf]
  %v24 = vld [vmem:[%s0 + $0x24] sm:$0x11]
  %v25 = vld [vmem:[%s0 + $0x2c] sm:$0x1]
  %v29 = vunpack.c.l.b16 %v15
  %v30 = vunpack.c.l.b16 %v16
  %v31 = vunpack.c.l.b16 %v17
  %v32 = vpack.c.b16 %v30, %v29
  %v33 = vpack.c.b16 %v31, %v31
  %v42 = vunpack.c.l.b16 %v18
  %v43 = vunpack.c.h.b16 %v18
  %v44 = vunpack.c.l.b16 %v19
  %v45 = vunpack.c.l.b16 %v20
  %v46 = vunpack.c.h.b16 %v20
  %v47 = vunpack.c.l.b16 %v21
  %v48 = vunpack.c.l.b16 %v22
  %v49 = vunpack.c.h.b16 %v22
  %v50 = vunpack.c.l.b16 %v23
  %v51 = vunpack.c.l.b16 %v24
  %v52 = vunpack.c.h.b16 %v24
  %v53 = vunpack.c.l.b16 %v25
  %v54 = vpack.c.b16 %v45, %v42
  %v55 = vpack.c.b16 %v46, %v43
  %v56 = vpack.c.b16 %v47, %v44
  %v57 = vpack.c.b16 %v51, %v48
  %v58 = vpack.c.b16 %v52, %v49
  %v59 = vpack.c.b16 %v53, %v50
  %vm63 = vcmask 203776
  %v65 = vsel %vm63, %v32, 0
  %v68 = vsel %vm63, %v33, 0
  %vm70 = vcmask 1043456
  %vm71 = vcmask 1044480
  %v72 = vsel %vm70, 4294967295, 65535
  %v73 = vsel %vm71, %v72, 0
  %v75 = vand.u32 %v57, %v73
  %v78 = vand.u32 %v58, %v73
  %v81 = vand.u32 %v59, %v73
  %83 = vmatpush.bf16.msra.mxu0 0
  %84 = vmatpush.bf16.msra.mxu0 0
  %85 = vmatpush.bf16.msra.mxu0 0
  %86 = vmatpush.bf16.msra.mxu0 0
  %87 = vmatpush.bf16.msra.mxu0 0
  %88 = vmatpush.bf16.msra.mxu0 0
  %89 = vmatpush.bf16.msra.mxu0 %v75
  %90 = vmatpush.bf16.msra.mxu0 %v54
  %91 = vmatmul.bf16.gmra.mxu0 %v65
  %v92 = vpop.f32.mrf.mxu0
  %v93 = vadd.f32 0.0, %v92
  %v94 = vpop.f32.mrf.mxu0
  %v95 = vadd.f32 0.0, %v94
  %96 = vmatmul.bf16.gmra.mxu0 %v68
  %v97 = vpop.f32.mrf.mxu0
  %v98 = vadd.f32 0.0, %v97
  %v99 = vpop.f32.mrf.mxu0
  %100 = vdwg.mxu0
  %101 = vmatpush.bf16.msra.mxu0 0
  %102 = vmatpush.bf16.msra.mxu0 0
  %103 = vmatpush.bf16.msra.mxu0 0
  %104 = vmatpush.bf16.msra.mxu0 0
  %105 = vmatpush.bf16.msra.mxu0 0
  %106 = vmatpush.bf16.msra.mxu0 0
  %107 = vmatpush.bf16.msra.mxu0 %v78
  %108 = vmatpush.bf16.msra.mxu0 %v55
  %109 = vmatmul.bf16.gmra.mxu0 %v65
  %v110 = vpop.f32.mrf.mxu0
  %v111 = vadd.f32 0.0, %v110
  %v112 = vpop.f32.mrf.mxu0
  %v113 = vadd.f32 0.0, %v112
  %114 = vmatmul.bf16.gmra.mxu0 %v68
  %v115 = vpop.f32.mrf.mxu0
  %v116 = vadd.f32 0.0, %v115
  %v117 = vpop.f32.mrf.mxu0
  %118 = vdwg.mxu0
  %119 = vmatpush.bf16.msra.mxu0 0
  %120 = vmatpush.bf16.msra.mxu0 0
  %121 = vmatpush.bf16.msra.mxu0 0
  %122 = vmatpush.bf16.msra.mxu0 0
  %123 = vmatpush.bf16.msra.mxu0 0
  %124 = vmatpush.bf16.msra.mxu0 0
  %125 = vmatpush.bf16.msra.mxu0 %v81
  %126 = vmatpush.bf16.msra.mxu0 %v56
  %127 = vmatmul.bf16.gmra.mxu0 %v65
  %v128 = vpop.f32.mrf.mxu0
  %v129 = vadd.f32 0.0, %v128
  %v130 = vpop.f32.mrf.mxu0
  %v131 = vadd.f32 0.0, %v130
  %132 = vmatmul.bf16.gmra.mxu0 %v68
  %v133 = vpop.f32.mrf.mxu0
  %v134 = vadd.f32 0.0, %v133
  %v135 = vpop.f32.mrf.mxu0
  %136 = vdwg.mxu0
  %s137 = scalar_lea.vmem %s0, 48
  %v138 = vld [vmem:[%s137] sm:$0xff]
  %v139 = vld [vmem:[%s137 + $0x8] sm:$0xf]
  %v140 = vld [vmem:[%s137 + $0xc] sm:$0xff]
  %v141 = vld [vmem:[%s137 + $0x14] sm:$0xf]
  %v142 = vld [vmem:[%s137 + $0x18] sm:$0xff]
  %v143 = vld [vmem:[%s137 + $0x20] sm:$0xf]
  %v144 = vld [vmem:[%s137 + $0x24] sm:$0x11]
  %v145 = vld [vmem:[%s137 + $0x2c] sm:$0x1]
  %v154 = vunpack.c.l.b16 %v138
  %v155 = vunpack.c.h.b16 %v138
  %v156 = vunpack.c.l.b16 %v139
  %v157 = vunpack.c.l.b16 %v140
  %v158 = vunpack.c.h.b16 %v140
  %v159 = vunpack.c.l.b16 %v141
  %v160 = vunpack.c.l.b16 %v142
  %v161 = vunpack.c.h.b16 %v142
  %v162 = vunpack.c.l.b16 %v143
  %v163 = vunpack.c.l.b16 %v144
  %v164 = vunpack.c.h.b16 %v144
  %v165 = vunpack.c.l.b16 %v145
  %v166 = vpack.c.b16 %v157, %v154
  %v167 = vpack.c.b16 %v158, %v155
  %v168 = vpack.c.b16 %v159, %v156
  %v169 = vpack.c.b16 %v163, %v160
  %v170 = vpack.c.b16 %v164, %v161
  %v171 = vpack.c.b16 %v165, %v162
  %v176 = vand.u32 %v169, %v73
  %v179 = vand.u32 %v170, %v73
  %v182 = vand.u32 %v171, %v73
  %184 = vmatpush.bf16.msra.mxu0 0
  %185 = vmatpush.bf16.msra.mxu0 0
  %186 = vmatpush.bf16.msra.mxu0 0
  %187 = vmatpush.bf16.msra.mxu0 0
  %188 = vmatpush.bf16.msra.mxu0 0
  %189 = vmatpush.bf16.msra.mxu0 0
  %190 = vmatpush.bf16.msra.mxu0 %v176
  %191 = vmatpush.bf16.msra.mxu0 %v166
  %192 = vmatmul.bf16.gmra.mxu0 %v65
  %v193 = vpop.f32.mrf.mxu0
  %v194 = vadd.f32 0.0, %v193
  %v195 = vpop.f32.mrf.mxu0
  %v196 = vadd.f32 0.0, %v195
  %197 = vmatmul.bf16.gmra.mxu0 %v68
  %v198 = vpop.f32.mrf.mxu0
  %v199 = vadd.f32 0.0, %v198
  %v200 = vpop.f32.mrf.mxu0
  %201 = vdwg.mxu0
  %202 = vmatpush.bf16.msra.mxu0 0
  %203 = vmatpush.bf16.msra.mxu0 0
  %204 = vmatpush.bf16.msra.mxu0 0
  %205 = vmatpush.bf16.msra.mxu0 0
  %206 = vmatpush.bf16.msra.mxu0 0
  %207 = vmatpush.bf16.msra.mxu0 0
  %208 = vmatpush.bf16.msra.mxu0 %v179
  %209 = vmatpush.bf16.msra.mxu0 %v167
  %210 = vmatmul.bf16.gmra.mxu0 %v65
  %v211 = vpop.f32.mrf.mxu0
  %v212 = vadd.f32 0.0, %v211
  %v213 = vpop.f32.mrf.mxu0
  %v214 = vadd.f32 0.0, %v213
  %215 = vmatmul.bf16.gmra.mxu0 %v68
  %v216 = vpop.f32.mrf.mxu0
  %v217 = vadd.f32 0.0, %v216
  %v218 = vpop.f32.mrf.mxu0
  %219 = vdwg.mxu0
  %220 = vmatpush.bf16.msra.mxu0 0
  %221 = vmatpush.bf16.msra.mxu0 0
  %222 = vmatpush.bf16.msra.mxu0 0
  %223 = vmatpush.bf16.msra.mxu0 0
  %224 = vmatpush.bf16.msra.mxu0 0
  %225 = vmatpush.bf16.msra.mxu0 0
  %226 = vmatpush.bf16.msra.mxu0 %v182
  %227 = vmatpush.bf16.msra.mxu0 %v168
  %228 = vmatmul.bf16.gmra.mxu0 %v65
  %v229 = vpop.f32.mrf.mxu0
  %v230 = vadd.f32 0.0, %v229
  %v231 = vpop.f32.mrf.mxu0
  %v232 = vadd.f32 0.0, %v231
  %233 = vmatmul.bf16.gmra.mxu0 %v68
  %v234 = vpop.f32.mrf.mxu0
  %v235 = vadd.f32 0.0, %v234
  %v236 = vpop.f32.mrf.mxu0
  %237 = vdwg.mxu0
  %s238 = scalar_lea.vmem %s0, 96
  %v239 = vld [vmem:[%s238] sm:$0xff]
  %v240 = vld [vmem:[%s238 + $0x8] sm:$0xf]
  %v241 = vld [vmem:[%s238 + $0xc] sm:$0xff]
  %v242 = vld [vmem:[%s238 + $0x14] sm:$0xf]
  %v243 = vld [vmem:[%s238 + $0x18] sm:$0xff]
  %v244 = vld [vmem:[%s238 + $0x20] sm:$0xf]
  %v245 = vld [vmem:[%s238 + $0x24] sm:$0x11]
  %v246 = vld [vmem:[%s238 + $0x2c] sm:$0x1]
  %v255 = vunpack.c.l.b16 %v239
  %v256 = vunpack.c.h.b16 %v239
  %v257 = vunpack.c.l.b16 %v240
  %v258 = vunpack.c.l.b16 %v241
  %v259 = vunpack.c.h.b16 %v241
  %v260 = vunpack.c.l.b16 %v242
  %v261 = vunpack.c.l.b16 %v243
  %v262 = vunpack.c.h.b16 %v243
  %v263 = vunpack.c.l.b16 %v244
  %v264 = vunpack.c.l.b16 %v245
  %v265 = vunpack.c.h.b16 %v245
  %v266 = vunpack.c.l.b16 %v246
  %v267 = vpack.c.b16 %v258, %v255
  %v268 = vpack.c.b16 %v259, %v256
  %v269 = vpack.c.b16 %v260, %v257
  %v270 = vpack.c.b16 %v264, %v261
  %v271 = vpack.c.b16 %v265, %v262
  %v272 = vpack.c.b16 %v266, %v263
  %v277 = vand.u32 %v270, %v73
  %v280 = vand.u32 %v271, %v73
  %v283 = vand.u32 %v272, %v73
  %285 = vmatpush.bf16.msra.mxu0 0
  %286 = vmatpush.bf16.msra.mxu0 0
  %287 = vmatpush.bf16.msra.mxu0 0
  %288 = vmatpush.bf16.msra.mxu0 0
  %289 = vmatpush.bf16.msra.mxu0 0
  %290 = vmatpush.bf16.msra.mxu0 0
  %291 = vmatpush.bf16.msra.mxu0 %v277
  %292 = vmatpush.bf16.msra.mxu0 %v267
  %293 = vmatmul.bf16.gmra.mxu0 %v65
  %v294 = vpop.f32.mrf.mxu0
  %v295 = vadd.f32 0.0, %v294
  %v296 = vpop.f32.mrf.mxu0
  %v297 = vadd.f32 0.0, %v296
  %298 = vmatmul.bf16.gmra.mxu0 %v68
  %v299 = vpop.f32.mrf.mxu0
  %v300 = vadd.f32 0.0, %v299
  %v301 = vpop.f32.mrf.mxu0
  %302 = vdwg.mxu0
  %303 = vmatpush.bf16.msra.mxu0 0
  %304 = vmatpush.bf16.msra.mxu0 0
  %305 = vmatpush.bf16.msra.mxu0 0
  %306 = vmatpush.bf16.msra.mxu0 0
  %307 = vmatpush.bf16.msra.mxu0 0
  %308 = vmatpush.bf16.msra.mxu0 0
  %309 = vmatpush.bf16.msra.mxu0 %v280
  %310 = vmatpush.bf16.msra.mxu0 %v268
  %311 = vmatmul.bf16.gmra.mxu0 %v65
  %v312 = vpop.f32.mrf.mxu0
  %v313 = vadd.f32 0.0, %v312
  %v314 = vpop.f32.mrf.mxu0
  %v315 = vadd.f32 0.0, %v314
  %316 = vmatmul.bf16.gmra.mxu0 %v68
  %v317 = vpop.f32.mrf.mxu0
  %v318 = vadd.f32 0.0, %v317
  %v319 = vpop.f32.mrf.mxu0
  %320 = vdwg.mxu0
  %321 = vmatpush.bf16.msra.mxu0 0
  %322 = vmatpush.bf16.msra.mxu0 0
  %323 = vmatpush.bf16.msra.mxu0 0
  %324 = vmatpush.bf16.msra.mxu0 0
  %325 = vmatpush.bf16.msra.mxu0 0
  %326 = vmatpush.bf16.msra.mxu0 0
  %327 = vmatpush.bf16.msra.mxu0 %v283
  %328 = vmatpush.bf16.msra.mxu0 %v269
  %329 = vmatmul.bf16.gmra.mxu0 %v65
  %v330 = vpop.f32.mrf.mxu0
  %v331 = vadd.f32 0.0, %v330
  %v332 = vpop.f32.mrf.mxu0
  %v333 = vadd.f32 0.0, %v332
  %334 = vmatmul.bf16.gmra.mxu0 %v68
  %v335 = vpop.f32.mrf.mxu0
  %v336 = vadd.f32 0.0, %v335
  %v337 = vpop.f32.mrf.mxu0
  %338 = vdwg.mxu0
  %s339 = scalar_lea.vmem %s0, 144
  %v340 = vld [vmem:[%s339] sm:$0xff]
  %v341 = vld [vmem:[%s339 + $0x8] sm:$0xf]
  %v342 = vld [vmem:[%s339 + $0xc] sm:$0xff]
  %v343 = vld [vmem:[%s339 + $0x14] sm:$0xf]
  %v344 = vld [vmem:[%s339 + $0x18] sm:$0xff]
  %v345 = vld [vmem:[%s339 + $0x20] sm:$0xf]
  %v346 = vld [vmem:[%s339 + $0x24] sm:$0x11]
  %v347 = vld [vmem:[%s339 + $0x2c] sm:$0x1]
  %v356 = vunpack.c.l.b16 %v340
  %v357 = vunpack.c.h.b16 %v340
  %v358 = vunpack.c.l.b16 %v341
  %v359 = vunpack.c.l.b16 %v342
  %v360 = vunpack.c.h.b16 %v342
  %v361 = vunpack.c.l.b16 %v343
  %v362 = vunpack.c.l.b16 %v344
  %v363 = vunpack.c.h.b16 %v344
  %v364 = vunpack.c.l.b16 %v345
  %v365 = vunpack.c.l.b16 %v346
  %v366 = vunpack.c.h.b16 %v346
  %v367 = vunpack.c.l.b16 %v347
  %v368 = vpack.c.b16 %v359, %v356
  %v369 = vpack.c.b16 %v360, %v357
  %v370 = vpack.c.b16 %v361, %v358
  %v371 = vpack.c.b16 %v365, %v362
  %v372 = vpack.c.b16 %v366, %v363
  %v373 = vpack.c.b16 %v367, %v364
  %v378 = vand.u32 %v371, %v73
  %v381 = vand.u32 %v372, %v73
  %v384 = vand.u32 %v373, %v73
  %386 = vmatpush.bf16.msra.mxu0 0
  %387 = vmatpush.bf16.msra.mxu0 0
  %388 = vmatpush.bf16.msra.mxu0 0
  %389 = vmatpush.bf16.msra.mxu0 0
  %390 = vmatpush.bf16.msra.mxu0 0
  %391 = vmatpush.bf16.msra.mxu0 0
  %392 = vmatpush.bf16.msra.mxu0 %v378
  %393 = vmatpush.bf16.msra.mxu0 %v368
  %394 = vmatmul.bf16.gmra.mxu0 %v65
  %v395 = vpop.f32.mrf.mxu0
  %v396 = vadd.f32 0.0, %v395
  %v397 = vpop.f32.mrf.mxu0
  %v398 = vadd.f32 0.0, %v397
  %399 = vmatmul.bf16.gmra.mxu0 %v68
  %v400 = vpop.f32.mrf.mxu0
  %v401 = vadd.f32 0.0, %v400
  %v402 = vpop.f32.mrf.mxu0
  %403 = vdwg.mxu0
  %404 = vmatpush.bf16.msra.mxu0 0
  %405 = vmatpush.bf16.msra.mxu0 0
  %406 = vmatpush.bf16.msra.mxu0 0
  %407 = vmatpush.bf16.msra.mxu0 0
  %408 = vmatpush.bf16.msra.mxu0 0
  %409 = vmatpush.bf16.msra.mxu0 0
  %410 = vmatpush.bf16.msra.mxu0 %v381
  %411 = vmatpush.bf16.msra.mxu0 %v369
  %412 = vmatmul.bf16.gmra.mxu0 %v65
  %v413 = vpop.f32.mrf.mxu0
  %v414 = vadd.f32 0.0, %v413
  %v415 = vpop.f32.mrf.mxu0
  %v416 = vadd.f32 0.0, %v415
  %417 = vmatmul.bf16.gmra.mxu0 %v68
  %v418 = vpop.f32.mrf.mxu0
  %v419 = vadd.f32 0.0, %v418
  %v420 = vpop.f32.mrf.mxu0
  %421 = vdwg.mxu0
  %422 = vmatpush.bf16.msra.mxu0 0
  %423 = vmatpush.bf16.msra.mxu0 0
  %424 = vmatpush.bf16.msra.mxu0 0
  %425 = vmatpush.bf16.msra.mxu0 0
  %426 = vmatpush.bf16.msra.mxu0 0
  %427 = vmatpush.bf16.msra.mxu0 0
  %428 = vmatpush.bf16.msra.mxu0 %v384
  %429 = vmatpush.bf16.msra.mxu0 %v370
  %430 = vmatmul.bf16.gmra.mxu0 %v65
  %v431 = vpop.f32.mrf.mxu0
  %v432 = vadd.f32 0.0, %v431
  %v433 = vpop.f32.mrf.mxu0
  %v434 = vadd.f32 0.0, %v433
  %435 = vmatmul.bf16.gmra.mxu0 %v68
  %v436 = vpop.f32.mrf.mxu0
  %v437 = vadd.f32 0.0, %v436
  %v438 = vpop.f32.mrf.mxu0
  %439 = vdwg.mxu0
  %v440 = vmax.f32 %v93, %v194
  %v441 = vmax.f32 %v111, %v212
  %v442 = vmax.f32 %v129, %v230
  %v443 = vmax.f32 %v95, %v196
  %v444 = vmax.f32 %v113, %v214
  %v445 = vmax.f32 %v131, %v232
  %v446 = vmax.f32 %v98, %v199
  %v447 = vmax.f32 %v116, %v217
  %v448 = vmax.f32 %v134, %v235
  %v449 = vmax.f32 %v295, %v396
  %v450 = vmax.f32 %v313, %v414
  %v451 = vmax.f32 %v331, %v432
  %v452 = vmax.f32 %v297, %v398
  %v453 = vmax.f32 %v315, %v416
  %v454 = vmax.f32 %v333, %v434
  %v455 = vmax.f32 %v300, %v401
  %v456 = vmax.f32 %v318, %v419
  %v457 = vmax.f32 %v336, %v437
  %v458 = vmax.f32 %v440, %v449
  %v459 = vmax.f32 %v441, %v450
  %v460 = vmax.f32 %v442, %v451
  %v461 = vmax.f32 %v443, %v452
  %v462 = vmax.f32 %v444, %v453
  %v463 = vmax.f32 %v445, %v454
  %v464 = vmax.f32 %v446, %v455
  %v465 = vmax.f32 %v447, %v456
  %v466 = vmax.f32 %v448, %v457
  %v467 = vld [vmem:[%s2] sm:$0xff]
  %v468 = vld [vmem:[%s2 + $0x8] sm:$0xff]
  %v469 = vld [vmem:[%s2 + $0x10] sm:$0xf]
  %471 = vset.pattern.permute.xlu0 0
  %472 = vperm.xlu0 %471, %v467
  %v473 = vpop.permute.xlu0 %472
  %476 = vset.pattern.permute.xlu0 0
  %477 = vperm.xlu0 %476, %v468
  %v478 = vpop.permute.xlu0 %477
  %481 = vset.pattern.permute.xlu0 0
  %482 = vperm.xlu0 %481, %v469
  %v483 = vpop.permute.xlu0 %482
  %v485 = vadd.f32 %v458, %v473
  %v486 = vadd.f32 %v459, %v473
  %v487 = vadd.f32 %v460, %v473
  %v488 = vadd.f32 %v461, %v478
  %v489 = vadd.f32 %v462, %v478
  %v490 = vadd.f32 %v463, %v478
  %v491 = vadd.f32 %v464, %v483
  %v492 = vadd.f32 %v465, %v483
  %v493 = vadd.f32 %v466, %v483
  %v494 = vmax.f32 %v485, 0.0
  %v495 = vmax.f32 %v486, 0.0
  %v496 = vmax.f32 %v487, 0.0
  %v497 = vmax.f32 %v488, 0.0
  %v498 = vmax.f32 %v489, 0.0
  %v499 = vmax.f32 %v490, 0.0
  %v500 = vmax.f32 %v491, 0.0
  %v501 = vmax.f32 %v492, 0.0
  %v502 = vmax.f32 %v493, 0.0
  %503 = vst [vmem:[%s3] sm:$0xff] %v494
  %504 = vst [vmem:[%s3 + $0x8] sm:$0xff] %v495
  %vm505 = vcmask 261120
  %506 = vst.msk [vmem:[%s3 + $0x10] sm:$0xff] %vm505, %v496
  %507 = vst [vmem:[%s3 + $0x18] sm:$0xff] %v497
  %508 = vst [vmem:[%s3 + $0x20] sm:$0xff] %v498
  %509 = vst.msk [vmem:[%s3 + $0x28] sm:$0xff] %vm505, %v499
  %510 = vst [vmem:[%s3 + $0x30] sm:$0xf] %v500
  %511 = vst [vmem:[%s3 + $0x38] sm:$0xf] %v501
  %vm512 = vcmask 257024
  %513 = vst.msk [vmem:[%s3 + $0x40] sm:$0xf] %vm512, %v502
  // Predicated region
  $region14: #{convnet_forward.3} parent=0 // pred_check
    _
  $region15: #{convnet_forward.3} parent=0 // pred_check_branch
    %515 = sbr.rel (0) target = $region17
  $region16: #{convnet_forward.3} parent=0 // pred_region
    _
  $region17: #{convnet_forward.3} parent=0 // pred_fallthru
    _
  // Predicated region
  $region18: #{convnet_forward.3} parent=0 // pred_check
    _
  $region19: #{convnet_forward.3} parent=0 // pred_check_branch
    %517 = sbr.rel (0) target = $region21
  $region20: #{convnet_forward.3} parent=0 // pred_region
    _
  $region21: #{convnet_forward.3} parent=0 // pred_fallthru
    _

// kernel: convnet_forward.4
$region0: #{convnet_forward.4}
  #allocation0 [shape = 'u32[]', space=smem, size = 0x4, offset = 0x4, fixed_abs, tag = 'smem constant byte address 0x4 - core index']
  #allocation1 [shape = 'u32[72,128]{1,0:T(1,128)}', space=vmem, size = 0x9000, scoped, tag = 'internal scratch']
  %s0 = inlined_call_operand.vmem [shape: bf16[4,500,32], index: 0, kind: input, shape index: {}]
  %s1 = inlined_call_operand.vmem [shape: bf16[50,500], index: 1, kind: input, shape index: {}]
  %s2 = inlined_call_operand.vmem [shape: f32[50,1], index: 2, kind: input, shape index: {}]
  %s3 = inlined_call_operand.vmem [shape: f32[50,32], index: 3, kind: output, shape index: {}]
  %s4 = sld [smem:[#allocation0]]
  $region22: #{convnet_forward.4} parent=0
    _
  %s6 = ssub.s32 1, %s4
  %s7 = scalar_select 0, %s6, %s4
  // Predicated region
  $region2: #{convnet_forward.4} parent=0 // pred_check
    _
  $region3: #{convnet_forward.4} parent=0 // pred_check_branch
    %9 = sbr.rel (0) target = $region5
  $region4: #{convnet_forward.4} parent=0 // pred_region
    _
  $region5: #{convnet_forward.4} parent=0 // pred_fallthru
    _
  // Predicated region
  $region6: #{convnet_forward.4} parent=0 // pred_check
    _
  $region7: #{convnet_forward.4} parent=0 // pred_check_branch
    %11 = sbr.rel (0) target = $region9
  $region8: #{convnet_forward.4} parent=0 // pred_region
    _
  $region9: #{convnet_forward.4} parent=0 // pred_fallthru
    _
  // Predicated region
  $region10: #{convnet_forward.4} parent=0 // pred_check
    _
  $region11: #{convnet_forward.4} parent=0 // pred_check_branch
    %13 = sbr.rel (0) target = $region13
  $region12: #{convnet_forward.4} parent=0 // pred_region
    _
  $region13: #{convnet_forward.4} parent=0 // pred_fallthru
    _
  %v14 = vld [vmem:[%s1] sm:$0xff]
  %v15 = vld [vmem:[%s1 + $0x8] sm:$0xff]
  %v16 = vld [vmem:[%s1 + $0x10] sm:$0xff]
  %v17 = vld [vmem:[%s1 + $0x18] sm:$0xff]
  %v18 = vld [vmem:[%s1 + $0x20] sm:$0xff]
  %v19 = vld [vmem:[%s1 + $0x28] sm:$0xff]
  %v20 = vld [vmem:[%s1 + $0x30] sm:$0xff]
  %v21 = vld [vmem:[%s1 + $0x38] sm:$0xff]
  %v22 = vld [vmem:[%s1 + $0x40] sm:$0xff]
  %v23 = vld [vmem:[%s1 + $0x48] sm:$0xff]
  %v24 = vld [vmem:[%s1 + $0x50] sm:$0xff]
  %v25 = vld [vmem:[%s1 + $0x58] sm:$0xff]
  %v26 = vld [vmem:[%s1 + $0x60] sm:$0x11]
  %v27 = vld [vmem:[%s1 + $0x68] sm:$0x11]
  %v28 = vld [vmem:[%s0] sm:$0xf]
  %v29 = vld [vmem:[%s0 + $0x4] sm:$0xf]
  %v30 = vld [vmem:[%s0 + $0x8] sm:$0xf]
  %v31 = vld [vmem:[%s0 + $0xc] sm:$0xf]
  %v32 = vld [vmem:[%s0 + $0x10] sm:$0xf]
  %v33 = vld [vmem:[%s0 + $0x14] sm:$0xf]
  %v34 = vld [vmem:[%s0 + $0x18] sm:$0xf]
  %v35 = vld [vmem:[%s0 + $0x1c] sm:$0xf]
  %v36 = vld [vmem:[%s0 + $0x20] sm:$0xf]
  %v37 = vld [vmem:[%s0 + $0x24] sm:$0xf]
  %v38 = vld [vmem:[%s0 + $0x28] sm:$0xf]
  %v39 = vld [vmem:[%s0 + $0x2c] sm:$0xf]
  %v40 = vld [vmem:[%s0 + $0x30] sm:$0xf]
  %v41 = vld [vmem:[%s0 + $0x34] sm:$0xf]
  %v42 = vld [vmem:[%s0 + $0x38] sm:$0xf]
  %v43 = vld [vmem:[%s0 + $0x3c] sm:$0xf]
  %v44 = vld [vmem:[%s0 + $0x40] sm:$0xf]
  %v45 = vld [vmem:[%s0 + $0x44] sm:$0xf]
  %v46 = vld [vmem:[%s0 + $0x48] sm:$0xf]
  %v47 = vld [vmem:[%s0 + $0x4c] sm:$0xf]
  %v48 = vld [vmem:[%s0 + $0x50] sm:$0xf]
  %v49 = vld [vmem:[%s0 + $0x54] sm:$0xf]
  %v50 = vld [vmem:[%s0 + $0x58] sm:$0xf]
  %v51 = vld [vmem:[%s0 + $0x5c] sm:$0xf]
  %v52 = vld [vmem:[%s0 + $0x60] sm:$0xf]
  %v53 = vld [vmem:[%s0 + $0x64] sm:$0xf]
  %v54 = vld [vmem:[%s0 + $0x68] sm:$0xf]
  %v55 = vld [vmem:[%s0 + $0x6c] sm:$0xf]
  %v56 = vld [vmem:[%s0 + $0x70] sm:$0xf]
  %v57 = vld [vmem:[%s0 + $0x74] sm:$0xf]
  %v58 = vld [vmem:[%s0 + $0x78] sm:$0xf]
  %v59 = vld [vmem:[%s0 + $0x7c] sm:$0xf]
  %v60 = vld [vmem:[%s0 + $0x80] sm:$0xf]
  %v61 = vld [vmem:[%s0 + $0x84] sm:$0xf]
  %v62 = vld [vmem:[%s0 + $0x88] sm:$0xf]
  %v63 = vld [vmem:[%s0 + $0x8c] sm:$0xf]
  %v64 = vld [vmem:[%s0 + $0x90] sm:$0xf]
  %v65 = vld [vmem:[%s0 + $0x94] sm:$0xf]
  %v66 = vld [vmem:[%s0 + $0x98] sm:$0xf]
  %v67 = vld [vmem:[%s0 + $0x9c] sm:$0xf]
  %v68 = vld [vmem:[%s0 + $0xa0] sm:$0xf]
  %v69 = vld [vmem:[%s0 + $0xa4] sm:$0xf]
  %v70 = vld [vmem:[%s0 + $0xa8] sm:$0xf]
  %v71 = vld [vmem:[%s0 + $0xac] sm:$0xf]
  %v72 = vld [vmem:[%s0 + $0xb0] sm:$0xf]
  %v73 = vld [vmem:[%s0 + $0xb4] sm:$0xf]
  %v74 = vld [vmem:[%s0 + $0xb8] sm:$0xf]
  %v75 = vld [vmem:[%s0 + $0xbc] sm:$0xf]
  %v76 = vld [vmem:[%s0 + $0xc0] sm:$0xf]
  %v77 = vld [vmem:[%s0 + $0xc4] sm:$0xf]
  %v78 = vld [vmem:[%s0 + $0xc8] sm:$0xf]
  %v79 = vld [vmem:[%s0 + $0xcc] sm:$0xf]
  %v80 = vld [vmem:[%s0 + $0xd0] sm:$0xf]
  %v81 = vld [vmem:[%s0 + $0xd4] sm:$0xf]
  %v82 = vld [vmem:[%s0 + $0xd8] sm:$0xf]
  %v83 = vld [vmem:[%s0 + $0xdc] sm:$0xf]
  %v84 = vld [vmem:[%s0 + $0xe0] sm:$0xf]
  %v85 = vld [vmem:[%s0 + $0xe4] sm:$0xf]
  %v86 = vld [vmem:[%s0 + $0xe8] sm:$0xf]
  %v87 = vld [vmem:[%s0 + $0xec] sm:$0xf]
  %v88 = vld [vmem:[%s0 + $0xf0] sm:$0xf]
  %v89 = vld [vmem:[%s0 + $0xf4] sm:$0xf]
  %v90 = vld [vmem:[%s0 + $0xf8] sm:$0x3]
  %v105 = vunpack.c.l.b16 %v14
  %v106 = vunpack.c.h.b16 %v14
  %v107 = vunpack.c.l.b16 %v15
  %v108 = vunpack.c.h.b16 %v15
  %v109 = vunpack.c.l.b16 %v16
  %v110 = vunpack.c.h.b16 %v16
  %v111 = vunpack.c.l.b16 %v17
  %v112 = vunpack.c.h.b16 %v17
  %v113 = vunpack.c.l.b16 %v18
  %v114 = vunpack.c.h.b16 %v18
  %v115 = vunpack.c.l.b16 %v19
  %v116 = vunpack.c.h.b16 %v19
  %v117 = vunpack.c.l.b16 %v20
  %v118 = vunpack.c.h.b16 %v20
  %v119 = vunpack.c.l.b16 %v21
  %v120 = vunpack.c.h.b16 %v21
  %v121 = vunpack.c.l.b16 %v22
  %v122 = vunpack.c.h.b16 %v22
  %v123 = vunpack.c.l.b16 %v23
  %v124 = vunpack.c.h.b16 %v23
  %v125 = vunpack.c.l.b16 %v24
  %v126 = vunpack.c.h.b16 %v24
  %v127 = vunpack.c.l.b16 %v25
  %v128 = vunpack.c.h.b16 %v25
  %v129 = vunpack.c.l.b16 %v26
  %v130 = vunpack.c.h.b16 %v26
  %v131 = vunpack.c.l.b16 %v27
  %v132 = vunpack.c.h.b16 %v27
  %v133 = vpack.c.b16 %v109, %v105
  %v134 = vpack.c.b16 %v110, %v106
  %v135 = vpack.c.b16 %v111, %v107
  %v136 = vpack.c.b16 %v112, %v108
  %v137 = vpack.c.b16 %v117, %v113
  %v138 = vpack.c.b16 %v118, %v114
  %v139 = vpack.c.b16 %v119, %v115
  %v140 = vpack.c.b16 %v120, %v116
  %v141 = vpack.c.b16 %v125, %v121
  %v142 = vpack.c.b16 %v126, %v122
  %v143 = vpack.c.b16 %v127, %v123
  %v144 = vpack.c.b16 %v128, %v124
  %v145 = vpack.c.b16 %v129, %v129
  %v146 = vpack.c.b16 %v130, %v130
  %v147 = vpack.c.b16 %v131, %v131
  %v148 = vpack.c.b16 %v132, %v132
  %v224 = vunpack.c.l.b16 %v28
  %v225 = vunpack.c.l.b16 %v29
  %v226 = vunpack.c.l.b16 %v30
  %v227 = vunpack.c.l.b16 %v31
  %v228 = vunpack.c.l.b16 %v32
  %v229 = vunpack.c.l.b16 %v33
  %v230 = vunpack.c.l.b16 %v34
  %v231 = vunpack.c.l.b16 %v35
  %v232 = vunpack.c.l.b16 %v36
  %v233 = vunpack.c.l.b16 %v37
  %v234 = vunpack.c.l.b16 %v38
  %v235 = vunpack.c.l.b16 %v39
  %v236 = vunpack.c.l.b16 %v40
  %v237 = vunpack.c.l.b16 %v41
  %v238 = vunpack.c.l.b16 %v42
  %v239 = vunpack.c.l.b16 %v43
  %v240 = vunpack.c.l.b16 %v44
  %v241 = vunpack.c.l.b16 %v45
  %v242 = vunpack.c.l.b16 %v46
  %v243 = vunpack.c.l.b16 %v47
  %v244 = vunpack.c.l.b16 %v48
  %v245 = vunpack.c.l.b16 %v49
  %v246 = vunpack.c.l.b16 %v50
  %v247 = vunpack.c.l.b16 %v51
  %v248 = vunpack.c.l.b16 %v52
  %v249 = vunpack.c.l.b16 %v53
  %v250 = vunpack.c.l.b16 %v54
  %v251 = vunpack.c.l.b16 %v55
  %v252 = vunpack.c.l.b16 %v56
  %v253 = vunpack.c.l.b16 %v57
  %v254 = vunpack.c.l.b16 %v58
  %v255 = vunpack.c.l.b16 %v59
  %v256 = vunpack.c.l.b16 %v60
  %v257 = vunpack.c.l.b16 %v61
  %v258 = vunpack.c.l.b16 %v62
  %v259 = vunpack.c.l.b16 %v63
  %v260 = vunpack.c.l.b16 %v64
  %v261 = vunpack.c.l.b16 %v65
  %v262 = vunpack.c.l.b16 %v66
  %v263 = vunpack.c.l.b16 %v67
  %v264 = vunpack.c.l.b16 %v68
  %v265 = vunpack.c.l.b16 %v69
  %v266 = vunpack.c.l.b16 %v70
  %v267 = vunpack.c.l.b16 %v71
  %v268 = vunpack.c.l.b16 %v72
  %v269 = vunpack.c.l.b16 %v73
  %v270 = vunpack.c.l.b16 %v74
  %v271 = vunpack.c.l.b16 %v75
  %v272 = vunpack.c.l.b16 %v76
  %v273 = vunpack.c.l.b16 %v77
  %v274 = vunpack.c.l.b16 %v78
  %v275 = vunpack.c.l.b16 %v79
  %v276 = vunpack.c.l.b16 %v80
  %v277 = vunpack.c.l.b16 %v81
  %v278 = vunpack.c.l.b16 %v82
  %v279 = vunpack.c.l.b16 %v83
  %v280 = vunpack.c.l.b16 %v84
  %v281 = vunpack.c.l.b16 %v85
  %v282 = vunpack.c.l.b16 %v86
  %v283 = vunpack.c.l.b16 %v87
  %v284 = vunpack.c.l.b16 %v88
  %v285 = vunpack.c.l.b16 %v89
  %v286 = vunpack.c.l.b16 %v90
  %v287 = vpack.c.b16 %v225, %v224
  %v288 = vpack.c.b16 %v227, %v226
  %v289 = vpack.c.b16 %v229, %v228
  %v290 = vpack.c.b16 %v231, %v230
  %v291 = vpack.c.b16 %v233, %v232
  %v292 = vpack.c.b16 %v235, %v234
  %v293 = vpack.c.b16 %v237, %v236
  %v294 = vpack.c.b16 %v239, %v238
  %v295 = vpack.c.b16 %v241, %v240
  %v296 = vpack.c.b16 %v243, %v242
  %v297 = vpack.c.b16 %v245, %v244
  %v298 = vpack.c.b16 %v247, %v246
  %v299 = vpack.c.b16 %v249, %v248
  %v300 = vpack.c.b16 %v251, %v250
  %v301 = vpack.c.b16 %v253, %v252
  %v302 = vpack.c.b16 %v255, %v254
  %v303 = vpack.c.b16 %v257, %v256
  %v304 = vpack.c.b16 %v259, %v258
  %v305 = vpack.c.b16 %v261, %v260
  %v306 = vpack.c.b16 %v263, %v262
  %v307 = vpack.c.b16 %v265, %v264
  %v308 = vpack.c.b16 %v267, %v266
  %v309 = vpack.c.b16 %v269, %v268
  %v310 = vpack.c.b16 %v271, %v270
  %v311 = vpack.c.b16 %v273, %v272
  %v312 = vpack.c.b16 %v275, %v274
  %v313 = vpack.c.b16 %v277, %v276
  %v314 = vpack.c.b16 %v279, %v278
  %v315 = vpack.c.b16 %v281, %v280
  %v316 = vpack.c.b16 %v283, %v282
  %v317 = vpack.c.b16 %v285, %v284
  %v318 = vpack.c.b16 %v286, %v286
  %vm350 = vcmask 949248
  %v352 = vsel %vm350, %v136, 0
  %v355 = vsel %vm350, %v140, 0
  %v358 = vsel %vm350, %v144, 0
  %v361 = vsel %vm350, %v148, 0
  %vm363 = vcmask 1041408
  %v365 = vsel %vm363, %v318, 0
  %367 = vmatpush.bf16.msra.mxu0 %v294
  %368 = vmatpush.bf16.msra.mxu0 %v293
  %369 = vmatpush.bf16.msra.mxu0 %v292
  %370 = vmatpush.bf16.msra.mxu0 %v291
  %371 = vmatpush.bf16.msra.mxu0 %v290
  %372 = vmatpush.bf16.msra.mxu0 %v289
  %373 = vmatpush.bf16.msra.mxu0 %v288
  %374 = vmatpush.bf16.msra.mxu0 %v287
  %375 = vmatmul.bf16.gmra.mxu0 %v133
  %v376 = vpop.f32.mrf.mxu0
  %v377 = vadd.f32 0.0, %v376
  %v378 = vpop.f32.mrf.mxu0
  %v379 = vadd.f32 0.0, %v378
  %380 = vmatmul.bf16.gmra.mxu0 %v137
  %v381 = vpop.f32.mrf.mxu0
  %v382 = vadd.f32 0.0, %v381
  %v383 = vpop.f32.mrf.mxu0
  %v384 = vadd.f32 0.0, %v383
  %385 = vmatmul.bf16.gmra.mxu0 %v141
  %v386 = vpop.f32.mrf.mxu0
  %v387 = vadd.f32 0.0, %v386
  %v388 = vpop.f32.mrf.mxu0
  %v389 = vadd.f32 0.0, %v388
  %390 = vmatmul.bf16.gmra.mxu0 %v145
  %v391 = vpop.f32.mrf.mxu0
  %v392 = vadd.f32 0.0, %v391
  %v393 = vpop.f32.mrf.mxu0
  %394 = vdwg.mxu0
  %395 = vmatpush.bf16.msra.mxu0 %v302
  %396 = vmatpush.bf16.msra.mxu0 %v301
  %397 = vmatpush.bf16.msra.mxu0 %v300
  %398 = vmatpush.bf16.msra.mxu0 %v299
  %399 = vmatpush.bf16.msra.mxu0 %v298
  %400 = vmatpush.bf16.msra.mxu0 %v297
  %401 = vmatpush.bf16.msra.mxu0 %v296
  %402 = vmatpush.bf16.msra.mxu0 %v295
  %403 = vmatmul.bf16.gmra.mxu0 %v134
  %v404 = vpop.f32.mrf.mxu0
  %v405 = vadd.f32 %v377, %v404
  %v406 = vpop.f32.mrf.mxu0
  %v407 = vadd.f32 %v379, %v406
  %408 = vmatmul.bf16.gmra.mxu0 %v138
  %v409 = vpop.f32.mrf.mxu0
  %v410 = vadd.f32 %v382, %v409
  %v411 = vpop.f32.mrf.mxu0
  %v412 = vadd.f32 %v384, %v411
  %413 = vmatmul.bf16.gmra.mxu0 %v142
  %v414 = vpop.f32.mrf.mxu0
  %v415 = vadd.f32 %v387, %v414
  %v416 = vpop.f32.mrf.mxu0
  %v417 = vadd.f32 %v389, %v416
  %418 = vmatmul.bf16.gmra.mxu0 %v146
  %v419 = vpop.f32.mrf.mxu0
  %v420 = vadd.f32 %v392, %v419
  %v421 = vpop.f32.mrf.mxu0
  %422 = vdwg.mxu0
  %423 = vmatpush.bf16.msra.mxu0 %v310
  %424 = vmatpush.bf16.msra.mxu0 %v309
  %425 = vmatpush.bf16.msra.mxu0 %v308
  %426 = vmatpush.bf16.msra.mxu0 %v307
  %427 = vmatpush.bf16.msra.mxu0 %v306
  %428 = vmatpush.bf16.msra.mxu0 %v305
  %429 = vmatpush.bf16.msra.mxu0 %v304
  %430 = vmatpush.bf16.msra.mxu0 %v303
  %431 = vmatmul.bf16.gmra.mxu0 %v135
  %v432 = vpop.f32.mrf.mxu0
  %v433 = vadd.f32 %v405, %v432
  %v434 = vpop.f32.mrf.mxu0
  %v435 = vadd.f32 %v407, %v434
  %436 = vmatmul.bf16.gmra.mxu0 %v139
  %v437 = vpop.f32.mrf.mxu0
  %v438 = vadd.f32 %v410, %v437
  %v439 = vpop.f32.mrf.mxu0
  %v440 = vadd.f32 %v412, %v439
  %441 = vmatmul.bf16.gmra.mxu0 %v143
  %v442 = vpop.f32.mrf.mxu0
  %v443 = vadd.f32 %v415, %v442
  %v444 = vpop.f32.mrf.mxu0
  %v445 = vadd.f32 %v417, %v444
  %446 = vmatmul.bf16.gmra.mxu0 %v147
  %v447 = vpop.f32.mrf.mxu0
  %v448 = vadd.f32 %v420, %v447
  %v449 = vpop.f32.mrf.mxu0
  %450 = vdwg.mxu0
  %451 = vmatpush.bf16.msra.mxu0 %v365
  %452 = vmatpush.bf16.msra.mxu0 %v317
  %453 = vmatpush.bf16.msra.mxu0 %v316
  %454 = vmatpush.bf16.msra.mxu0 %v315
  %455 = vmatpush.bf16.msra.mxu0 %v314
  %456 = vmatpush.bf16.msra.mxu0 %v313
  %457 = vmatpush.bf16.msra.mxu0 %v312
  %458 = vmatpush.bf16.msra.mxu0 %v311
  %459 = vmatmul.bf16.gmra.mxu0 %v352
  %v460 = vpop.f32.mrf.mxu0
  %v461 = vadd.f32 %v433, %v460
  %v462 = vpop.f32.mrf.mxu0
  %v463 = vadd.f32 %v435, %v462
  %464 = vmatmul.bf16.gmra.mxu0 %v355
  %v465 = vpop.f32.mrf.mxu0
  %v466 = vadd.f32 %v438, %v465
  %v467 = vpop.f32.mrf.mxu0
  %v468 = vadd.f32 %v440, %v467
  %469 = vmatmul.bf16.gmra.mxu0 %v358
  %v470 = vpop.f32.mrf.mxu0
  %v471 = vadd.f32 %v443, %v470
  %v472 = vpop.f32.mrf.mxu0
  %v473 = vadd.f32 %v445, %v472
  %474 = vmatmul.bf16.gmra.mxu0 %v361
  %v475 = vpop.f32.mrf.mxu0
  %v476 = vadd.f32 %v448, %v475
  %v477 = vpop.f32.mrf.mxu0
  %478 = vdwg.mxu0
  %s479 = scalar_lea.vmem %s0, 252
  %v480 = vld [vmem:[%s479] sm:$0xf]
  %v481 = vld [vmem:[%s479 + $0x4] sm:$0xf]
  %v482 = vld [vmem:[%s479 + $0x8] sm:$0xf]
  %v483 = vld [vmem:[%s479 + $0xc] sm:$0xf]
  %v484 = vld [vmem:[%s479 + $0x10] sm:$0xf]
  %v485 = vld [vmem:[%s479 + $0x14] sm:$0xf]
  %v486 = vld [vmem:[%s479 + $0x18] sm:$0xf]
  %v487 = vld [vmem:[%s479 + $0x1c] sm:$0xf]
  %v488 = vld [vmem:[%s479 + $0x20] sm:$0xf]
  %v489 = vld [vmem:[%s479 + $0x24] sm:$0xf]
  %v490 = vld [vmem:[%s479 + $0x28] sm:$0xf]
  %v491 = vld [vmem:[%s479 + $0x2c] sm:$0xf]
  %v492 = vld [vmem:[%s479 + $0x30] sm:$0xf]
  %v493 = vld [vmem:[%s479 + $0x34] sm:$0xf]
  %v494 = vld [vmem:[%s479 + $0x38] sm:$0xf]
  %v495 = vld [vmem:[%s479 + $0x3c] sm:$0xf]
  %v496 = vld [vmem:[%s479 + $0x40] sm:$0xf]
  %v497 = vld [vmem:[%s479 + $0x44] sm:$0xf]
  %v498 = vld [vmem:[%s479 + $0x48] sm:$0xf]
  %v499 = vld [vmem:[%s479 + $0x4c] sm:$0xf]
  %v500 = vld [vmem:[%s479 + $0x50] sm:$0xf]
  %v501 = vld [vmem:[%s479 + $0x54] sm:$0xf]
  %v502 = vld [vmem:[%s479 + $0x58] sm:$0xf]
  %v503 = vld [vmem:[%s479 + $0x5c] sm:$0xf]
  %v504 = vld [vmem:[%s479 + $0x60] sm:$0xf]
  %v505 = vld [vmem:[%s479 + $0x64] sm:$0xf]
  %v506 = vld [vmem:[%s479 + $0x68] sm:$0xf]
  %v507 = vld [vmem:[%s479 + $0x6c] sm:$0xf]
  %v508 = vld [vmem:[%s479 + $0x70] sm:$0xf]
  %v509 = vld [vmem:[%s479 + $0x74] sm:$0xf]
  %v510 = vld [vmem:[%s479 + $0x78] sm:$0xf]
  %v511 = vld [vmem:[%s479 + $0x7c] sm:$0xf]
  %v512 = vld [vmem:[%s479 + $0x80] sm:$0xf]
  %v513 = vld [vmem:[%s479 + $0x84] sm:$0xf]
  %v514 = vld [vmem:[%s479 + $0x88] sm:$0xf]
  %v515 = vld [vmem:[%s479 + $0x8c] sm:$0xf]
  %v516 = vld [vmem:[%s479 + $0x90] sm:$0xf]
  %v517 = vld [vmem:[%s479 + $0x94] sm:$0xf]
  %v518 = vld [vmem:[%s479 + $0x98] sm:$0xf]
  %v519 = vld [vmem:[%s479 + $0x9c] sm:$0xf]
  %v520 = vld [vmem:[%s479 + $0xa0] sm:$0xf]
  %v521 = vld [vmem:[%s479 + $0xa4] sm:$0xf]
  %v522 = vld [vmem:[%s479 + $0xa8] sm:$0xf]
  %v523 = vld [vmem:[%s479 + $0xac] sm:$0xf]
  %v524 = vld [vmem:[%s479 + $0xb0] sm:$0xf]
  %v525 = vld [vmem:[%s479 + $0xb4] sm:$0xf]
  %v526 = vld [vmem:[%s479 + $0xb8] sm:$0xf]
  %v527 = vld [vmem:[%s479 + $0xbc] sm:$0xf]
  %v528 = vld [vmem:[%s479 + $0xc0] sm:$0xf]
  %v529 = vld [vmem:[%s479 + $0xc4] sm:$0xf]
  %v530 = vld [vmem:[%s479 + $0xc8] sm:$0xf]
  %v531 = vld [vmem:[%s479 + $0xcc] sm:$0xf]
  %v532 = vld [vmem:[%s479 + $0xd0] sm:$0xf]
  %v533 = vld [vmem:[%s479 + $0xd4] sm:$0xf]
  %v534 = vld [vmem:[%s479 + $0xd8] sm:$0xf]
  %v535 = vld [vmem:[%s479 + $0xdc] sm:$0xf]
  %v536 = vld [vmem:[%s479 + $0xe0] sm:$0xf]
  %v537 = vld [vmem:[%s479 + $0xe4] sm:$0xf]
  %v538 = vld [vmem:[%s479 + $0xe8] sm:$0xf]
  %v539 = vld [vmem:[%s479 + $0xec] sm:$0xf]
  %v540 = vld [vmem:[%s479 + $0xf0] sm:$0xf]
  %v541 = vld [vmem:[%s479 + $0xf4] sm:$0xf]
  %v542 = vld [vmem:[%s479 + $0xf8] sm:$0x3]
  %v606 = vunpack.c.l.b16 %v480
  %v607 = vunpack.c.l.b16 %v481
  %v608 = vunpack.c.l.b16 %v482
  %v609 = vunpack.c.l.b16 %v483
  %v610 = vunpack.c.l.b16 %v484
  %v611 = vunpack.c.l.b16 %v485
  %v612 = vunpack.c.l.b16 %v486
  %v613 = vunpack.c.l.b16 %v487
  %v614 = vunpack.c.l.b16 %v488
  %v615 = vunpack.c.l.b16 %v489
  %v616 = vunpack.c.l.b16 %v490
  %v617 = vunpack.c.l.b16 %v491
  %v618 = vunpack.c.l.b16 %v492
  %v619 = vunpack.c.l.b16 %v493
  %v620 = vunpack.c.l.b16 %v494
  %v621 = vunpack.c.l.b16 %v495
  %v622 = vunpack.c.l.b16 %v496
  %v623 = vunpack.c.l.b16 %v497
  %v624 = vunpack.c.l.b16 %v498
  %v625 = vunpack.c.l.b16 %v499
  %v626 = vunpack.c.l.b16 %v500
  %v627 = vunpack.c.l.b16 %v501
  %v628 = vunpack.c.l.b16 %v502
  %v629 = vunpack.c.l.b16 %v503
  %v630 = vunpack.c.l.b16 %v504
  %v631 = vunpack.c.l.b16 %v505
  %v632 = vunpack.c.l.b16 %v506
  %v633 = vunpack.c.l.b16 %v507
  %v634 = vunpack.c.l.b16 %v508
  %v635 = vunpack.c.l.b16 %v509
  %v636 = vunpack.c.l.b16 %v510
  %v637 = vunpack.c.l.b16 %v511
  %v638 = vunpack.c.l.b16 %v512
  %v639 = vunpack.c.l.b16 %v513
  %v640 = vunpack.c.l.b16 %v514
  %v641 = vunpack.c.l.b16 %v515
  %v642 = vunpack.c.l.b16 %v516
  %v643 = vunpack.c.l.b16 %v517
  %v644 = vunpack.c.l.b16 %v518
  %v645 = vunpack.c.l.b16 %v519
  %v646 = vunpack.c.l.b16 %v520
  %v647 = vunpack.c.l.b16 %v521
  %v648 = vunpack.c.l.b16 %v522
  %v649 = vunpack.c.l.b16 %v523
  %v650 = vunpack.c.l.b16 %v524
  %v651 = vunpack.c.l.b16 %v525
  %v652 = vunpack.c.l.b16 %v526
  %v653 = vunpack.c.l.b16 %v527
  %v654 = vunpack.c.l.b16 %v528
  %v655 = vunpack.c.l.b16 %v529
  %v656 = vunpack.c.l.b16 %v530
  %v657 = vunpack.c.l.b16 %v531
  %v658 = vunpack.c.l.b16 %v532
  %v659 = vunpack.c.l.b16 %v533
  %v660 = vunpack.c.l.b16 %v534
  %v661 = vunpack.c.l.b16 %v535
  %v662 = vunpack.c.l.b16 %v536
  %v663 = vunpack.c.l.b16 %v537
  %v664 = vunpack.c.l.b16 %v538
  %v665 = vunpack.c.l.b16 %v539
  %v666 = vunpack.c.l.b16 %v540
  %v667 = vunpack.c.l.b16 %v541
  %v668 = vunpack.c.l.b16 %v542
  %v669 = vpack.c.b16 %v607, %v606
  %v670 = vpack.c.b16 %v609, %v608
  %v671 = vpack.c.b16 %v611, %v610
  %v672 = vpack.c.b16 %v613, %v612
  %v673 = vpack.c.b16 %v615, %v614
  %v674 = vpack.c.b16 %v617, %v616
  %v675 = vpack.c.b16 %v619, %v618
  %v676 = vpack.c.b16 %v621, %v620
  %v677 = vpack.c.b16 %v623, %v622
  %v678 = vpack.c.b16 %v625, %v624
  %v679 = vpack.c.b16 %v627, %v626
  %v680 = vpack.c.b16 %v629, %v628
  %v681 = vpack.c.b16 %v631, %v630
  %v682 = vpack.c.b16 %v633, %v632
  %v683 = vpack.c.b16 %v635, %v634
  %v684 = vpack.c.b16 %v637, %v636
  %v685 = vpack.c.b16 %v639, %v638
  %v686 = vpack.c.b16 %v641, %v640
  %v687 = vpack.c.b16 %v643, %v642
  %v688 = vpack.c.b16 %v645, %v644
  %v689 = vpack.c.b16 %v647, %v646
  %v690 = vpack.c.b16 %v649, %v648
  %v691 = vpack.c.b16 %v651, %v650
  %v692 = vpack.c.b16 %v653, %v652
  %v693 = vpack.c.b16 %v655, %v654
  %v694 = vpack.c.b16 %v657, %v656
  %v695 = vpack.c.b16 %v659, %v658
  %v696 = vpack.c.b16 %v661, %v660
  %v697 = vpack.c.b16 %v663, %v662
  %v698 = vpack.c.b16 %v665, %v664
  %v699 = vpack.c.b16 %v667, %v666
  %v700 = vpack.c.b16 %v668, %v668
  %v733 = vsel %vm363, %v700, 0
  %735 = vmatpush.bf16.msra.mxu0 %v676
  %736 = vmatpush.bf16.msra.mxu0 %v675
  %737 = vmatpush.bf16.msra.mxu0 %v674
  %738 = vmatpush.bf16.msra.mxu0 %v673
  %739 = vmatpush.bf16.msra.mxu0 %v672
  %740 = vmatpush.bf16.msra.mxu0 %v671
  %741 = vmatpush.bf16.msra.mxu0 %v670
  %742 = vmatpush.bf16.msra.mxu0 %v669
  %743 = vmatmul.bf16.gmra.mxu0 %v133
  %v744 = vpop.f32.mrf.mxu0
  %v745 = vadd.f32 0.0, %v744
  %v746 = vpop.f32.mrf.mxu0
  %v747 = vadd.f32 0.0, %v746
  %748 = vmatmul.bf16.gmra.mxu0 %v137
  %v749 = vpop.f32.mrf.mxu0
  %v750 = vadd.f32 0.0, %v749
  %v751 = vpop.f32.mrf.mxu0
  %v752 = vadd.f32 0.0, %v751
  %753 = vmatmul.bf16.gmra.mxu0 %v141
  %v754 = vpop.f32.mrf.mxu0
  %v755 = vadd.f32 0.0, %v754
  %v756 = vpop.f32.mrf.mxu0
  %v757 = vadd.f32 0.0, %v756
  %758 = vmatmul.bf16.gmra.mxu0 %v145
  %v759 = vpop.f32.mrf.mxu0
  %v760 = vadd.f32 0.0, %v759
  %v761 = vpop.f32.mrf.mxu0
  %762 = vdwg.mxu0
  %763 = vmatpush.bf16.msra.mxu0 %v684
  %764 = vmatpush.bf16.msra.mxu0 %v683
  %765 = vmatpush.bf16.msra.mxu0 %v682
  %766 = vmatpush.bf16.msra.mxu0 %v681
  %767 = vmatpush.bf16.msra.mxu0 %v680
  %768 = vmatpush.bf16.msra.mxu0 %v679
  %769 = vmatpush.bf16.msra.mxu0 %v678
  %770 = vmatpush.bf16.msra.mxu0 %v677
  %771 = vmatmul.bf16.gmra.mxu0 %v134
  %v772 = vpop.f32.mrf.mxu0
  %v773 = vadd.f32 %v745, %v772
  %v774 = vpop.f32.mrf.mxu0
  %v775 = vadd.f32 %v747, %v774
  %776 = vmatmul.bf16.gmra.mxu0 %v138
  %v777 = vpop.f32.mrf.mxu0
  %v778 = vadd.f32 %v750, %v777
  %v779 = vpop.f32.mrf.mxu0
  %v780 = vadd.f32 %v752, %v779
  %781 = vmatmul.bf16.gmra.mxu0 %v142
  %v782 = vpop.f32.mrf.mxu0
  %v783 = vadd.f32 %v755, %v782
  %v784 = vpop.f32.mrf.mxu0
  %v785 = vadd.f32 %v757, %v784
  %786 = vmatmul.bf16.gmra.mxu0 %v146
  %v787 = vpop.f32.mrf.mxu0
  %v788 = vadd.f32 %v760, %v787
  %v789 = vpop.f32.mrf.mxu0
  %790 = vdwg.mxu0
  %791 = vmatpush.bf16.msra.mxu0 %v692
  %792 = vmatpush.bf16.msra.mxu0 %v691
  %793 = vmatpush.bf16.msra.mxu0 %v690
  %794 = vmatpush.bf16.msra.mxu0 %v689
  %795 = vmatpush.bf16.msra.mxu0 %v688
  %796 = vmatpush.bf16.msra.mxu0 %v687
  %797 = vmatpush.bf16.msra.mxu0 %v686
  %798 = vmatpush.bf16.msra.mxu0 %v685
  %799 = vmatmul.bf16.gmra.mxu0 %v135
  %v800 = vpop.f32.mrf.mxu0
  %v801 = vadd.f32 %v773, %v800
  %v802 = vpop.f32.mrf.mxu0
  %v803 = vadd.f32 %v775, %v802
  %804 = vmatmul.bf16.gmra.mxu0 %v139
  %v805 = vpop.f32.mrf.mxu0
  %v806 = vadd.f32 %v778, %v805
  %v807 = vpop.f32.mrf.mxu0
  %v808 = vadd.f32 %v780, %v807
  %809 = vmatmul.bf16.gmra.mxu0 %v143
  %v810 = vpop.f32.mrf.mxu0
  %v811 = vadd.f32 %v783, %v810
  %v812 = vpop.f32.mrf.mxu0
  %v813 = vadd.f32 %v785, %v812
  %814 = vmatmul.bf16.gmra.mxu0 %v147
  %v815 = vpop.f32.mrf.mxu0
  %v816 = vadd.f32 %v788, %v815
  %v817 = vpop.f32.mrf.mxu0
  %818 = vdwg.mxu0
  %819 = vmatpush.bf16.msra.mxu0 %v733
  %820 = vmatpush.bf16.msra.mxu0 %v699
  %821 = vmatpush.bf16.msra.mxu0 %v698
  %822 = vmatpush.bf16.msra.mxu0 %v697
  %823 = vmatpush.bf16.msra.mxu0 %v696
  %824 = vmatpush.bf16.msra.mxu0 %v695
  %825 = vmatpush.bf16.msra.mxu0 %v694
  %826 = vmatpush.bf16.msra.mxu0 %v693
  %827 = vmatmul.bf16.gmra.mxu0 %v352
  %v828 = vpop.f32.mrf.mxu0
  %v829 = vadd.f32 %v801, %v828
  %v830 = vpop.f32.mrf.mxu0
  %v831 = vadd.f32 %v803, %v830
  %832 = vmatmul.bf16.gmra.mxu0 %v355
  %v833 = vpop.f32.mrf.mxu0
  %v834 = vadd.f32 %v806, %v833
  %v835 = vpop.f32.mrf.mxu0
  %v836 = vadd.f32 %v808, %v835
  %837 = vmatmul.bf16.gmra.mxu0 %v358
  %v838 = vpop.f32.mrf.mxu0
  %v839 = vadd.f32 %v811, %v838
  %v840 = vpop.f32.mrf.mxu0
  %v841 = vadd.f32 %v813, %v840
  %842 = vmatmul.bf16.gmra.mxu0 %v361
  %v843 = vpop.f32.mrf.mxu0
  %v844 = vadd.f32 %v816, %v843
  %v845 = vpop.f32.mrf.mxu0
  %846 = vdwg.mxu0
  %s847 = scalar_lea.vmem %s0, 504
  %v848 = vld [vmem:[%s847] sm:$0xf]
  %v849 = vld [vmem:[%s847 + $0x4] sm:$0xf]
  %v850 = vld [vmem:[%s847 + $0x8] sm:$0xf]
  %v851 = vld [vmem:[%s847 + $0xc] sm:$0xf]
  %v852 = vld [vmem:[%s847 + $0x10] sm:$0xf]
  %v853 = vld [vmem:[%s847 + $0x14] sm:$0xf]
  %v854 = vld [vmem:[%s847 + $0x18] sm:$0xf]
  %v855 = vld [vmem:[%s847 + $0x1c] sm:$0xf]
  %v856 = vld [vmem:[%s847 + $0x20] sm:$0xf]
  %v857 = vld [vmem:[%s847 + $0x24] sm:$0xf]
  %v858 = vld [vmem:[%s847 + $0x28] sm:$0xf]
  %v859 = vld [vmem:[%s847 + $0x2c] sm:$0xf]
  %v860 = vld [vmem:[%s847 + $0x30] sm:$0xf]
  %v861 = vld [vmem:[%s847 + $0x34] sm:$0xf]
  %v862 = vld [vmem:[%s847 + $0x38] sm:$0xf]
  %v863 = vld [vmem:[%s847 + $0x3c] sm:$0xf]
  %v864 = vld [vmem:[%s847 + $0x40] sm:$0xf]
  %v865 = vld [vmem:[%s847 + $0x44] sm:$0xf]
  %v866 = vld [vmem:[%s847 + $0x48] sm:$0xf]
  %v867 = vld [vmem:[%s847 + $0x4c] sm:$0xf]
  %v868 = vld [vmem:[%s847 + $0x50] sm:$0xf]
  %v869 = vld [vmem:[%s847 + $0x54] sm:$0xf]
  %v870 = vld [vmem:[%s847 + $0x58] sm:$0xf]
  %v871 = vld [vmem:[%s847 + $0x5c] sm:$0xf]
  %v872 = vld [vmem:[%s847 + $0x60] sm:$0xf]
  %v873 = vld [vmem:[%s847 + $0x64] sm:$0xf]
  %v874 = vld [vmem:[%s847 + $0x68] sm:$0xf]
  %v875 = vld [vmem:[%s847 + $0x6c] sm:$0xf]
  %v876 = vld [vmem:[%s847 + $0x70] sm:$0xf]
  %v877 = vld [vmem:[%s847 + $0x74] sm:$0xf]
  %v878 = vld [vmem:[%s847 + $0x78] sm:$0xf]
  %v879 = vld [vmem:[%s847 + $0x7c] sm:$0xf]
  %v880 = vld [vmem:[%s847 + $0x80] sm:$0xf]
  %v881 = vld [vmem:[%s847 + $0x84] sm:$0xf]
  %v882 = vld [vmem:[%s847 + $0x88] sm:$0xf]
  %v883 = vld [vmem:[%s847 + $0x8c] sm:$0xf]
  %v884 = vld [vmem:[%s847 + $0x90] sm:$0xf]
  %v885 = vld [vmem:[%s847 + $0x94] sm:$0xf]
  %v886 = vld [vmem:[%s847 + $0x98] sm:$0xf]
  %v887 = vld [vmem:[%s847 + $0x9c] sm:$0xf]
  %v888 = vld [vmem:[%s847 + $0xa0] sm:$0xf]
  %v889 = vld [vmem:[%s847 + $0xa4] sm:$0xf]
  %v890 = vld [vmem:[%s847 + $0xa8] sm:$0xf]
  %v891 = vld [vmem:[%s847 + $0xac] sm:$0xf]
  %v892 = vld [vmem:[%s847 + $0xb0] sm:$0xf]
  %v893 = vld [vmem:[%s847 + $0xb4] sm:$0xf]
  %v894 = vld [vmem:[%s847 + $0xb8] sm:$0xf]
  %v895 = vld [vmem:[%s847 + $0xbc] sm:$0xf]
  %v896 = vld [vmem:[%s847 + $0xc0] sm:$0xf]
  %v897 = vld [vmem:[%s847 + $0xc4] sm:$0xf]
  %v898 = vld [vmem:[%s847 + $0xc8] sm:$0xf]
  %v899 = vld [vmem:[%s847 + $0xcc] sm:$0xf]
  %v900 = vld [vmem:[%s847 + $0xd0] sm:$0xf]
  %v901 = vld [vmem:[%s847 + $0xd4] sm:$0xf]
  %v902 = vld [vmem:[%s847 + $0xd8] sm:$0xf]
  %v903 = vld [vmem:[%s847 + $0xdc] sm:$0xf]
  %v904 = vld [vmem:[%s847 + $0xe0] sm:$0xf]
  %v905 = vld [vmem:[%s847 + $0xe4] sm:$0xf]
  %v906 = vld [vmem:[%s847 + $0xe8] sm:$0xf]
  %v907 = vld [vmem:[%s847 + $0xec] sm:$0xf]
  %v908 = vld [vmem:[%s847 + $0xf0] sm:$0xf]
  %v909 = vld [vmem:[%s847 + $0xf4] sm:$0xf]
  %v910 = vld [vmem:[%s847 + $0xf8] sm:$0x3]
  %v974 = vunpack.c.l.b16 %v848
  %v975 = vunpack.c.l.b16 %v849
  %v976 = vunpack.c.l.b16 %v850
  %v977 = vunpack.c.l.b16 %v851
  %v978 = vunpack.c.l.b16 %v852
  %v979 = vunpack.c.l.b16 %v853
  %v980 = vunpack.c.l.b16 %v854
  %v981 = vunpack.c.l.b16 %v855
  %v982 = vunpack.c.l.b16 %v856
  %v983 = vunpack.c.l.b16 %v857
  %v984 = vunpack.c.l.b16 %v858
  %v985 = vunpack.c.l.b16 %v859
  %v986 = vunpack.c.l.b16 %v860
  %v987 = vunpack.c.l.b16 %v861
  %v988 = vunpack.c.l.b16 %v862
  %v989 = vunpack.c.l.b16 %v863
  %v990 = vunpack.c.l.b16 %v864
  %v991 = vunpack.c.l.b16 %v865
  %v992 = vunpack.c.l.b16 %v866
  %v993 = vunpack.c.l.b16 %v867
  %v994 = vunpack.c.l.b16 %v868
  %v995 = vunpack.c.l.b16 %v869
  %v996 = vunpack.c.l.b16 %v870
  %v997 = vunpack.c.l.b16 %v871
  %v998 = vunpack.c.l.b16 %v872
  %v999 = vunpack.c.l.b16 %v873
  %v1000 = vunpack.c.l.b16 %v874
  %v1001 = vunpack.c.l.b16 %v875
  %v1002 = vunpack.c.l.b16 %v876
  %v1003 = vunpack.c.l.b16 %v877
  %v1004 = vunpack.c.l.b16 %v878
  %v1005 = vunpack.c.l.b16 %v879
  %v1006 = vunpack.c.l.b16 %v880
  %v1007 = vunpack.c.l.b16 %v881
  %v1008 = vunpack.c.l.b16 %v882
  %v1009 = vunpack.c.l.b16 %v883
  %v1010 = vunpack.c.l.b16 %v884
  %v1011 = vunpack.c.l.b16 %v885
  %v1012 = vunpack.c.l.b16 %v886
  %v1013 = vunpack.c.l.b16 %v887
  %v1014 = vunpack.c.l.b16 %v888
  %v1015 = vunpack.c.l.b16 %v889
  %v1016 = vunpack.c.l.b16 %v890
  %v1017 = vunpack.c.l.b16 %v891
  %v1018 = vunpack.c.l.b16 %v892
  %v1019 = vunpack.c.l.b16 %v893
  %v1020 = vunpack.c.l.b16 %v894
  %v1021 = vunpack.c.l.b16 %v895
  %v1022 = vunpack.c.l.b16 %v896
  %v1023 = vunpack.c.l.b16 %v897
  %v1024 = vunpack.c.l.b16 %v898
  %v1025 = vunpack.c.l.b16 %v899
  %v1026 = vunpack.c.l.b16 %v900
  %v1027 = vunpack.c.l.b16 %v901
  %v1028 = vunpack.c.l.b16 %v902
  %v1029 = vunpack.c.l.b16 %v903
  %v1030 = vunpack.c.l.b16 %v904
  %v1031 = vunpack.c.l.b16 %v905
  %v1032 = vunpack.c.l.b16 %v906
  %v1033 = vunpack.c.l.b16 %v907
  %v1034 = vunpack.c.l.b16 %v908
  %v1035 = vunpack.c.l.b16 %v909
  %v1036 = vunpack.c.l.b16 %v910
  %v1037 = vpack.c.b16 %v975, %v974
  %v1038 = vpack.c.b16 %v977, %v976
  %v1039 = vpack.c.b16 %v979, %v978
  %v1040 = vpack.c.b16 %v981, %v980
  %v1041 = vpack.c.b16 %v983, %v982
  %v1042 = vpack.c.b16 %v985, %v984
  %v1043 = vpack.c.b16 %v987, %v986
  %v1044 = vpack.c.b16 %v989, %v988
  %v1045 = vpack.c.b16 %v991, %v990
  %v1046 = vpack.c.b16 %v993, %v992
  %v1047 = vpack.c.b16 %v995, %v994
  %v1048 = vpack.c.b16 %v997, %v996
  %v1049 = vpack.c.b16 %v999, %v998
  %v1050 = vpack.c.b16 %v1001, %v1000
  %v1051 = vpack.c.b16 %v1003, %v1002
  %v1052 = vpack.c.b16 %v1005, %v1004
  %v1053 = vpack.c.b16 %v1007, %v1006
  %v1054 = vpack.c.b16 %v1009, %v1008
  %v1055 = vpack.c.b16 %v1011, %v1010
  %v1056 = vpack.c.b16 %v1013, %v1012
  %v1057 = vpack.c.b16 %v1015, %v1014
  %v1058 = vpack.c.b16 %v1017, %v1016
  %v1059 = vpack.c.b16 %v1019, %v1018
  %v1060 = vpack.c.b16 %v1021, %v1020
  %v1061 = vpack.c.b16 %v1023, %v1022
  %v1062 = vpack.c.b16 %v1025, %v1024
  %v1063 = vpack.c.b16 %v1027, %v1026
  %v1064 = vpack.c.b16 %v1029, %v1028
  %v1065 = vpack.c.b16 %v1031, %v1030
  %v1066 = vpack.c.b16 %v1033, %v1032
  %v1067 = vpack.c.b16 %v1035, %v1034
  %v1068 = vpack.c.b16 %v1036, %v1036
  %v1101 = vsel %vm363, %v1068, 0
  %1103 = vmatpush.bf16.msra.mxu0 %v1044
  %1104 = vmatpush.bf16.msra.mxu0 %v1043
  %1105 = vmatpush.bf16.msra.mxu0 %v1042
  %1106 = vmatpush.bf16.msra.mxu0 %v1041
  %1107 = vmatpush.bf16.msra.mxu0 %v1040
  %1108 = vmatpush.bf16.msra.mxu0 %v1039
  %1109 = vmatpush.bf16.msra.mxu0 %v1038
  %1110 = vmatpush.bf16.msra.mxu0 %v1037
  %1111 = vmatmul.bf16.gmra.mxu0 %v133
  %v1112 = vpop.f32.mrf.mxu0
  %v1113 = vadd.f32 0.0, %v1112
  %v1114 = vpop.f32.mrf.mxu0
  %v1115 = vadd.f32 0.0, %v1114
  %1116 = vmatmul.bf16.gmra.mxu0 %v137
  %v1117 = vpop.f32.mrf.mxu0
  %v1118 = vadd.f32 0.0, %v1117
  %v1119 = vpop.f32.mrf.mxu0
  %v1120 = vadd.f32 0.0, %v1119
  %1121 = vmatmul.bf16.gmra.mxu0 %v141
  %v1122 = vpop.f32.mrf.mxu0
  %v1123 = vadd.f32 0.0, %v1122
  %v1124 = vpop.f32.mrf.mxu0
  %v1125 = vadd.f32 0.0, %v1124
  %1126 = vmatmul.bf16.gmra.mxu0 %v145
  %v1127 = vpop.f32.mrf.mxu0
  %v1128 = vadd.f32 0.0, %v1127
  %v1129 = vpop.f32.mrf.mxu0
  %1130 = vdwg.mxu0
  %1131 = vmatpush.bf16.msra.mxu0 %v1052
  %1132 = vmatpush.bf16.msra.mxu0 %v1051
  %1133 = vmatpush.bf16.msra.mxu0 %v1050
  %1134 = vmatpush.bf16.msra.mxu0 %v1049
  %1135 = vmatpush.bf16.msra.mxu0 %v1048
  %1136 = vmatpush.bf16.msra.mxu0 %v1047
  %1137 = vmatpush.bf16.msra.mxu0 %v1046
  %1138 = vmatpush.bf16.msra.mxu0 %v1045
  %1139 = vmatmul.bf16.gmra.mxu0 %v134
  %v1140 = vpop.f32.mrf.mxu0
  %v1141 = vadd.f32 %v1113, %v1140
  %v1142 = vpop.f32.mrf.mxu0
  %v1143 = vadd.f32 %v1115, %v1142
  %1144 = vmatmul.bf16.gmra.mxu0 %v138
  %v1145 = vpop.f32.mrf.mxu0
  %v1146 = vadd.f32 %v1118, %v1145
  %v1147 = vpop.f32.mrf.mxu0
  %v1148 = vadd.f32 %v1120, %v1147
  %1149 = vmatmul.bf16.gmra.mxu0 %v142
  %v1150 = vpop.f32.mrf.mxu0
  %v1151 = vadd.f32 %v1123, %v1150
  %v1152 = vpop.f32.mrf.mxu0
  %v1153 = vadd.f32 %v1125, %v1152
  %1154 = vmatmul.bf16.gmra.mxu0 %v146
  %v1155 = vpop.f32.mrf.mxu0
  %v1156 = vadd.f32 %v1128, %v1155
  %v1157 = vpop.f32.mrf.mxu0
  %1158 = vdwg.mxu0
  %1159 = vmatpush.bf16.msra.mxu0 %v1060
  %1160 = vmatpush.bf16.msra.mxu0 %v1059
  %1161 = vmatpush.bf16.msra.mxu0 %v1058
  %1162 = vmatpush.bf16.msra.mxu0 %v1057
  %1163 = vmatpush.bf16.msra.mxu0 %v1056
  %1164 = vmatpush.bf16.msra.mxu0 %v1055
  %1165 = vmatpush.bf16.msra.mxu0 %v1054
  %1166 = vmatpush.bf16.msra.mxu0 %v1053
  %1167 = vmatmul.bf16.gmra.mxu0 %v135
  %v1168 = vpop.f32.mrf.mxu0
  %v1169 = vadd.f32 %v1141, %v1168
  %v1170 = vpop.f32.mrf.mxu0
  %v1171 = vadd.f32 %v1143, %v1170
  %1172 = vmatmul.bf16.gmra.mxu0 %v139
  %v1173 = vpop.f32.mrf.mxu0
  %v1174 = vadd.f32 %v1146, %v1173
  %v1175 = vpop.f32.mrf.mxu0
  %v1176 = vadd.f32 %v1148, %v1175
  %1177 = vmatmul.bf16.gmra.mxu0 %v143
  %v1178 = vpop.f32.mrf.mxu0
  %v1179 = vadd.f32 %v1151, %v1178
  %v1180 = vpop.f32.mrf.mxu0
  %v1181 = vadd.f32 %v1153, %v1180
  %1182 = vmatmul.bf16.gmra.mxu0 %v147
  %v1183 = vpop.f32.mrf.mxu0
  %v1184 = vadd.f32 %v1156, %v1183
  %v1185 = vpop.f32.mrf.mxu0
  %1186 = vdwg.mxu0
  %1187 = vmatpush.bf16.msra.mxu0 %v1101
  %1188 = vmatpush.bf16.msra.mxu0 %v1067
  %1189 = vmatpush.bf16.msra.mxu0 %v1066
  %1190 = vmatpush.bf16.msra.mxu0 %v1065
  %1191 = vmatpush.bf16.msra.mxu0 %v1064
  %1192 = vmatpush.bf16.msra.mxu0 %v1063
  %1193 = vmatpush.bf16.msra.mxu0 %v1062
  %1194 = vmatpush.bf16.msra.mxu0 %v1061
  %1195 = vmatmul.bf16.gmra.mxu0 %v352
  %v1196 = vpop.f32.mrf.mxu0
  %v1197 = vadd.f32 %v1169, %v1196
  %v1198 = vpop.f32.mrf.mxu0
  %v1199 = vadd.f32 %v1171, %v1198
  %1200 = vmatmul.bf16.gmra.mxu0 %v355
  %v1201 = vpop.f32.mrf.mxu0
  %v1202 = vadd.f32 %v1174, %v1201
  %v1203 = vpop.f32.mrf.mxu0
  %v1204 = vadd.f32 %v1176, %v1203
  %1205 = vmatmul.bf16.gmra.mxu0 %v358
  %v1206 = vpop.f32.mrf.mxu0
  %v1207 = vadd.f32 %v1179, %v1206
  %v1208 = vpop.f32.mrf.mxu0
  %v1209 = vadd.f32 %v1181, %v1208
  %1210 = vmatmul.bf16.gmra.mxu0 %v361
  %v1211 = vpop.f32.mrf.mxu0
  %v1212 = vadd.f32 %v1184, %v1211
  %v1213 = vpop.f32.mrf.mxu0
  %1214 = vdwg.mxu0
  %s1215 = scalar_lea.vmem %s0, 756
  %v1216 = vld [vmem:[%s1215] sm:$0xf]
  %v1217 = vld [vmem:[%s1215 + $0x4] sm:$0xf]
  %v1218 = vld [vmem:[%s1215 + $0x8] sm:$0xf]
  %v1219 = vld [vmem:[%s1215 + $0xc] sm:$0xf]
  %v1220 = vld [vmem:[%s1215 + $0x10] sm:$0xf]
  %v1221 = vld [vmem:[%s1215 + $0x14] sm:$0xf]
  %v1222 = vld [vmem:[%s1215 + $0x18] sm:$0xf]
  %v1223 = vld [vmem:[%s1215 + $0x1c] sm:$0xf]
  %v1224 = vld [vmem:[%s1215 + $0x20] sm:$0xf]
  %v1225 = vld [vmem:[%s1215 + $0x24] sm:$0xf]
  %v1226 = vld [vmem:[%s1215 + $0x28] sm:$0xf]
  %v1227 = vld [vmem:[%s1215 + $0x2c] sm:$0xf]
  %v1228 = vld [vmem:[%s1215 + $0x30] sm:$0xf]
  %v1229 = vld [vmem:[%s1215 + $0x34] sm:$0xf]
  %v1230 = vld [vmem:[%s1215 + $0x38] sm:$0xf]
  %v1231 = vld [vmem:[%s1215 + $0x3c] sm:$0xf]
  %v1232 = vld [vmem:[%s1215 + $0x40] sm:$0xf]
  %v1233 = vld [vmem:[%s1215 + $0x44] sm:$0xf]
  %v1234 = vld [vmem:[%s1215 + $0x48] sm:$0xf]
  %v1235 = vld [vmem:[%s1215 + $0x4c] sm:$0xf]
  %v1236 = vld [vmem:[%s1215 + $0x50] sm:$0xf]
  %v1237 = vld [vmem:[%s1215 + $0x54] sm:$0xf]
  %v1238 = vld [vmem:[%s1215 + $0x58] sm:$0xf]
  %v1239 = vld [vmem:[%s1215 + $0x5c] sm:$0xf]
  %v1240 = vld [vmem:[%s1215 + $0x60] sm:$0xf]
  %v1241 = vld [vmem:[%s1215 + $0x64] sm:$0xf]
  %v1242 = vld [vmem:[%s1215 + $0x68] sm:$0xf]
  %v1243 = vld [vmem:[%s1215 + $0x6c] sm:$0xf]
  %v1244 = vld [vmem:[%s1215 + $0x70] sm:$0xf]
  %v1245 = vld [vmem:[%s1215 + $0x74] sm:$0xf]
  %v1246 = vld [vmem:[%s1215 + $0x78] sm:$0xf]
  %v1247 = vld [vmem:[%s1215 + $0x7c] sm:$0xf]
  %v1248 = vld [vmem:[%s1215 + $0x80] sm:$0xf]
  %v1249 = vld [vmem:[%s1215 + $0x84] sm:$0xf]
  %v1250 = vld [vmem:[%s1215 + $0x88] sm:$0xf]
  %v1251 = vld [vmem:[%s1215 + $0x8c] sm:$0xf]
  %v1252 = vld [vmem:[%s1215 + $0x90] sm:$0xf]
  %v1253 = vld [vmem:[%s1215 + $0x94] sm:$0xf]
  %v1254 = vld [vmem:[%s1215 + $0x98] sm:$0xf]
  %v1255 = vld [vmem:[%s1215 + $0x9c] sm:$0xf]
  %v1256 = vld [vmem:[%s1215 + $0xa0] sm:$0xf]
  %v1257 = vld [vmem:[%s1215 + $0xa4] sm:$0xf]
  %v1258 = vld [vmem:[%s1215 + $0xa8] sm:$0xf]
  %v1259 = vld [vmem:[%s1215 + $0xac] sm:$0xf]
  %v1260 = vld [vmem:[%s1215 + $0xb0] sm:$0xf]
  %v1261 = vld [vmem:[%s1215 + $0xb4] sm:$0xf]
  %v1262 = vld [vmem:[%s1215 + $0xb8] sm:$0xf]
  %v1263 = vld [vmem:[%s1215 + $0xbc] sm:$0xf]
  %v1264 = vld [vmem:[%s1215 + $0xc0] sm:$0xf]
  %v1265 = vld [vmem:[%s1215 + $0xc4] sm:$0xf]
  %v1266 = vld [vmem:[%s1215 + $0xc8] sm:$0xf]
  %v1267 = vld [vmem:[%s1215 + $0xcc] sm:$0xf]
  %v1268 = vld [vmem:[%s1215 + $0xd0] sm:$0xf]
  %v1269 = vld [vmem:[%s1215 + $0xd4] sm:$0xf]
  %v1270 = vld [vmem:[%s1215 + $0xd8] sm:$0xf]
  %v1271 = vld [vmem:[%s1215 + $0xdc] sm:$0xf]
  %v1272 = vld [vmem:[%s1215 + $0xe0] sm:$0xf]
  %v1273 = vld [vmem:[%s1215 + $0xe4] sm:$0xf]
  %v1274 = vld [vmem:[%s1215 + $0xe8] sm:$0xf]
  %v1275 = vld [vmem:[%s1215 + $0xec] sm:$0xf]
  %v1276 = vld [vmem:[%s1215 + $0xf0] sm:$0xf]
  %v1277 = vld [vmem:[%s1215 + $0xf4] sm:$0xf]
  %v1278 = vld [vmem:[%s1215 + $0xf8] sm:$0x3]
  %v1342 = vunpack.c.l.b16 %v1216
  %v1343 = vunpack.c.l.b16 %v1217
  %v1344 = vunpack.c.l.b16 %v1218
  %v1345 = vunpack.c.l.b16 %v1219
  %v1346 = vunpack.c.l.b16 %v1220
  %v1347 = vunpack.c.l.b16 %v1221
  %v1348 = vunpack.c.l.b16 %v1222
  %v1349 = vunpack.c.l.b16 %v1223
  %v1350 = vunpack.c.l.b16 %v1224
  %v1351 = vunpack.c.l.b16 %v1225
  %v1352 = vunpack.c.l.b16 %v1226
  %v1353 = vunpack.c.l.b16 %v1227
  %v1354 = vunpack.c.l.b16 %v1228
  %v1355 = vunpack.c.l.b16 %v1229
  %v1356 = vunpack.c.l.b16 %v1230
  %v1357 = vunpack.c.l.b16 %v1231
  %v1358 = vunpack.c.l.b16 %v1232
  %v1359 = vunpack.c.l.b16 %v1233
  %v1360 = vunpack.c.l.b16 %v1234
  %v1361 = vunpack.c.l.b16 %v1235
  %v1362 = vunpack.c.l.b16 %v1236
  %v1363 = vunpack.c.l.b16 %v1237
  %v1364 = vunpack.c.l.b16 %v1238
  %v1365 = vunpack.c.l.b16 %v1239
  %v1366 = vunpack.c.l.b16 %v1240
  %v1367 = vunpack.c.l.b16 %v1241
  %v1368 = vunpack.c.l.b16 %v1242
  %v1369 = vunpack.c.l.b16 %v1243
  %v1370 = vunpack.c.l.b16 %v1244
  %v1371 = vunpack.c.l.b16 %v1245
  %v1372 = vunpack.c.l.b16 %v1246
  %v1373 = vunpack.c.l.b16 %v1247
  %v1374 = vunpack.c.l.b16 %v1248
  %v1375 = vunpack.c.l.b16 %v1249
  %v1376 = vunpack.c.l.b16 %v1250
  %v1377 = vunpack.c.l.b16 %v1251
  %v1378 = vunpack.c.l.b16 %v1252
  %v1379 = vunpack.c.l.b16 %v1253
  %v1380 = vunpack.c.l.b16 %v1254
  %v1381 = vunpack.c.l.b16 %v1255
  %v1382 = vunpack.c.l.b16 %v1256
  %v1383 = vunpack.c.l.b16 %v1257
  %v1384 = vunpack.c.l.b16 %v1258
  %v1385 = vunpack.c.l.b16 %v1259
  %v1386 = vunpack.c.l.b16 %v1260
  %v1387 = vunpack.c.l.b16 %v1261
  %v1388 = vunpack.c.l.b16 %v1262
  %v1389 = vunpack.c.l.b16 %v1263
  %v1390 = vunpack.c.l.b16 %v1264
  %v1391 = vunpack.c.l.b16 %v1265
  %v1392 = vunpack.c.l.b16 %v1266
  %v1393 = vunpack.c.l.b16 %v1267
  %v1394 = vunpack.c.l.b16 %v1268
  %v1395 = vunpack.c.l.b16 %v1269
  %v1396 = vunpack.c.l.b16 %v1270
  %v1397 = vunpack.c.l.b16 %v1271
  %v1398 = vunpack.c.l.b16 %v1272
  %v1399 = vunpack.c.l.b16 %v1273
  %v1400 = vunpack.c.l.b16 %v1274
  %v1401 = vunpack.c.l.b16 %v1275
  %v1402 = vunpack.c.l.b16 %v1276
  %v1403 = vunpack.c.l.b16 %v1277
  %v1404 = vunpack.c.l.b16 %v1278
  %v1405 = vpack.c.b16 %v1343, %v1342
  %v1406 = vpack.c.b16 %v1345, %v1344
  %v1407 = vpack.c.b16 %v1347, %v1346
  %v1408 = vpack.c.b16 %v1349, %v1348
  %v1409 = vpack.c.b16 %v1351, %v1350
  %v1410 = vpack.c.b16 %v1353, %v1352
  %v1411 = vpack.c.b16 %v1355, %v1354
  %v1412 = vpack.c.b16 %v1357, %v1356
  %v1413 = vpack.c.b16 %v1359, %v1358
  %v1414 = vpack.c.b16 %v1361, %v1360
  %v1415 = vpack.c.b16 %v1363, %v1362
  %v1416 = vpack.c.b16 %v1365, %v1364
  %v1417 = vpack.c.b16 %v1367, %v1366
  %v1418 = vpack.c.b16 %v1369, %v1368
  %v1419 = vpack.c.b16 %v1371, %v1370
  %v1420 = vpack.c.b16 %v1373, %v1372
  %v1421 = vpack.c.b16 %v1375, %v1374
  %v1422 = vpack.c.b16 %v1377, %v1376
  %v1423 = vpack.c.b16 %v1379, %v1378
  %v1424 = vpack.c.b16 %v1381, %v1380
  %v1425 = vpack.c.b16 %v1383, %v1382
  %v1426 = vpack.c.b16 %v1385, %v1384
  %v1427 = vpack.c.b16 %v1387, %v1386
  %v1428 = vpack.c.b16 %v1389, %v1388
  %v1429 = vpack.c.b16 %v1391, %v1390
  %v1430 = vpack.c.b16 %v1393, %v1392
  %v1431 = vpack.c.b16 %v1395, %v1394
  %v1432 = vpack.c.b16 %v1397, %v1396
  %v1433 = vpack.c.b16 %v1399, %v1398
  %v1434 = vpack.c.b16 %v1401, %v1400
  %v1435 = vpack.c.b16 %v1403, %v1402
  %v1436 = vpack.c.b16 %v1404, %v1404
  %v1469 = vsel %vm363, %v1436, 0
  %1471 = vmatpush.bf16.msra.mxu0 %v1412
  %1472 = vmatpush.bf16.msra.mxu0 %v1411
  %1473 = vmatpush.bf16.msra.mxu0 %v1410
  %1474 = vmatpush.bf16.msra.mxu0 %v1409
  %1475 = vmatpush.bf16.msra.mxu0 %v1408
  %1476 = vmatpush.bf16.msra.mxu0 %v1407
  %1477 = vmatpush.bf16.msra.mxu0 %v1406
  %1478 = vmatpush.bf16.msra.mxu0 %v1405
  %1479 = vmatmul.bf16.gmra.mxu0 %v133
  %v1480 = vpop.f32.mrf.mxu0
  %v1481 = vadd.f32 0.0, %v1480
  %v1482 = vpop.f32.mrf.mxu0
  %v1483 = vadd.f32 0.0, %v1482
  %1484 = vmatmul.bf16.gmra.mxu0 %v137
  %v1485 = vpop.f32.mrf.mxu0
  %v1486 = vadd.f32 0.0, %v1485
  %v1487 = vpop.f32.mrf.mxu0
  %v1488 = vadd.f32 0.0, %v1487
  %1489 = vmatmul.bf16.gmra.mxu0 %v141
  %v1490 = vpop.f32.mrf.mxu0
  %v1491 = vadd.f32 0.0, %v1490
  %v1492 = vpop.f32.mrf.mxu0
  %v1493 = vadd.f32 0.0, %v1492
  %1494 = vmatmul.bf16.gmra.mxu0 %v145
  %v1495 = vpop.f32.mrf.mxu0
  %v1496 = vadd.f32 0.0, %v1495
  %v1497 = vpop.f32.mrf.mxu0
  %1498 = vdwg.mxu0
  %1499 = vmatpush.bf16.msra.mxu0 %v1420
  %1500 = vmatpush.bf16.msra.mxu0 %v1419
  %1501 = vmatpush.bf16.msra.mxu0 %v1418
  %1502 = vmatpush.bf16.msra.mxu0 %v1417
  %1503 = vmatpush.bf16.msra.mxu0 %v1416
  %1504 = vmatpush.bf16.msra.mxu0 %v1415
  %1505 = vmatpush.bf16.msra.mxu0 %v1414
  %1506 = vmatpush.bf16.msra.mxu0 %v1413
  %1507 = vmatmul.bf16.gmra.mxu0 %v134
  %v1508 = vpop.f32.mrf.mxu0
  %v1509 = vadd.f32 %v1481, %v1508
  %v1510 = vpop.f32.mrf.mxu0
  %v1511 = vadd.f32 %v1483, %v1510
  %1512 = vmatmul.bf16.gmra.mxu0 %v138
  %v1513 = vpop.f32.mrf.mxu0
  %v1514 = vadd.f32 %v1486, %v1513
  %v1515 = vpop.f32.mrf.mxu0
  %v1516 = vadd.f32 %v1488, %v1515
  %1517 = vmatmul.bf16.gmra.mxu0 %v142
  %v1518 = vpop.f32.mrf.mxu0
  %v1519 = vadd.f32 %v1491, %v1518
  %v1520 = vpop.f32.mrf.mxu0
  %v1521 = vadd.f32 %v1493, %v1520
  %1522 = vmatmul.bf16.gmra.mxu0 %v146
  %v1523 = vpop.f32.mrf.mxu0
  %v1524 = vadd.f32 %v1496, %v1523
  %v1525 = vpop.f32.mrf.mxu0
  %1526 = vdwg.mxu0
  %1527 = vmatpush.bf16.msra.mxu0 %v1428
  %1528 = vmatpush.bf16.msra.mxu0 %v1427
  %1529 = vmatpush.bf16.msra.mxu0 %v1426
  %1530 = vmatpush.bf16.msra.mxu0 %v1425
  %1531 = vmatpush.bf16.msra.mxu0 %v1424
  %1532 = vmatpush.bf16.msra.mxu0 %v1423
  %1533 = vmatpush.bf16.msra.mxu0 %v1422
  %1534 = vmatpush.bf16.msra.mxu0 %v1421
  %1535 = vmatmul.bf16.gmra.mxu0 %v135
  %v1536 = vpop.f32.mrf.mxu0
  %v1537 = vadd.f32 %v1509, %v1536
  %v1538 = vpop.f32.mrf.mxu0
  %v1539 = vadd.f32 %v1511, %v1538
  %1540 = vmatmul.bf16.gmra.mxu0 %v139
  %v1541 = vpop.f32.mrf.mxu0
  %v1542 = vadd.f32 %v1514, %v1541
  %v1543 = vpop.f32.mrf.mxu0
  %v1544 = vadd.f32 %v1516, %v1543
  %1545 = vmatmul.bf16.gmra.mxu0 %v143
  %v1546 = vpop.f32.mrf.mxu0
  %v1547 = vadd.f32 %v1519, %v1546
  %v1548 = vpop.f32.mrf.mxu0
  %v1549 = vadd.f32 %v1521, %v1548
  %1550 = vmatmul.bf16.gmra.mxu0 %v147
  %v1551 = vpop.f32.mrf.mxu0
  %v1552 = vadd.f32 %v1524, %v1551
  %v1553 = vpop.f32.mrf.mxu0
  %1554 = vdwg.mxu0
  %1555 = vmatpush.bf16.msra.mxu0 %v1469
  %1556 = vmatpush.bf16.msra.mxu0 %v1435
  %1557 = vmatpush.bf16.msra.mxu0 %v1434
  %1558 = vmatpush.bf16.msra.mxu0 %v1433
  %1559 = vmatpush.bf16.msra.mxu0 %v1432
  %1560 = vmatpush.bf16.msra.mxu0 %v1431
  %1561 = vmatpush.bf16.msra.mxu0 %v1430
  %1562 = vmatpush.bf16.msra.mxu0 %v1429
  %1563 = vmatmul.bf16.gmra.mxu0 %v352
  %v1564 = vpop.f32.mrf.mxu0
  %v1565 = vadd.f32 %v1537, %v1564
  %v1566 = vpop.f32.mrf.mxu0
  %v1567 = vadd.f32 %v1539, %v1566
  %1568 = vmatmul.bf16.gmra.mxu0 %v355
  %v1569 = vpop.f32.mrf.mxu0
  %v1570 = vadd.f32 %v1542, %v1569
  %v1571 = vpop.f32.mrf.mxu0
  %v1572 = vadd.f32 %v1544, %v1571
  %1573 = vmatmul.bf16.gmra.mxu0 %v358
  %v1574 = vpop.f32.mrf.mxu0
  %v1575 = vadd.f32 %v1547, %v1574
  %v1576 = vpop.f32.mrf.mxu0
  %v1577 = vadd.f32 %v1549, %v1576
  %1578 = vmatmul.bf16.gmra.mxu0 %v361
  %v1579 = vpop.f32.mrf.mxu0
  %v1580 = vadd.f32 %v1552, %v1579
  %v1581 = vpop.f32.mrf.mxu0
  %1582 = vdwg.mxu0
  %v1583 = vmax.f32 %v461, %v829
  %v1584 = vmax.f32 %v463, %v831
  %v1585 = vmax.f32 %v466, %v834
  %v1586 = vmax.f32 %v468, %v836
  %v1587 = vmax.f32 %v471, %v839
  %v1588 = vmax.f32 %v473, %v841
  %v1589 = vmax.f32 %v476, %v844
  %v1590 = vmax.f32 %v1197, %v1565
  %v1591 = vmax.f32 %v1199, %v1567
  %v1592 = vmax.f32 %v1202, %v1570
  %v1593 = vmax.f32 %v1204, %v1572
  %v1594 = vmax.f32 %v1207, %v1575
  %v1595 = vmax.f32 %v1209, %v1577
  %v1596 = vmax.f32 %v1212, %v1580
  %v1597 = vmax.f32 %v1583, %v1590
  %v1598 = vmax.f32 %v1584, %v1591
  %v1599 = vmax.f32 %v1585, %v1592
  %v1600 = vmax.f32 %v1586, %v1593
  %v1601 = vmax.f32 %v1587, %v1594
  %v1602 = vmax.f32 %v1588, %v1595
  %v1603 = vmax.f32 %v1589, %v1596
  %v1604 = vld [vmem:[%s2] sm:$0xff]
  %v1605 = vld [vmem:[%s2 + $0x8] sm:$0xff]
  %v1606 = vld [vmem:[%s2 + $0x10] sm:$0xff]
  %v1607 = vld [vmem:[%s2 + $0x18] sm:$0xff]
  %v1608 = vld [vmem:[%s2 + $0x20] sm:$0xff]
  %v1609 = vld [vmem:[%s2 + $0x28] sm:$0xff]
  %v1610 = vld [vmem:[%s2 + $0x30] sm:$0x3]
  %1612 = vset.pattern.permute.xlu0 0
  %1613 = vperm.xlu0 %1612, %v1604
  %v1614 = vpop.permute.xlu0 %1613
  %1617 = vset.pattern.permute.xlu0 0
  %1618 = vperm.xlu0 %1617, %v1605
  %v1619 = vpop.permute.xlu0 %1618
  %1622 = vset.pattern.permute.xlu0 0
  %1623 = vperm.xlu0 %1622, %v1606
  %v1624 = vpop.permute.xlu0 %1623
  %1627 = vset.pattern.permute.xlu0 0
  %1628 = vperm.xlu0 %1627, %v1607
  %v1629 = vpop.permute.xlu0 %1628
  %1632 = vset.pattern.permute.xlu0 0
  %1633 = vperm.xlu0 %1632, %v1608
  %v1634 = vpop.permute.xlu0 %1633
  %1637 = vset.pattern.permute.xlu0 0
  %1638 = vperm.xlu0 %1637, %v1609
  %v1639 = vpop.permute.xlu0 %1638
  %1642 = vset.pattern.permute.xlu0 0
  %1643 = vperm.xlu0 %1642, %v1610
  %v1644 = vpop.permute.xlu0 %1643
  %v1646 = vadd.f32 %v1597, %v1614
  %v1647 = vadd.f32 %v1598, %v1619
  %v1648 = vadd.f32 %v1599, %v1624
  %v1649 = vadd.f32 %v1600, %v1629
  %v1650 = vadd.f32 %v1601, %v1634
  %v1651 = vadd.f32 %v1602, %v1639
  %v1652 = vadd.f32 %v1603, %v1644
  %v1653 = vmax.f32 %v1646, 0.0
  %v1654 = vmax.f32 %v1647, 0.0
  %v1655 = vmax.f32 %v1648, 0.0
  %v1656 = vmax.f32 %v1649, 0.0
  %v1657 = vmax.f32 %v1650, 0.0
  %v1658 = vmax.f32 %v1651, 0.0
  %v1659 = vmax.f32 %v1652, 0.0
  %vm1660 = vcmask 261120
  %1661 = vst.msk [vmem:[%s3] sm:$0xff] %vm1660, %v1653
  %1662 = vst.msk [vmem:[%s3 + $0x8] sm:$0xff] %vm1660, %v1654
  %1663 = vst.msk [vmem:[%s3 + $0x10] sm:$0xff] %vm1660, %v1655
  %1664 = vst.msk [vmem:[%s3 + $0x18] sm:$0xff] %vm1660, %v1656
  %1665 = vst.msk [vmem:[%s3 + $0x20] sm:$0xff] %vm1660, %v1657
  %1666 = vst.msk [vmem:[%s3 + $0x28] sm:$0xff] %vm1660, %v1658
  %vm1667 = vcmask 254976
  %1668 = vst.msk [vmem:[%s3 + $0x30] sm:$0x3] %vm1667, %v1659
  // Predicated region
  $region14: #{convnet_forward.4} parent=0 // pred_check
    _
  $region15: #{convnet_forward.4} parent=0 // pred_check_branch
    %1670 = sbr.rel (0) target = $region17
  $region16: #{convnet_forward.4} parent=0 // pred_region
    _
  $region17: #{convnet_forward.4} parent=0 // pred_fallthru
    _
  // Predicated region
  $region18: #{convnet_forward.4} parent=0 // pred_check
    _
  $region19: #{convnet_forward.4} parent=0 // pred_check_branch
    %1672 = sbr.rel (0) target = $region21
  $region20: #{convnet_forward.4} parent=0 // pred_region
    _
  $region21: #{convnet_forward.4} parent=0 // pred_fallthru
    _

// kernel: convnet_forward.5
$region0: #{convnet_forward.5}
  #allocation0 [shape = 'u32[]', space=smem, size = 0x4, offset = 0x4, fixed_abs, tag = 'smem constant byte address 0x4 - core index']
  #allocation1 [shape = 'u32[72,128]{1,0:T(1,128)}', space=vmem, size = 0x9000, scoped, tag = 'internal scratch']
  %s0 = inlined_call_operand.vmem [shape: bf16[2,800], index: 0, kind: input, shape index: {}]
  %s1 = inlined_call_operand.vmem [shape: bf16[800,500], index: 1, kind: input, shape index: {}]
  %s2 = inlined_call_operand.vmem [shape: f32[1,500], index: 2, kind: input, shape index: {}]
  %s3 = inlined_call_operand.vmem [shape: bf16[500,10], index: 3, kind: input, shape index: {}]
  %s4 = inlined_call_operand.vmem [shape: f32[1,10], index: 4, kind: input, shape index: {}]
  %s5 = inlined_call_operand.hbm [shape: f32[2,10], index: 5, kind: output, shape index: {}]
  %s6 = sld [smem:[#allocation0]]
  $region30: #{convnet_forward.5} parent=0
    _
  %s8 = ssub.s32 1, %s6
  %s9 = scalar_select 0, %s8, %s6
  $region1: #{convnet_forward.5} parent=0
    #allocation2 [shape = 'u8[1024]{0}', space=vmem, size = 0x400, scoped, tag = 'output window, operand 0, single buffered']
    #allocation3 [shape = 's32[1]{0}', space=sflag, size = 0x4, scoped, tag = 'scoped memory for convnet_forward.5']
    %10 = vsyncpa [#allocation3], 0
    // Predicated region
    $region2: #{convnet_forward.5} parent=1 // pred_check
      _
    $region3: #{convnet_forward.5} parent=1 // pred_check_branch
      %12 = sbr.rel (0) target = $region5
    $region4: #{convnet_forward.5} parent=1 // pred_region
      _
    $region5: #{convnet_forward.5} parent=1 // pred_fallthru
      _
    // Predicated region
    $region6: #{convnet_forward.5} parent=1 // pred_check
      _
    $region7: #{convnet_forward.5} parent=1 // pred_check_branch
      %14 = sbr.rel (0) target = $region9
    $region8: #{convnet_forward.5} parent=1 // pred_region
      _
    $region9: #{convnet_forward.5} parent=1 // pred_fallthru
      _
    // Predicated region
    $region10: #{convnet_forward.5} parent=1 // pred_check
      _
    $region11: #{convnet_forward.5} parent=1 // pred_check_branch
      %16 = sbr.rel (0) target = $region13
    $region12: #{convnet_forward.5} parent=1 // pred_region
      _
    $region13: #{convnet_forward.5} parent=1 // pred_fallthru
      _
    // Predicated region
    $region14: #{convnet_forward.5} parent=1 // pred_check
      _
    $region15: #{convnet_forward.5} parent=1 // pred_check_branch
      %18 = sbr.rel (0) target = $region17
    $region16: #{convnet_forward.5} parent=1 // pred_region
      _
    $region17: #{convnet_forward.5} parent=1 // pred_fallthru
      _
    // Predicated region
    $region18: #{convnet_forward.5} parent=1 // pred_check
      _
    $region19: #{convnet_forward.5} parent=1 // pred_check_branch
      %20 = sbr.rel (0) target = $region21
    $region20: #{convnet_forward.5} parent=1 // pred_region
      _
    $region21: #{convnet_forward.5} parent=1 // pred_fallthru
      _
    %v22 = vld [vmem:[%s0] sm:$0x7f]
    %v23 = vld [vmem:[%s1] sm:$0xff]
    %v24 = vld [vmem:[%s1 + $0x8] sm:$0xff]
    %v25 = vld [vmem:[%s1 + $0x10] sm:$0xff]
    %v26 = vld [vmem:[%s1 + $0x18] sm:$0xff]
    %v27 = vld [vmem:[%s1 + $0x20] sm:$0xff]
    %v28 = vld [vmem:[%s1 + $0x28] sm:$0xff]
    %v29 = vld [vmem:[%s1 + $0x30] sm:$0xff]
    %v30 = vld [vmem:[%s1 + $0x38] sm:$0xff]
    %v31 = vld [vmem:[%s1 + $0x40] sm:$0xff]
    %v32 = vld [vmem:[%s1 + $0x48] sm:$0xff]
    %v33 = vld [vmem:[%s1 + $0x50] sm:$0xff]
    %v34 = vld [vmem:[%s1 + $0x58] sm:$0xff]
    %v35 = vld [vmem:[%s1 + $0x60] sm:$0xff]
    %v36 = vld [vmem:[%s1 + $0x68] sm:$0xff]
    %v37 = vld [vmem:[%s1 + $0x70] sm:$0xff]
    %v38 = vld [vmem:[%s1 + $0x78] sm:$0xff]
    %v39 = vld [vmem:[%s1 + $0x80] sm:$0xff]
    %v40 = vld [vmem:[%s1 + $0x88] sm:$0xff]
    %v41 = vld [vmem:[%s1 + $0x90] sm:$0xff]
    %v42 = vld [vmem:[%s1 + $0x98] sm:$0xff]
    %v43 = vld [vmem:[%s1 + $0xa0] sm:$0xff]
    %v44 = vld [vmem:[%s1 + $0xa8] sm:$0xff]
    %v45 = vld [vmem:[%s1 + $0xb0] sm:$0xff]
    %v46 = vld [vmem:[%s1 + $0xb8] sm:$0xff]
    %v47 = vld [vmem:[%s1 + $0xc0] sm:$0xff]
    %v48 = vld [vmem:[%s1 + $0xc8] sm:$0xff]
    %v49 = vld [vmem:[%s1 + $0xd0] sm:$0xff]
    %v50 = vld [vmem:[%s1 + $0xd8] sm:$0xff]
    %v51 = vld [vmem:[%s1 + $0xe0] sm:$0xff]
    %v52 = vld [vmem:[%s1 + $0xe8] sm:$0xff]
    %v53 = vld [vmem:[%s1 + $0xf0] sm:$0xff]
    %v54 = vld [vmem:[%s1 + $0xf8] sm:$0xff]
    %v55 = vld [vmem:[%s1 + $0x100] sm:$0xff]
    %v56 = vld [vmem:[%s1 + $0x108] sm:$0xff]
    %v57 = vld [vmem:[%s1 + $0x110] sm:$0xff]
    %v58 = vld [vmem:[%s1 + $0x118] sm:$0xff]
    %v59 = vld [vmem:[%s1 + $0x120] sm:$0xff]
    %v60 = vld [vmem:[%s1 + $0x128] sm:$0xff]
    %v61 = vld [vmem:[%s1 + $0x130] sm:$0xff]
    %v62 = vld [vmem:[%s1 + $0x138] sm:$0xff]
    %v63 = vld [vmem:[%s1 + $0x140] sm:$0xff]
    %v64 = vld [vmem:[%s1 + $0x148] sm:$0xff]
    %v65 = vld [vmem:[%s1 + $0x150] sm:$0xff]
    %v66 = vld [vmem:[%s1 + $0x158] sm:$0xff]
    %v67 = vld [vmem:[%s1 + $0x160] sm:$0xff]
    %v68 = vld [vmem:[%s1 + $0x168] sm:$0xff]
    %v69 = vld [vmem:[%s1 + $0x170] sm:$0xff]
    %v70 = vld [vmem:[%s1 + $0x178] sm:$0xff]
    %v71 = vld [vmem:[%s1 + $0x180] sm:$0xff]
    %v72 = vld [vmem:[%s1 + $0x188] sm:$0xff]
    %v73 = vld [vmem:[%s1 + $0x190] sm:$0xff]
    %v74 = vld [vmem:[%s1 + $0x198] sm:$0xff]
    %v75 = vld [vmem:[%s1 + $0x1a0] sm:$0xff]
    %v76 = vld [vmem:[%s1 + $0x1a8] sm:$0xff]
    %v77 = vld [vmem:[%s1 + $0x1b0] sm:$0xff]
    %v78 = vld [vmem:[%s1 + $0x1b8] sm:$0xff]
    %v79 = vld [vmem:[%s1 + $0x1c0] sm:$0xff]
    %v80 = vld [vmem:[%s1 + $0x1c8] sm:$0xff]
    %v81 = vld [vmem:[%s1 + $0x1d0] sm:$0xff]
    %v82 = vld [vmem:[%s1 + $0x1d8] sm:$0xff]
    %v83 = vld [vmem:[%s1 + $0x1e0] sm:$0xff]
    %v84 = vld [vmem:[%s1 + $0x1e8] sm:$0xff]
    %v85 = vld [vmem:[%s1 + $0x1f0] sm:$0xff]
    %v86 = vld [vmem:[%s1 + $0x1f8] sm:$0xff]
    %v87 = vld [vmem:[%s1 + $0x200] sm:$0xff]
    %v88 = vld [vmem:[%s1 + $0x208] sm:$0xff]
    %v89 = vld [vmem:[%s1 + $0x210] sm:$0xff]
    %v90 = vld [vmem:[%s1 + $0x218] sm:$0xff]
    %v91 = vld [vmem:[%s1 + $0x220] sm:$0xff]
    %v92 = vld [vmem:[%s1 + $0x228] sm:$0xff]
    %v93 = vld [vmem:[%s1 + $0x230] sm:$0xff]
    %v94 = vld [vmem:[%s1 + $0x238] sm:$0xff]
    %v95 = vld [vmem:[%s1 + $0x240] sm:$0xff]
    %v96 = vld [vmem:[%s1 + $0x248] sm:$0xff]
    %v97 = vld [vmem:[%s1 + $0x250] sm:$0xff]
    %v98 = vld [vmem:[%s1 + $0x258] sm:$0xff]
    %v99 = vld [vmem:[%s1 + $0x260] sm:$0xff]
    %v100 = vld [vmem:[%s1 + $0x268] sm:$0xff]
    %v101 = vld [vmem:[%s1 + $0x270] sm:$0xff]
    %v102 = vld [vmem:[%s1 + $0x278] sm:$0xff]
    %v103 = vld [vmem:[%s1 + $0x280] sm:$0xff]
    %v104 = vld [vmem:[%s1 + $0x288] sm:$0xff]
    %v105 = vld [vmem:[%s1 + $0x290] sm:$0xff]
    %v106 = vld [vmem:[%s1 + $0x298] sm:$0xff]
    %v107 = vld [vmem:[%s1 + $0x2a0] sm:$0xff]
    %v108 = vld [vmem:[%s1 + $0x2a8] sm:$0xff]
    %v109 = vld [vmem:[%s1 + $0x2b0] sm:$0xff]
    %v110 = vld [vmem:[%s1 + $0x2b8] sm:$0xff]
    %v111 = vld [vmem:[%s1 + $0x2c0] sm:$0xff]
    %v112 = vld [vmem:[%s1 + $0x2c8] sm:$0xff]
    %v113 = vld [vmem:[%s1 + $0x2d0] sm:$0xff]
    %v114 = vld [vmem:[%s1 + $0x2d8] sm:$0xff]
    %v115 = vld [vmem:[%s1 + $0x2e0] sm:$0xff]
    %v116 = vld [vmem:[%s1 + $0x2e8] sm:$0xff]
    %v117 = vld [vmem:[%s1 + $0x2f0] sm:$0xff]
    %v118 = vld [vmem:[%s1 + $0x2f8] sm:$0xff]
    %v119 = vld [vmem:[%s1 + $0x300] sm:$0xff]
    %v120 = vld [vmem:[%s1 + $0x308] sm:$0xff]
    %v121 = vld [vmem:[%s1 + $0x310] sm:$0xff]
    %v122 = vld [vmem:[%s1 + $0x318] sm:$0xff]
    %v123 = vld [vmem:[%s1 + $0x320] sm:$0xff]
    %v124 = vld [vmem:[%s1 + $0x328] sm:$0xff]
    %v125 = vld [vmem:[%s1 + $0x330] sm:$0xff]
    %v126 = vld [vmem:[%s1 + $0x338] sm:$0xff]
    %v127 = vld [vmem:[%s1 + $0x340] sm:$0xff]
    %v128 = vld [vmem:[%s1 + $0x348] sm:$0xff]
    %v129 = vld [vmem:[%s1 + $0x350] sm:$0xff]
    %v130 = vld [vmem:[%s1 + $0x358] sm:$0xff]
    %v131 = vld [vmem:[%s1 + $0x360] sm:$0xff]
    %v132 = vld [vmem:[%s1 + $0x368] sm:$0xff]
    %v133 = vld [vmem:[%s1 + $0x370] sm:$0xff]
    %v134 = vld [vmem:[%s1 + $0x378] sm:$0xff]
    %v135 = vld [vmem:[%s1 + $0x380] sm:$0xff]
    %v136 = vld [vmem:[%s1 + $0x388] sm:$0xff]
    %v137 = vld [vmem:[%s1 + $0x390] sm:$0xff]
    %v138 = vld [vmem:[%s1 + $0x398] sm:$0xff]
    %v139 = vld [vmem:[%s1 + $0x3a0] sm:$0xff]
    %v140 = vld [vmem:[%s1 + $0x3a8] sm:$0xff]
    %v141 = vld [vmem:[%s1 + $0x3b0] sm:$0xff]
    %v142 = vld [vmem:[%s1 + $0x3b8] sm:$0xff]
    %v143 = vld [vmem:[%s1 + $0x3c0] sm:$0xff]
    %v144 = vld [vmem:[%s1 + $0x3c8] sm:$0xff]
    %v145 = vld [vmem:[%s1 + $0x3d0] sm:$0xff]
    %v146 = vld [vmem:[%s1 + $0x3d8] sm:$0xff]
    %v147 = vld [vmem:[%s1 + $0x3e0] sm:$0xff]
    %v148 = vld [vmem:[%s1 + $0x3e8] sm:$0xff]
    %v149 = vld [vmem:[%s1 + $0x3f0] sm:$0xff]
    %v150 = vld [vmem:[%s1 + $0x3f8] sm:$0xff]
    %v151 = vld [vmem:[%s1 + $0x400] sm:$0xff]
    %v152 = vld [vmem:[%s1 + $0x408] sm:$0xff]
    %v153 = vld [vmem:[%s1 + $0x410] sm:$0xff]
    %v154 = vld [vmem:[%s1 + $0x418] sm:$0xff]
    %v155 = vld [vmem:[%s1 + $0x420] sm:$0xff]
    %v156 = vld [vmem:[%s1 + $0x428] sm:$0xff]
    %v157 = vld [vmem:[%s1 + $0x430] sm:$0xff]
    %v158 = vld [vmem:[%s1 + $0x438] sm:$0xff]
    %v159 = vld [vmem:[%s1 + $0x440] sm:$0xff]
    %v160 = vld [vmem:[%s1 + $0x448] sm:$0xff]
    %v161 = vld [vmem:[%s1 + $0x450] sm:$0xff]
    %v162 = vld [vmem:[%s1 + $0x458] sm:$0xff]
    %v163 = vld [vmem:[%s1 + $0x460] sm:$0xff]
    %v164 = vld [vmem:[%s1 + $0x468] sm:$0xff]
    %v165 = vld [vmem:[%s1 + $0x470] sm:$0xff]
    %v166 = vld [vmem:[%s1 + $0x478] sm:$0xff]
    %v167 = vld [vmem:[%s1 + $0x480] sm:$0xff]
    %v168 = vld [vmem:[%s1 + $0x488] sm:$0xff]
    %v169 = vld [vmem:[%s1 + $0x490] sm:$0xff]
    %v170 = vld [vmem:[%s1 + $0x498] sm:$0xff]
    %v171 = vld [vmem:[%s1 + $0x4a0] sm:$0xff]
    %v172 = vld [vmem:[%s1 + $0x4a8] sm:$0xff]
    %v173 = vld [vmem:[%s1 + $0x4b0] sm:$0xff]
    %v174 = vld [vmem:[%s1 + $0x4b8] sm:$0xff]
    %v175 = vld [vmem:[%s1 + $0x4c0] sm:$0xff]
    %v176 = vld [vmem:[%s1 + $0x4c8] sm:$0xff]
    %v177 = vld [vmem:[%s1 + $0x4d0] sm:$0xff]
    %v178 = vld [vmem:[%s1 + $0x4d8] sm:$0xff]
    %v179 = vld [vmem:[%s1 + $0x4e0] sm:$0xff]
    %v180 = vld [vmem:[%s1 + $0x4e8] sm:$0xff]
    %v181 = vld [vmem:[%s1 + $0x4f0] sm:$0xff]
    %v182 = vld [vmem:[%s1 + $0x4f8] sm:$0xff]
    %v183 = vld [vmem:[%s1 + $0x500] sm:$0xff]
    %v184 = vld [vmem:[%s1 + $0x508] sm:$0xff]
    %v185 = vld [vmem:[%s1 + $0x510] sm:$0xff]
    %v186 = vld [vmem:[%s1 + $0x518] sm:$0xff]
    %v187 = vld [vmem:[%s1 + $0x520] sm:$0xff]
    %v188 = vld [vmem:[%s1 + $0x528] sm:$0xff]
    %v189 = vld [vmem:[%s1 + $0x530] sm:$0xff]
    %v190 = vld [vmem:[%s1 + $0x538] sm:$0xff]
    %v191 = vld [vmem:[%s1 + $0x540] sm:$0xff]
    %v192 = vld [vmem:[%s1 + $0x548] sm:$0xff]
    %v193 = vld [vmem:[%s1 + $0x550] sm:$0xff]
    %v194 = vld [vmem:[%s1 + $0x558] sm:$0xff]
    %v195 = vld [vmem:[%s1 + $0x560] sm:$0xff]
    %v196 = vld [vmem:[%s1 + $0x568] sm:$0xff]
    %v197 = vld [vmem:[%s1 + $0x570] sm:$0xff]
    %v198 = vld [vmem:[%s1 + $0x578] sm:$0xff]
    %v199 = vld [vmem:[%s1 + $0x580] sm:$0xff]
    %v200 = vld [vmem:[%s1 + $0x588] sm:$0xff]
    %v201 = vld [vmem:[%s1 + $0x590] sm:$0xff]
    %v202 = vld [vmem:[%s1 + $0x598] sm:$0xff]
    %v203 = vld [vmem:[%s1 + $0x5a0] sm:$0xff]
    %v204 = vld [vmem:[%s1 + $0x5a8] sm:$0xff]
    %v205 = vld [vmem:[%s1 + $0x5b0] sm:$0xff]
    %v206 = vld [vmem:[%s1 + $0x5b8] sm:$0xff]
    %v207 = vld [vmem:[%s1 + $0x5c0] sm:$0xff]
    %v208 = vld [vmem:[%s1 + $0x5c8] sm:$0xff]
    %v209 = vld [vmem:[%s1 + $0x5d0] sm:$0xff]
    %v210 = vld [vmem:[%s1 + $0x5d8] sm:$0xff]
    %v211 = vld [vmem:[%s1 + $0x5e0] sm:$0xff]
    %v212 = vld [vmem:[%s1 + $0x5e8] sm:$0xff]
    %v213 = vld [vmem:[%s1 + $0x5f0] sm:$0xff]
    %v214 = vld [vmem:[%s1 + $0x5f8] sm:$0xff]
    %v215 = vld [vmem:[%s1 + $0x600] sm:$0xff]
    %v216 = vld [vmem:[%s1 + $0x608] sm:$0xff]
    %v217 = vld [vmem:[%s1 + $0x610] sm:$0xff]
    %v218 = vld [vmem:[%s1 + $0x618] sm:$0xff]
    %v219 = vld [vmem:[%s1 + $0x620] sm:$0xff]
    %v220 = vld [vmem:[%s1 + $0x628] sm:$0xff]
    %v221 = vld [vmem:[%s1 + $0x630] sm:$0xff]
    %v222 = vld [vmem:[%s1 + $0x638] sm:$0xff]
    %v223 = vld [vmem:[%s2] sm:$0xf]
    %v225 = vperm.slane %v223, 0
    %v226 = vperm.slane %v223, 1
    %v227 = vperm.slane %v223, 2
    %v228 = vperm.slane %v223, 3
    %234 = vst [vmem:[#allocation1] ss:$9 sm:$0xff] %v22
    %v235 = vld [vmem:[#allocation1] sm:$0xff]
    %v236 = vld [vmem:[#allocation1 + $0x9] sm:$0xff]
    %v237 = vld [vmem:[#allocation1 + $0x12] sm:$0xff]
    %v238 = vld [vmem:[#allocation1 + $0x1b] sm:$0xff]
    %v239 = vld [vmem:[#allocation1 + $0x24] sm:$0xff]
    %v240 = vld [vmem:[#allocation1 + $0x2d] sm:$0xff]
    %v241 = vld [vmem:[#allocation1 + $0x36] sm:$0xff]
    %v448 = vunpack.c.l.b16 %v23
    %v449 = vunpack.c.h.b16 %v23
    %v450 = vunpack.c.l.b16 %v24
    %v451 = vunpack.c.h.b16 %v24
    %v452 = vunpack.c.l.b16 %v25
    %v453 = vunpack.c.h.b16 %v25
    %v454 = vunpack.c.l.b16 %v26
    %v455 = vunpack.c.h.b16 %v26
    %v456 = vunpack.c.l.b16 %v27
    %v457 = vunpack.c.h.b16 %v27
    %v458 = vunpack.c.l.b16 %v28
    %v459 = vunpack.c.h.b16 %v28
    %v460 = vunpack.c.l.b16 %v29
    %v461 = vunpack.c.h.b16 %v29
    %v462 = vunpack.c.l.b16 %v30
    %v463 = vunpack.c.h.b16 %v30
    %v464 = vunpack.c.l.b16 %v31
    %v465 = vunpack.c.h.b16 %v31
    %v466 = vunpack.c.l.b16 %v32
    %v467 = vunpack.c.h.b16 %v32
    %v468 = vunpack.c.l.b16 %v33
    %v469 = vunpack.c.h.b16 %v33
    %v470 = vunpack.c.l.b16 %v34
    %v471 = vunpack.c.h.b16 %v34
    %v472 = vunpack.c.l.b16 %v35
    %v473 = vunpack.c.h.b16 %v35
    %v474 = vunpack.c.l.b16 %v36
    %v475 = vunpack.c.h.b16 %v36
    %v476 = vunpack.c.l.b16 %v37
    %v477 = vunpack.c.h.b16 %v37
    %v478 = vunpack.c.l.b16 %v38
    %v479 = vunpack.c.h.b16 %v38
    %v480 = vunpack.c.l.b16 %v39
    %v481 = vunpack.c.h.b16 %v39
    %v482 = vunpack.c.l.b16 %v40
    %v483 = vunpack.c.h.b16 %v40
    %v484 = vunpack.c.l.b16 %v41
    %v485 = vunpack.c.h.b16 %v41
    %v486 = vunpack.c.l.b16 %v42
    %v487 = vunpack.c.h.b16 %v42
    %v488 = vunpack.c.l.b16 %v43
    %v489 = vunpack.c.h.b16 %v43
    %v490 = vunpack.c.l.b16 %v44
    %v491 = vunpack.c.h.b16 %v44
    %v492 = vunpack.c.l.b16 %v45
    %v493 = vunpack.c.h.b16 %v45
    %v494 = vunpack.c.l.b16 %v46
    %v495 = vunpack.c.h.b16 %v46
    %v496 = vunpack.c.l.b16 %v47
    %v497 = vunpack.c.h.b16 %v47
    %v498 = vunpack.c.l.b16 %v48
    %v499 = vunpack.c.h.b16 %v48
    %v500 = vunpack.c.l.b16 %v49
    %v501 = vunpack.c.h.b16 %v49
    %v502 = vunpack.c.l.b16 %v50
    %v503 = vunpack.c.h.b16 %v50
    %v504 = vunpack.c.l.b16 %v51
    %v505 = vunpack.c.h.b16 %v51
    %v506 = vunpack.c.l.b16 %v52
    %v507 = vunpack.c.h.b16 %v52
    %v508 = vunpack.c.l.b16 %v53
    %v509 = vunpack.c.h.b16 %v53
    %v510 = vunpack.c.l.b16 %v54
    %v511 = vunpack.c.h.b16 %v54
    %v512 = vunpack.c.l.b16 %v55
    %v513 = vunpack.c.h.b16 %v55
    %v514 = vunpack.c.l.b16 %v56
    %v515 = vunpack.c.h.b16 %v56
    %v516 = vunpack.c.l.b16 %v57
    %v517 = vunpack.c.h.b16 %v57
    %v518 = vunpack.c.l.b16 %v58
    %v519 = vunpack.c.h.b16 %v58
    %v520 = vunpack.c.l.b16 %v59
    %v521 = vunpack.c.h.b16 %v59
    %v522 = vunpack.c.l.b16 %v60
    %v523 = vunpack.c.h.b16 %v60
    %v524 = vunpack.c.l.b16 %v61
    %v525 = vunpack.c.h.b16 %v61
    %v526 = vunpack.c.l.b16 %v62
    %v527 = vunpack.c.h.b16 %v62
    %v528 = vunpack.c.l.b16 %v63
    %v529 = vunpack.c.h.b16 %v63
    %v530 = vunpack.c.l.b16 %v64
    %v531 = vunpack.c.h.b16 %v64
    %v532 = vunpack.c.l.b16 %v65
    %v533 = vunpack.c.h.b16 %v65
    %v534 = vunpack.c.l.b16 %v66
    %v535 = vunpack.c.h.b16 %v66
    %v536 = vunpack.c.l.b16 %v67
    %v537 = vunpack.c.h.b16 %v67
    %v538 = vunpack.c.l.b16 %v68
    %v539 = vunpack.c.h.b16 %v68
    %v540 = vunpack.c.l.b16 %v69
    %v541 = vunpack.c.h.b16 %v69
    %v542 = vunpack.c.l.b16 %v70
    %v543 = vunpack.c.h.b16 %v70
    %v544 = vunpack.c.l.b16 %v71
    %v545 = vunpack.c.h.b16 %v71
    %v546 = vunpack.c.l.b16 %v72
    %v547 = vunpack.c.h.b16 %v72
    %v548 = vunpack.c.l.b16 %v73
    %v549 = vunpack.c.h.b16 %v73
    %v550 = vunpack.c.l.b16 %v74
    %v551 = vunpack.c.h.b16 %v74
    %v552 = vunpack.c.l.b16 %v75
    %v553 = vunpack.c.h.b16 %v75
    %v554 = vunpack.c.l.b16 %v76
    %v555 = vunpack.c.h.b16 %v76
    %v556 = vunpack.c.l.b16 %v77
    %v557 = vunpack.c.h.b16 %v77
    %v558 = vunpack.c.l.b16 %v78
    %v559 = vunpack.c.h.b16 %v78
    %v560 = vunpack.c.l.b16 %v79
    %v561 = vunpack.c.h.b16 %v79
    %v562 = vunpack.c.l.b16 %v80
    %v563 = vunpack.c.h.b16 %v80
    %v564 = vunpack.c.l.b16 %v81
    %v565 = vunpack.c.h.b16 %v81
    %v566 = vunpack.c.l.b16 %v82
    %v567 = vunpack.c.h.b16 %v82
    %v568 = vunpack.c.l.b16 %v83
    %v569 = vunpack.c.h.b16 %v83
    %v570 = vunpack.c.l.b16 %v84
    %v571 = vunpack.c.h.b16 %v84
    %v572 = vunpack.c.l.b16 %v85
    %v573 = vunpack.c.h.b16 %v85
    %v574 = vunpack.c.l.b16 %v86
    %v575 = vunpack.c.h.b16 %v86
    %v576 = vunpack.c.l.b16 %v87
    %v577 = vunpack.c.h.b16 %v87
    %v578 = vunpack.c.l.b16 %v88
    %v579 = vunpack.c.h.b16 %v88
    %v580 = vunpack.c.l.b16 %v89
    %v581 = vunpack.c.h.b16 %v89
    %v582 = vunpack.c.l.b16 %v90
    %v583 = vunpack.c.h.b16 %v90
    %v584 = vunpack.c.l.b16 %v91
    %v585 = vunpack.c.h.b16 %v91
    %v586 = vunpack.c.l.b16 %v92
    %v587 = vunpack.c.h.b16 %v92
    %v588 = vunpack.c.l.b16 %v93
    %v589 = vunpack.c.h.b16 %v93
    %v590 = vunpack.c.l.b16 %v94
    %v591 = vunpack.c.h.b16 %v94
    %v592 = vunpack.c.l.b16 %v95
    %v593 = vunpack.c.h.b16 %v95
    %v594 = vunpack.c.l.b16 %v96
    %v595 = vunpack.c.h.b16 %v96
    %v596 = vunpack.c.l.b16 %v97
    %v597 = vunpack.c.h.b16 %v97
    %v598 = vunpack.c.l.b16 %v98
    %v599 = vunpack.c.h.b16 %v98
    %v600 = vunpack.c.l.b16 %v99
    %v601 = vunpack.c.h.b16 %v99
    %v602 = vunpack.c.l.b16 %v100
    %v603 = vunpack.c.h.b16 %v100
    %v604 = vunpack.c.l.b16 %v101
    %v605 = vunpack.c.h.b16 %v101
    %v606 = vunpack.c.l.b16 %v102
    %v607 = vunpack.c.h.b16 %v102
    %v608 = vunpack.c.l.b16 %v103
    %v609 = vunpack.c.h.b16 %v103
    %v610 = vunpack.c.l.b16 %v104
    %v611 = vunpack.c.h.b16 %v104
    %v612 = vunpack.c.l.b16 %v105
    %v613 = vunpack.c.h.b16 %v105
    %v614 = vunpack.c.l.b16 %v106
    %v615 = vunpack.c.h.b16 %v106
    %v616 = vunpack.c.l.b16 %v107
    %v617 = vunpack.c.h.b16 %v107
    %v618 = vunpack.c.l.b16 %v108
    %v619 = vunpack.c.h.b16 %v108
    %v620 = vunpack.c.l.b16 %v109
    %v621 = vunpack.c.h.b16 %v109
    %v622 = vunpack.c.l.b16 %v110
    %v623 = vunpack.c.h.b16 %v110
    %v624 = vunpack.c.l.b16 %v111
    %v625 = vunpack.c.h.b16 %v111
    %v626 = vunpack.c.l.b16 %v112
    %v627 = vunpack.c.h.b16 %v112
    %v628 = vunpack.c.l.b16 %v113
    %v629 = vunpack.c.h.b16 %v113
    %v630 = vunpack.c.l.b16 %v114
    %v631 = vunpack.c.h.b16 %v114
    %v632 = vunpack.c.l.b16 %v115
    %v633 = vunpack.c.h.b16 %v115
    %v634 = vunpack.c.l.b16 %v116
    %v635 = vunpack.c.h.b16 %v116
    %v636 = vunpack.c.l.b16 %v117
    %v637 = vunpack.c.h.b16 %v117
    %v638 = vunpack.c.l.b16 %v118
    %v639 = vunpack.c.h.b16 %v118
    %v640 = vunpack.c.l.b16 %v119
    %v641 = vunpack.c.h.b16 %v119
    %v642 = vunpack.c.l.b16 %v120
    %v643 = vunpack.c.h.b16 %v120
    %v644 = vunpack.c.l.b16 %v121
    %v645 = vunpack.c.h.b16 %v121
    %v646 = vunpack.c.l.b16 %v122
    %v647 = vunpack.c.h.b16 %v122
    %v648 = vunpack.c.l.b16 %v123
    %v649 = vunpack.c.h.b16 %v123
    %v650 = vunpack.c.l.b16 %v124
    %v651 = vunpack.c.h.b16 %v124
    %v652 = vunpack.c.l.b16 %v125
    %v653 = vunpack.c.h.b16 %v125
    %v654 = vunpack.c.l.b16 %v126
    %v655 = vunpack.c.h.b16 %v126
    %v656 = vunpack.c.l.b16 %v127
    %v657 = vunpack.c.h.b16 %v127
    %v658 = vunpack.c.l.b16 %v128
    %v659 = vunpack.c.h.b16 %v128
    %v660 = vunpack.c.l.b16 %v129
    %v661 = vunpack.c.h.b16 %v129
    %v662 = vunpack.c.l.b16 %v130
    %v663 = vunpack.c.h.b16 %v130
    %v664 = vunpack.c.l.b16 %v131
    %v665 = vunpack.c.h.b16 %v131
    %v666 = vunpack.c.l.b16 %v132
    %v667 = vunpack.c.h.b16 %v132
    %v668 = vunpack.c.l.b16 %v133
    %v669 = vunpack.c.h.b16 %v133
    %v670 = vunpack.c.l.b16 %v134
    %v671 = vunpack.c.h.b16 %v134
    %v672 = vunpack.c.l.b16 %v135
    %v673 = vunpack.c.h.b16 %v135
    %v674 = vunpack.c.l.b16 %v136
    %v675 = vunpack.c.h.b16 %v136
    %v676 = vunpack.c.l.b16 %v137
    %v677 = vunpack.c.h.b16 %v137
    %v678 = vunpack.c.l.b16 %v138
    %v679 = vunpack.c.h.b16 %v138
    %v680 = vunpack.c.l.b16 %v139
    %v681 = vunpack.c.h.b16 %v139
    %v682 = vunpack.c.l.b16 %v140
    %v683 = vunpack.c.h.b16 %v140
    %v684 = vunpack.c.l.b16 %v141
    %v685 = vunpack.c.h.b16 %v141
    %v686 = vunpack.c.l.b16 %v142
    %v687 = vunpack.c.h.b16 %v142
    %v688 = vunpack.c.l.b16 %v143
    %v689 = vunpack.c.h.b16 %v143
    %v690 = vunpack.c.l.b16 %v144
    %v691 = vunpack.c.h.b16 %v144
    %v692 = vunpack.c.l.b16 %v145
    %v693 = vunpack.c.h.b16 %v145
    %v694 = vunpack.c.l.b16 %v146
    %v695 = vunpack.c.h.b16 %v146
    %v696 = vunpack.c.l.b16 %v147
    %v697 = vunpack.c.h.b16 %v147
    %v698 = vunpack.c.l.b16 %v148
    %v699 = vunpack.c.h.b16 %v148
    %v700 = vunpack.c.l.b16 %v149
    %v701 = vunpack.c.h.b16 %v149
    %v702 = vunpack.c.l.b16 %v150
    %v703 = vunpack.c.h.b16 %v150
    %v704 = vunpack.c.l.b16 %v151
    %v705 = vunpack.c.h.b16 %v151
    %v706 = vunpack.c.l.b16 %v152
    %v707 = vunpack.c.h.b16 %v152
    %v708 = vunpack.c.l.b16 %v153
    %v709 = vunpack.c.h.b16 %v153
    %v710 = vunpack.c.l.b16 %v154
    %v711 = vunpack.c.h.b16 %v154
    %v712 = vunpack.c.l.b16 %v155
    %v713 = vunpack.c.h.b16 %v155
    %v714 = vunpack.c.l.b16 %v156
    %v715 = vunpack.c.h.b16 %v156
    %v716 = vunpack.c.l.b16 %v157
    %v717 = vunpack.c.h.b16 %v157
    %v718 = vunpack.c.l.b16 %v158
    %v719 = vunpack.c.h.b16 %v158
    %v720 = vunpack.c.l.b16 %v159
    %v721 = vunpack.c.h.b16 %v159
    %v722 = vunpack.c.l.b16 %v160
    %v723 = vunpack.c.h.b16 %v160
    %v724 = vunpack.c.l.b16 %v161
    %v725 = vunpack.c.h.b16 %v161
    %v726 = vunpack.c.l.b16 %v162
    %v727 = vunpack.c.h.b16 %v162
    %v728 = vunpack.c.l.b16 %v163
    %v729 = vunpack.c.h.b16 %v163
    %v730 = vunpack.c.l.b16 %v164
    %v731 = vunpack.c.h.b16 %v164
    %v732 = vunpack.c.l.b16 %v165
    %v733 = vunpack.c.h.b16 %v165
    %v734 = vunpack.c.l.b16 %v166
    %v735 = vunpack.c.h.b16 %v166
    %v736 = vunpack.c.l.b16 %v167
    %v737 = vunpack.c.h.b16 %v167
    %v738 = vunpack.c.l.b16 %v168
    %v739 = vunpack.c.h.b16 %v168
    %v740 = vunpack.c.l.b16 %v169
    %v741 = vunpack.c.h.b16 %v169
    %v742 = vunpack.c.l.b16 %v170
    %v743 = vunpack.c.h.b16 %v170
    %v744 = vunpack.c.l.b16 %v171
    %v745 = vunpack.c.h.b16 %v171
    %v746 = vunpack.c.l.b16 %v172
    %v747 = vunpack.c.h.b16 %v172
    %v748 = vunpack.c.l.b16 %v173
    %v749 = vunpack.c.h.b16 %v173
    %v750 = vunpack.c.l.b16 %v174
    %v751 = vunpack.c.h.b16 %v174
    %v752 = vunpack.c.l.b16 %v175
    %v753 = vunpack.c.h.b16 %v175
    %v754 = vunpack.c.l.b16 %v176
    %v755 = vunpack.c.h.b16 %v176
    %v756 = vunpack.c.l.b16 %v177
    %v757 = vunpack.c.h.b16 %v177
    %v758 = vunpack.c.l.b16 %v178
    %v759 = vunpack.c.h.b16 %v178
    %v760 = vunpack.c.l.b16 %v179
    %v761 = vunpack.c.h.b16 %v179
    %v762 = vunpack.c.l.b16 %v180
    %v763 = vunpack.c.h.b16 %v180
    %v764 = vunpack.c.l.b16 %v181
    %v765 = vunpack.c.h.b16 %v181
    %v766 = vunpack.c.l.b16 %v182
    %v767 = vunpack.c.h.b16 %v182
    %v768 = vunpack.c.l.b16 %v183
    %v769 = vunpack.c.h.b16 %v183
    %v770 = vunpack.c.l.b16 %v184
    %v771 = vunpack.c.h.b16 %v184
    %v772 = vunpack.c.l.b16 %v185
    %v773 = vunpack.c.h.b16 %v185
    %v774 = vunpack.c.l.b16 %v186
    %v775 = vunpack.c.h.b16 %v186
    %v776 = vunpack.c.l.b16 %v187
    %v777 = vunpack.c.h.b16 %v187
    %v778 = vunpack.c.l.b16 %v188
    %v779 = vunpack.c.h.b16 %v188
    %v780 = vunpack.c.l.b16 %v189
    %v781 = vunpack.c.h.b16 %v189
    %v782 = vunpack.c.l.b16 %v190
    %v783 = vunpack.c.h.b16 %v190
    %v784 = vunpack.c.l.b16 %v191
    %v785 = vunpack.c.h.b16 %v191
    %v786 = vunpack.c.l.b16 %v192
    %v787 = vunpack.c.h.b16 %v192
    %v788 = vunpack.c.l.b16 %v193
    %v789 = vunpack.c.h.b16 %v193
    %v790 = vunpack.c.l.b16 %v194
    %v791 = vunpack.c.h.b16 %v194
    %v792 = vunpack.c.l.b16 %v195
    %v793 = vunpack.c.h.b16 %v195
    %v794 = vunpack.c.l.b16 %v196
    %v795 = vunpack.c.h.b16 %v196
    %v796 = vunpack.c.l.b16 %v197
    %v797 = vunpack.c.h.b16 %v197
    %v798 = vunpack.c.l.b16 %v198
    %v799 = vunpack.c.h.b16 %v198
    %v800 = vunpack.c.l.b16 %v199
    %v801 = vunpack.c.h.b16 %v199
    %v802 = vunpack.c.l.b16 %v200
    %v803 = vunpack.c.h.b16 %v200
    %v804 = vunpack.c.l.b16 %v201
    %v805 = vunpack.c.h.b16 %v201
    %v806 = vunpack.c.l.b16 %v202
    %v807 = vunpack.c.h.b16 %v202
    %v808 = vunpack.c.l.b16 %v203
    %v809 = vunpack.c.h.b16 %v203
    %v810 = vunpack.c.l.b16 %v204
    %v811 = vunpack.c.h.b16 %v204
    %v812 = vunpack.c.l.b16 %v205
    %v813 = vunpack.c.h.b16 %v205
    %v814 = vunpack.c.l.b16 %v206
    %v815 = vunpack.c.h.b16 %v206
    %v816 = vunpack.c.l.b16 %v207
    %v817 = vunpack.c.h.b16 %v207
    %v818 = vunpack.c.l.b16 %v208
    %v819 = vunpack.c.h.b16 %v208
    %v820 = vunpack.c.l.b16 %v209
    %v821 = vunpack.c.h.b16 %v209
    %v822 = vunpack.c.l.b16 %v210
    %v823 = vunpack.c.h.b16 %v210
    %v824 = vunpack.c.l.b16 %v211
    %v825 = vunpack.c.h.b16 %v211
    %v826 = vunpack.c.l.b16 %v212
    %v827 = vunpack.c.h.b16 %v212
    %v828 = vunpack.c.l.b16 %v213
    %v829 = vunpack.c.h.b16 %v213
    %v830 = vunpack.c.l.b16 %v214
    %v831 = vunpack.c.h.b16 %v214
    %v832 = vunpack.c.l.b16 %v215
    %v833 = vunpack.c.h.b16 %v215
    %v834 = vunpack.c.l.b16 %v216
    %v835 = vunpack.c.h.b16 %v216
    %v836 = vunpack.c.l.b16 %v217
    %v837 = vunpack.c.h.b16 %v217
    %v838 = vunpack.c.l.b16 %v218
    %v839 = vunpack.c.h.b16 %v218
    %v840 = vunpack.c.l.b16 %v219
    %v841 = vunpack.c.h.b16 %v219
    %v842 = vunpack.c.l.b16 %v220
    %v843 = vunpack.c.h.b16 %v220
    %v844 = vunpack.c.l.b16 %v221
    %v845 = vunpack.c.h.b16 %v221
    %v846 = vunpack.c.l.b16 %v222
    %v847 = vunpack.c.h.b16 %v222
    %v848 = vpack.c.b16 %v452, %v448
    %v849 = vpack.c.b16 %v453, %v449
    %v850 = vpack.c.b16 %v454, %v450
    %v851 = vpack.c.b16 %v455, %v451
    %v852 = vpack.c.b16 %v460, %v456
    %v853 = vpack.c.b16 %v461, %v457
    %v854 = vpack.c.b16 %v462, %v458
    %v855 = vpack.c.b16 %v463, %v459
    %v856 = vpack.c.b16 %v468, %v464
    %v857 = vpack.c.b16 %v469, %v465
    %v858 = vpack.c.b16 %v470, %v466
    %v859 = vpack.c.b16 %v471, %v467
    %v860 = vpack.c.b16 %v476, %v472
    %v861 = vpack.c.b16 %v477, %v473
    %v862 = vpack.c.b16 %v478, %v474
    %v863 = vpack.c.b16 %v479, %v475
    %v864 = vpack.c.b16 %v484, %v480
    %v865 = vpack.c.b16 %v485, %v481
    %v866 = vpack.c.b16 %v486, %v482
    %v867 = vpack.c.b16 %v487, %v483
    %v868 = vpack.c.b16 %v492, %v488
    %v869 = vpack.c.b16 %v493, %v489
    %v870 = vpack.c.b16 %v494, %v490
    %v871 = vpack.c.b16 %v495, %v491
    %v872 = vpack.c.b16 %v500, %v496
    %v873 = vpack.c.b16 %v501, %v497
    %v874 = vpack.c.b16 %v502, %v498
    %v875 = vpack.c.b16 %v503, %v499
    %v876 = vpack.c.b16 %v508, %v504
    %v877 = vpack.c.b16 %v509, %v505
    %v878 = vpack.c.b16 %v510, %v506
    %v879 = vpack.c.b16 %v511, %v507
    %v880 = vpack.c.b16 %v516, %v512
    %v881 = vpack.c.b16 %v517, %v513
    %v882 = vpack.c.b16 %v518, %v514
    %v883 = vpack.c.b16 %v519, %v515
    %v884 = vpack.c.b16 %v524, %v520
    %v885 = vpack.c.b16 %v525, %v521
    %v886 = vpack.c.b16 %v526, %v522
    %v887 = vpack.c.b16 %v527, %v523
    %v888 = vpack.c.b16 %v532, %v528
    %v889 = vpack.c.b16 %v533, %v529
    %v890 = vpack.c.b16 %v534, %v530
    %v891 = vpack.c.b16 %v535, %v531
    %v892 = vpack.c.b16 %v540, %v536
    %v893 = vpack.c.b16 %v541, %v537
    %v894 = vpack.c.b16 %v542, %v538
    %v895 = vpack.c.b16 %v543, %v539
    %v896 = vpack.c.b16 %v548, %v544
    %v897 = vpack.c.b16 %v549, %v545
    %v898 = vpack.c.b16 %v550, %v546
    %v899 = vpack.c.b16 %v551, %v547
    %v900 = vpack.c.b16 %v556, %v552
    %v901 = vpack.c.b16 %v557, %v553
    %v902 = vpack.c.b16 %v558, %v554
    %v903 = vpack.c.b16 %v559, %v555
    %v904 = vpack.c.b16 %v564, %v560
    %v905 = vpack.c.b16 %v565, %v561
    %v906 = vpack.c.b16 %v566, %v562
    %v907 = vpack.c.b16 %v567, %v563
    %v908 = vpack.c.b16 %v572, %v568
    %v909 = vpack.c.b16 %v573, %v569
    %v910 = vpack.c.b16 %v574, %v570
    %v911 = vpack.c.b16 %v575, %v571
    %v912 = vpack.c.b16 %v580, %v576
    %v913 = vpack.c.b16 %v581, %v577
    %v914 = vpack.c.b16 %v582, %v578
    %v915 = vpack.c.b16 %v583, %v579
    %v916 = vpack.c.b16 %v588, %v584
    %v917 = vpack.c.b16 %v589, %v585
    %v918 = vpack.c.b16 %v590, %v586
    %v919 = vpack.c.b16 %v591, %v587
    %v920 = vpack.c.b16 %v596, %v592
    %v921 = vpack.c.b16 %v597, %v593
    %v922 = vpack.c.b16 %v598, %v594
    %v923 = vpack.c.b16 %v599, %v595
    %v924 = vpack.c.b16 %v604, %v600
    %v925 = vpack.c.b16 %v605, %v601
    %v926 = vpack.c.b16 %v606, %v602
    %v927 = vpack.c.b16 %v607, %v603
    %v928 = vpack.c.b16 %v612, %v608
    %v929 = vpack.c.b16 %v613, %v609
    %v930 = vpack.c.b16 %v614, %v610
    %v931 = vpack.c.b16 %v615, %v611
    %v932 = vpack.c.b16 %v620, %v616
    %v933 = vpack.c.b16 %v621, %v617
    %v934 = vpack.c.b16 %v622, %v618
    %v935 = vpack.c.b16 %v623, %v619
    %v936 = vpack.c.b16 %v628, %v624
    %v937 = vpack.c.b16 %v629, %v625
    %v938 = vpack.c.b16 %v630, %v626
    %v939 = vpack.c.b16 %v631, %v627
    %v940 = vpack.c.b16 %v636, %v632
    %v941 = vpack.c.b16 %v637, %v633
    %v942 = vpack.c.b16 %v638, %v634
    %v943 = vpack.c.b16 %v639, %v635
    %v944 = vpack.c.b16 %v644, %v640
    %v945 = vpack.c.b16 %v645, %v641
    %v946 = vpack.c.b16 %v646, %v642
    %v947 = vpack.c.b16 %v647, %v643
    %v948 = vpack.c.b16 %v652, %v648
    %v949 = vpack.c.b16 %v653, %v649
    %v950 = vpack.c.b16 %v654, %v650
    %v951 = vpack.c.b16 %v655, %v651
    %v952 = vpack.c.b16 %v660, %v656
    %v953 = vpack.c.b16 %v661, %v657
    %v954 = vpack.c.b16 %v662, %v658
    %v955 = vpack.c.b16 %v663, %v659
    %v956 = vpack.c.b16 %v668, %v664
    %v957 = vpack.c.b16 %v669, %v665
    %v958 = vpack.c.b16 %v670, %v666
    %v959 = vpack.c.b16 %v671, %v667
    %v960 = vpack.c.b16 %v676, %v672
    %v961 = vpack.c.b16 %v677, %v673
    %v962 = vpack.c.b16 %v678, %v674
    %v963 = vpack.c.b16 %v679, %v675
    %v964 = vpack.c.b16 %v684, %v680
    %v965 = vpack.c.b16 %v685, %v681
    %v966 = vpack.c.b16 %v686, %v682
    %v967 = vpack.c.b16 %v687, %v683
    %v968 = vpack.c.b16 %v692, %v688
    %v969 = vpack.c.b16 %v693, %v689
    %v970 = vpack.c.b16 %v694, %v690
    %v971 = vpack.c.b16 %v695, %v691
    %v972 = vpack.c.b16 %v700, %v696
    %v973 = vpack.c.b16 %v701, %v697
    %v974 = vpack.c.b16 %v702, %v698
    %v975 = vpack.c.b16 %v703, %v699
    %v976 = vpack.c.b16 %v708, %v704
    %v977 = vpack.c.b16 %v709, %v705
    %v978 = vpack.c.b16 %v710, %v706
    %v979 = vpack.c.b16 %v711, %v707
    %v980 = vpack.c.b16 %v716, %v712
    %v981 = vpack.c.b16 %v717, %v713
    %v982 = vpack.c.b16 %v718, %v714
    %v983 = vpack.c.b16 %v719, %v715
    %v984 = vpack.c.b16 %v724, %v720
    %v985 = vpack.c.b16 %v725, %v721
    %v986 = vpack.c.b16 %v726, %v722
    %v987 = vpack.c.b16 %v727, %v723
    %v988 = vpack.c.b16 %v732, %v728
    %v989 = vpack.c.b16 %v733, %v729
    %v990 = vpack.c.b16 %v734, %v730
    %v991 = vpack.c.b16 %v735, %v731
    %v992 = vpack.c.b16 %v740, %v736
    %v993 = vpack.c.b16 %v741, %v737
    %v994 = vpack.c.b16 %v742, %v738
    %v995 = vpack.c.b16 %v743, %v739
    %v996 = vpack.c.b16 %v748, %v744
    %v997 = vpack.c.b16 %v749, %v745
    %v998 = vpack.c.b16 %v750, %v746
    %v999 = vpack.c.b16 %v751, %v747
    %v1000 = vpack.c.b16 %v756, %v752
    %v1001 = vpack.c.b16 %v757, %v753
    %v1002 = vpack.c.b16 %v758, %v754
    %v1003 = vpack.c.b16 %v759, %v755
    %v1004 = vpack.c.b16 %v764, %v760
    %v1005 = vpack.c.b16 %v765, %v761
    %v1006 = vpack.c.b16 %v766, %v762
    %v1007 = vpack.c.b16 %v767, %v763
    %v1008 = vpack.c.b16 %v772, %v768
    %v1009 = vpack.c.b16 %v773, %v769
    %v1010 = vpack.c.b16 %v774, %v770
    %v1011 = vpack.c.b16 %v775, %v771
    %v1012 = vpack.c.b16 %v780, %v776
    %v1013 = vpack.c.b16 %v781, %v777
    %v1014 = vpack.c.b16 %v782, %v778
    %v1015 = vpack.c.b16 %v783, %v779
    %v1016 = vpack.c.b16 %v788, %v784
    %v1017 = vpack.c.b16 %v789, %v785
    %v1018 = vpack.c.b16 %v790, %v786
    %v1019 = vpack.c.b16 %v791, %v787
    %v1020 = vpack.c.b16 %v796, %v792
    %v1021 = vpack.c.b16 %v797, %v793
    %v1022 = vpack.c.b16 %v798, %v794
    %v1023 = vpack.c.b16 %v799, %v795
    %v1024 = vpack.c.b16 %v804, %v800
    %v1025 = vpack.c.b16 %v805, %v801
    %v1026 = vpack.c.b16 %v806, %v802
    %v1027 = vpack.c.b16 %v807, %v803
    %v1028 = vpack.c.b16 %v812, %v808
    %v1029 = vpack.c.b16 %v813, %v809
    %v1030 = vpack.c.b16 %v814, %v810
    %v1031 = vpack.c.b16 %v815, %v811
    %v1032 = vpack.c.b16 %v820, %v816
    %v1033 = vpack.c.b16 %v821, %v817
    %v1034 = vpack.c.b16 %v822, %v818
    %v1035 = vpack.c.b16 %v823, %v819
    %v1036 = vpack.c.b16 %v828, %v824
    %v1037 = vpack.c.b16 %v829, %v825
    %v1038 = vpack.c.b16 %v830, %v826
    %v1039 = vpack.c.b16 %v831, %v827
    %v1040 = vpack.c.b16 %v836, %v832
    %v1041 = vpack.c.b16 %v837, %v833
    %v1042 = vpack.c.b16 %v838, %v834
    %v1043 = vpack.c.b16 %v839, %v835
    %v1044 = vpack.c.b16 %v844, %v840
    %v1045 = vpack.c.b16 %v845, %v841
    %v1046 = vpack.c.b16 %v846, %v842
    %v1047 = vpack.c.b16 %v847, %v843
    %vm1248 = vcmask 261120
    %v1249 = vsel %vm1248, %v241, 0
    %1251 = vmatpush.bf16.msra.mxu0 %v876
    %1252 = vmatpush.bf16.msra.mxu0 %v872
    %1253 = vmatpush.bf16.msra.mxu0 %v868
    %1254 = vmatpush.bf16.msra.mxu0 %v864
    %1255 = vmatpush.bf16.msra.mxu0 %v860
    %1256 = vmatpush.bf16.msra.mxu0 %v856
    %1257 = vmatpush.bf16.msra.mxu0 %v852
    %1258 = vmatpush.bf16.msra.mxu0 %v848
    %1259 = vmatmul.bf16.gmra.mxu0 %v235
    %v1260 = vpop.f32.mrf.mxu0
    %v1261 = vadd.f32 %v225, %v1260
    %v1262 = vpop.f32.mrf.mxu0
    %1263 = vdwg.mxu0
    %1264 = vmatpush.bf16.msra.mxu0 %v908
    %1265 = vmatpush.bf16.msra.mxu0 %v904
    %1266 = vmatpush.bf16.msra.mxu0 %v900
    %1267 = vmatpush.bf16.msra.mxu0 %v896
    %1268 = vmatpush.bf16.msra.mxu0 %v892
    %1269 = vmatpush.bf16.msra.mxu0 %v888
    %1270 = vmatpush.bf16.msra.mxu0 %v884
    %1271 = vmatpush.bf16.msra.mxu0 %v880
    %1272 = vmatmul.bf16.gmra.mxu0 %v236
    %v1273 = vpop.f32.mrf.mxu0
    %v1274 = vadd.f32 %v1261, %v1273
    %v1275 = vpop.f32.mrf.mxu0
    %1276 = vdwg.mxu0
    %1277 = vmatpush.bf16.msra.mxu0 %v940
    %1278 = vmatpush.bf16.msra.mxu0 %v936
    %1279 = vmatpush.bf16.msra.mxu0 %v932
    %1280 = vmatpush.bf16.msra.mxu0 %v928
    %1281 = vmatpush.bf16.msra.mxu0 %v924
    %1282 = vmatpush.bf16.msra.mxu0 %v920
    %1283 = vmatpush.bf16.msra.mxu0 %v916
    %1284 = vmatpush.bf16.msra.mxu0 %v912
    %1285 = vmatmul.bf16.gmra.mxu0 %v237
    %v1286 = vpop.f32.mrf.mxu0
    %v1287 = vadd.f32 %v1274, %v1286
    %v1288 = vpop.f32.mrf.mxu0
    %1289 = vdwg.mxu0
    %1290 = vmatpush.bf16.msra.mxu0 %v972
    %1291 = vmatpush.bf16.msra.mxu0 %v968
    %1292 = vmatpush.bf16.msra.mxu0 %v964
    %1293 = vmatpush.bf16.msra.mxu0 %v960
    %1294 = vmatpush.bf16.msra.mxu0 %v956
    %1295 = vmatpush.bf16.msra.mxu0 %v952
    %1296 = vmatpush.bf16.msra.mxu0 %v948
    %1297 = vmatpush.bf16.msra.mxu0 %v944
    %1298 = vmatmul.bf16.gmra.mxu0 %v238
    %v1299 = vpop.f32.mrf.mxu0
    %v1300 = vadd.f32 %v1287, %v1299
    %v1301 = vpop.f32.mrf.mxu0
    %1302 = vdwg.mxu0
    %1303 = vmatpush.bf16.msra.mxu0 %v1004
    %1304 = vmatpush.bf16.msra.mxu0 %v1000
    %1305 = vmatpush.bf16.msra.mxu0 %v996
    %1306 = vmatpush.bf16.msra.mxu0 %v992
    %1307 = vmatpush.bf16.msra.mxu0 %v988
    %1308 = vmatpush.bf16.msra.mxu0 %v984
    %1309 = vmatpush.bf16.msra.mxu0 %v980
    %1310 = vmatpush.bf16.msra.mxu0 %v976
    %1311 = vmatmul.bf16.gmra.mxu0 %v239
    %v1312 = vpop.f32.mrf.mxu0
    %v1313 = vadd.f32 %v1300, %v1312
    %v1314 = vpop.f32.mrf.mxu0
    %1315 = vdwg.mxu0
    %1316 = vmatpush.bf16.msra.mxu0 %v1036
    %1317 = vmatpush.bf16.msra.mxu0 %v1032
    %1318 = vmatpush.bf16.msra.mxu0 %v1028
    %1319 = vmatpush.bf16.msra.mxu0 %v1024
    %1320 = vmatpush.bf16.msra.mxu0 %v1020
    %1321 = vmatpush.bf16.msra.mxu0 %v1016
    %1322 = vmatpush.bf16.msra.mxu0 %v1012
    %1323 = vmatpush.bf16.msra.mxu0 %v1008
    %1324 = vmatmul.bf16.gmra.mxu0 %v240
    %v1325 = vpop.f32.mrf.mxu0
    %v1326 = vadd.f32 %v1313, %v1325
    %v1327 = vpop.f32.mrf.mxu0
    %1328 = vdwg.mxu0
    %1329 = vmatpush.bf16.msra.mxu0 0
    %1330 = vmatpush.bf16.msra.mxu0 0
    %1331 = vmatpush.bf16.msra.mxu0 0
    %1332 = vmatpush.bf16.msra.mxu0 0
    %1333 = vmatpush.bf16.msra.mxu0 0
    %1334 = vmatpush.bf16.msra.mxu0 0
    %1335 = vmatpush.bf16.msra.mxu0 %v1044
    %1336 = vmatpush.bf16.msra.mxu0 %v1040
    %1337 = vmatmul.bf16.gmra.mxu0 %v1249
    %v1338 = vpop.f32.mrf.mxu0
    %v1339 = vadd.f32 %v1326, %v1338
    %v1340 = vpop.f32.mrf.mxu0
    %1341 = vdwg.mxu0
    %1342 = vmatpush.bf16.msra.mxu0 %v877
    %1343 = vmatpush.bf16.msra.mxu0 %v873
    %1344 = vmatpush.bf16.msra.mxu0 %v869
    %1345 = vmatpush.bf16.msra.mxu0 %v865
    %1346 = vmatpush.bf16.msra.mxu0 %v861
    %1347 = vmatpush.bf16.msra.mxu0 %v857
    %1348 = vmatpush.bf16.msra.mxu0 %v853
    %1349 = vmatpush.bf16.msra.mxu0 %v849
    %1350 = vmatmul.bf16.gmra.mxu0 %v235
    %v1351 = vpop.f32.mrf.mxu0
    %v1352 = vadd.f32 %v226, %v1351
    %v1353 = vpop.f32.mrf.mxu0
    %1354 = vdwg.mxu0
    %1355 = vmatpush.bf16.msra.mxu0 %v909
    %1356 = vmatpush.bf16.msra.mxu0 %v905
    %1357 = vmatpush.bf16.msra.mxu0 %v901
    %1358 = vmatpush.bf16.msra.mxu0 %v897
    %1359 = vmatpush.bf16.msra.mxu0 %v893
    %1360 = vmatpush.bf16.msra.mxu0 %v889
    %1361 = vmatpush.bf16.msra.mxu0 %v885
    %1362 = vmatpush.bf16.msra.mxu0 %v881
    %1363 = vmatmul.bf16.gmra.mxu0 %v236
    %v1364 = vpop.f32.mrf.mxu0
    %v1365 = vadd.f32 %v1352, %v1364
    %v1366 = vpop.f32.mrf.mxu0
    %1367 = vdwg.mxu0
    %1368 = vmatpush.bf16.msra.mxu0 %v941
    %1369 = vmatpush.bf16.msra.mxu0 %v937
    %1370 = vmatpush.bf16.msra.mxu0 %v933
    %1371 = vmatpush.bf16.msra.mxu0 %v929
    %1372 = vmatpush.bf16.msra.mxu0 %v925
    %1373 = vmatpush.bf16.msra.mxu0 %v921
    %1374 = vmatpush.bf16.msra.mxu0 %v917
    %1375 = vmatpush.bf16.msra.mxu0 %v913
    %1376 = vmatmul.bf16.gmra.mxu0 %v237
    %v1377 = vpop.f32.mrf.mxu0
    %v1378 = vadd.f32 %v1365, %v1377
    %v1379 = vpop.f32.mrf.mxu0
    %1380 = vdwg.mxu0
    %1381 = vmatpush.bf16.msra.mxu0 %v973
    %1382 = vmatpush.bf16.msra.mxu0 %v969
    %1383 = vmatpush.bf16.msra.mxu0 %v965
    %1384 = vmatpush.bf16.msra.mxu0 %v961
    %1385 = vmatpush.bf16.msra.mxu0 %v957
    %1386 = vmatpush.bf16.msra.mxu0 %v953
    %1387 = vmatpush.bf16.msra.mxu0 %v949
    %1388 = vmatpush.bf16.msra.mxu0 %v945
    %1389 = vmatmul.bf16.gmra.mxu0 %v238
    %v1390 = vpop.f32.mrf.mxu0
    %v1391 = vadd.f32 %v1378, %v1390
    %v1392 = vpop.f32.mrf.mxu0
    %1393 = vdwg.mxu0
    %1394 = vmatpush.bf16.msra.mxu0 %v1005
    %1395 = vmatpush.bf16.msra.mxu0 %v1001
    %1396 = vmatpush.bf16.msra.mxu0 %v997
    %1397 = vmatpush.bf16.msra.mxu0 %v993
    %1398 = vmatpush.bf16.msra.mxu0 %v989
    %1399 = vmatpush.bf16.msra.mxu0 %v985
    %1400 = vmatpush.bf16.msra.mxu0 %v981
    %1401 = vmatpush.bf16.msra.mxu0 %v977
    %1402 = vmatmul.bf16.gmra.mxu0 %v239
    %v1403 = vpop.f32.mrf.mxu0
    %v1404 = vadd.f32 %v1391, %v1403
    %v1405 = vpop.f32.mrf.mxu0
    %1406 = vdwg.mxu0
    %1407 = vmatpush.bf16.msra.mxu0 %v1037
    %1408 = vmatpush.bf16.msra.mxu0 %v1033
    %1409 = vmatpush.bf16.msra.mxu0 %v1029
    %1410 = vmatpush.bf16.msra.mxu0 %v1025
    %1411 = vmatpush.bf16.msra.mxu0 %v1021
    %1412 = vmatpush.bf16.msra.mxu0 %v1017
    %1413 = vmatpush.bf16.msra.mxu0 %v1013
    %1414 = vmatpush.bf16.msra.mxu0 %v1009
    %1415 = vmatmul.bf16.gmra.mxu0 %v240
    %v1416 = vpop.f32.mrf.mxu0
    %v1417 = vadd.f32 %v1404, %v1416
    %v1418 = vpop.f32.mrf.mxu0
    %1419 = vdwg.mxu0
    %1420 = vmatpush.bf16.msra.mxu0 0
    %1421 = vmatpush.bf16.msra.mxu0 0
    %1422 = vmatpush.bf16.msra.mxu0 0
    %1423 = vmatpush.bf16.msra.mxu0 0
    %1424 = vmatpush.bf16.msra.mxu0 0
    %1425 = vmatpush.bf16.msra.mxu0 0
    %1426 = vmatpush.bf16.msra.mxu0 %v1045
    %1427 = vmatpush.bf16.msra.mxu0 %v1041
    %1428 = vmatmul.bf16.gmra.mxu0 %v1249
    %v1429 = vpop.f32.mrf.mxu0
    %v1430 = vadd.f32 %v1417, %v1429
    %v1431 = vpop.f32.mrf.mxu0
    %1432 = vdwg.mxu0
    %1433 = vmatpush.bf16.msra.mxu0 %v878
    %1434 = vmatpush.bf16.msra.mxu0 %v874
    %1435 = vmatpush.bf16.msra.mxu0 %v870
    %1436 = vmatpush.bf16.msra.mxu0 %v866
    %1437 = vmatpush.bf16.msra.mxu0 %v862
    %1438 = vmatpush.bf16.msra.mxu0 %v858
    %1439 = vmatpush.bf16.msra.mxu0 %v854
    %1440 = vmatpush.bf16.msra.mxu0 %v850
    %1441 = vmatmul.bf16.gmra.mxu0 %v235
    %v1442 = vpop.f32.mrf.mxu0
    %v1443 = vadd.f32 %v227, %v1442
    %v1444 = vpop.f32.mrf.mxu0
    %1445 = vdwg.mxu0
    %1446 = vmatpush.bf16.msra.mxu0 %v910
    %1447 = vmatpush.bf16.msra.mxu0 %v906
    %1448 = vmatpush.bf16.msra.mxu0 %v902
    %1449 = vmatpush.bf16.msra.mxu0 %v898
    %1450 = vmatpush.bf16.msra.mxu0 %v894
    %1451 = vmatpush.bf16.msra.mxu0 %v890
    %1452 = vmatpush.bf16.msra.mxu0 %v886
    %1453 = vmatpush.bf16.msra.mxu0 %v882
    %1454 = vmatmul.bf16.gmra.mxu0 %v236
    %v1455 = vpop.f32.mrf.mxu0
    %v1456 = vadd.f32 %v1443, %v1455
    %v1457 = vpop.f32.mrf.mxu0
    %1458 = vdwg.mxu0
    %1459 = vmatpush.bf16.msra.mxu0 %v942
    %1460 = vmatpush.bf16.msra.mxu0 %v938
    %1461 = vmatpush.bf16.msra.mxu0 %v934
    %1462 = vmatpush.bf16.msra.mxu0 %v930
    %1463 = vmatpush.bf16.msra.mxu0 %v926
    %1464 = vmatpush.bf16.msra.mxu0 %v922
    %1465 = vmatpush.bf16.msra.mxu0 %v918
    %1466 = vmatpush.bf16.msra.mxu0 %v914
    %1467 = vmatmul.bf16.gmra.mxu0 %v237
    %v1468 = vpop.f32.mrf.mxu0
    %v1469 = vadd.f32 %v1456, %v1468
    %v1470 = vpop.f32.mrf.mxu0
    %1471 = vdwg.mxu0
    %1472 = vmatpush.bf16.msra.mxu0 %v974
    %1473 = vmatpush.bf16.msra.mxu0 %v970
    %1474 = vmatpush.bf16.msra.mxu0 %v966
    %1475 = vmatpush.bf16.msra.mxu0 %v962
    %1476 = vmatpush.bf16.msra.mxu0 %v958
    %1477 = vmatpush.bf16.msra.mxu0 %v954
    %1478 = vmatpush.bf16.msra.mxu0 %v950
    %1479 = vmatpush.bf16.msra.mxu0 %v946
    %1480 = vmatmul.bf16.gmra.mxu0 %v238
    %v1481 = vpop.f32.mrf.mxu0
    %v1482 = vadd.f32 %v1469, %v1481
    %v1483 = vpop.f32.mrf.mxu0
    %1484 = vdwg.mxu0
    %1485 = vmatpush.bf16.msra.mxu0 %v1006
    %1486 = vmatpush.bf16.msra.mxu0 %v1002
    %1487 = vmatpush.bf16.msra.mxu0 %v998
    %1488 = vmatpush.bf16.msra.mxu0 %v994
    %1489 = vmatpush.bf16.msra.mxu0 %v990
    %1490 = vmatpush.bf16.msra.mxu0 %v986
    %1491 = vmatpush.bf16.msra.mxu0 %v982
    %1492 = vmatpush.bf16.msra.mxu0 %v978
    %1493 = vmatmul.bf16.gmra.mxu0 %v239
    %v1494 = vpop.f32.mrf.mxu0
    %v1495 = vadd.f32 %v1482, %v1494
    %v1496 = vpop.f32.mrf.mxu0
    %1497 = vdwg.mxu0
    %1498 = vmatpush.bf16.msra.mxu0 %v1038
    %1499 = vmatpush.bf16.msra.mxu0 %v1034
    %1500 = vmatpush.bf16.msra.mxu0 %v1030
    %1501 = vmatpush.bf16.msra.mxu0 %v1026
    %1502 = vmatpush.bf16.msra.mxu0 %v1022
    %1503 = vmatpush.bf16.msra.mxu0 %v1018
    %1504 = vmatpush.bf16.msra.mxu0 %v1014
    %1505 = vmatpush.bf16.msra.mxu0 %v1010
    %1506 = vmatmul.bf16.gmra.mxu0 %v240
    %v1507 = vpop.f32.mrf.mxu0
    %v1508 = vadd.f32 %v1495, %v1507
    %v1509 = vpop.f32.mrf.mxu0
    %1510 = vdwg.mxu0
    %1511 = vmatpush.bf16.msra.mxu0 0
    %1512 = vmatpush.bf16.msra.mxu0 0
    %1513 = vmatpush.bf16.msra.mxu0 0
    %1514 = vmatpush.bf16.msra.mxu0 0
    %1515 = vmatpush.bf16.msra.mxu0 0
    %1516 = vmatpush.bf16.msra.mxu0 0
    %1517 = vmatpush.bf16.msra.mxu0 %v1046
    %1518 = vmatpush.bf16.msra.mxu0 %v1042
    %1519 = vmatmul.bf16.gmra.mxu0 %v1249
    %v1520 = vpop.f32.mrf.mxu0
    %v1521 = vadd.f32 %v1508, %v1520
    %v1522 = vpop.f32.mrf.mxu0
    %1523 = vdwg.mxu0
    %1524 = vmatpush.bf16.msra.mxu0 %v879
    %1525 = vmatpush.bf16.msra.mxu0 %v875
    %1526 = vmatpush.bf16.msra.mxu0 %v871
    %1527 = vmatpush.bf16.msra.mxu0 %v867
    %1528 = vmatpush.bf16.msra.mxu0 %v863
    %1529 = vmatpush.bf16.msra.mxu0 %v859
    %1530 = vmatpush.bf16.msra.mxu0 %v855
    %1531 = vmatpush.bf16.msra.mxu0 %v851
    %1532 = vmatmul.bf16.gmra.mxu0 %v235
    %v1533 = vpop.f32.mrf.mxu0
    %v1534 = vadd.f32 %v228, %v1533
    %v1535 = vpop.f32.mrf.mxu0
    %1536 = vdwg.mxu0
    %1537 = vmatpush.bf16.msra.mxu0 %v911
    %1538 = vmatpush.bf16.msra.mxu0 %v907
    %1539 = vmatpush.bf16.msra.mxu0 %v903
    %1540 = vmatpush.bf16.msra.mxu0 %v899
    %1541 = vmatpush.bf16.msra.mxu0 %v895
    %1542 = vmatpush.bf16.msra.mxu0 %v891
    %1543 = vmatpush.bf16.msra.mxu0 %v887
    %1544 = vmatpush.bf16.msra.mxu0 %v883
    %1545 = vmatmul.bf16.gmra.mxu0 %v236
    %v1546 = vpop.f32.mrf.mxu0
    %v1547 = vadd.f32 %v1534, %v1546
    %v1548 = vpop.f32.mrf.mxu0
    %1549 = vdwg.mxu0
    %1550 = vmatpush.bf16.msra.mxu0 %v943
    %1551 = vmatpush.bf16.msra.mxu0 %v939
    %1552 = vmatpush.bf16.msra.mxu0 %v935
    %1553 = vmatpush.bf16.msra.mxu0 %v931
    %1554 = vmatpush.bf16.msra.mxu0 %v927
    %1555 = vmatpush.bf16.msra.mxu0 %v923
    %1556 = vmatpush.bf16.msra.mxu0 %v919
    %1557 = vmatpush.bf16.msra.mxu0 %v915
    %1558 = vmatmul.bf16.gmra.mxu0 %v237
    %v1559 = vpop.f32.mrf.mxu0
    %v1560 = vadd.f32 %v1547, %v1559
    %v1561 = vpop.f32.mrf.mxu0
    %1562 = vdwg.mxu0
    %1563 = vmatpush.bf16.msra.mxu0 %v975
    %1564 = vmatpush.bf16.msra.mxu0 %v971
    %1565 = vmatpush.bf16.msra.mxu0 %v967
    %1566 = vmatpush.bf16.msra.mxu0 %v963
    %1567 = vmatpush.bf16.msra.mxu0 %v959
    %1568 = vmatpush.bf16.msra.mxu0 %v955
    %1569 = vmatpush.bf16.msra.mxu0 %v951
    %1570 = vmatpush.bf16.msra.mxu0 %v947
    %1571 = vmatmul.bf16.gmra.mxu0 %v238
    %v1572 = vpop.f32.mrf.mxu0
    %v1573 = vadd.f32 %v1560, %v1572
    %v1574 = vpop.f32.mrf.mxu0
    %1575 = vdwg.mxu0
    %1576 = vmatpush.bf16.msra.mxu0 %v1007
    %1577 = vmatpush.bf16.msra.mxu0 %v1003
    %1578 = vmatpush.bf16.msra.mxu0 %v999
    %1579 = vmatpush.bf16.msra.mxu0 %v995
    %1580 = vmatpush.bf16.msra.mxu0 %v991
    %1581 = vmatpush.bf16.msra.mxu0 %v987
    %1582 = vmatpush.bf16.msra.mxu0 %v983
    %1583 = vmatpush.bf16.msra.mxu0 %v979
    %1584 = vmatmul.bf16.gmra.mxu0 %v239
    %v1585 = vpop.f32.mrf.mxu0
    %v1586 = vadd.f32 %v1573, %v1585
    %v1587 = vpop.f32.mrf.mxu0
    %1588 = vdwg.mxu0
    %1589 = vmatpush.bf16.msra.mxu0 %v1039
    %1590 = vmatpush.bf16.msra.mxu0 %v1035
    %1591 = vmatpush.bf16.msra.mxu0 %v1031
    %1592 = vmatpush.bf16.msra.mxu0 %v1027
    %1593 = vmatpush.bf16.msra.mxu0 %v1023
    %1594 = vmatpush.bf16.msra.mxu0 %v1019
    %1595 = vmatpush.bf16.msra.mxu0 %v1015
    %1596 = vmatpush.bf16.msra.mxu0 %v1011
    %1597 = vmatmul.bf16.gmra.mxu0 %v240
    %v1598 = vpop.f32.mrf.mxu0
    %v1599 = vadd.f32 %v1586, %v1598
    %v1600 = vpop.f32.mrf.mxu0
    %1601 = vdwg.mxu0
    %1602 = vmatpush.bf16.msra.mxu0 0
    %1603 = vmatpush.bf16.msra.mxu0 0
    %1604 = vmatpush.bf16.msra.mxu0 0
    %1605 = vmatpush.bf16.msra.mxu0 0
    %1606 = vmatpush.bf16.msra.mxu0 0
    %1607 = vmatpush.bf16.msra.mxu0 0
    %1608 = vmatpush.bf16.msra.mxu0 %v1047
    %1609 = vmatpush.bf16.msra.mxu0 %v1043
    %1610 = vmatmul.bf16.gmra.mxu0 %v1249
    %v1611 = vpop.f32.mrf.mxu0
    %v1612 = vadd.f32 %v1599, %v1611
    %v1613 = vpop.f32.mrf.mxu0
    %1614 = vdwg.mxu0
    %v1615 = vmax.f32 %v1339, 0.0
    %v1616 = vmax.f32 %v1430, 0.0
    %v1617 = vmax.f32 %v1521, 0.0
    %v1618 = vmax.f32 %v1612, 0.0
    %v1619 = vpack.c.bf16 %v1615, %v1615
    %v1620 = vpack.c.bf16 %v1616, %v1616
    %v1621 = vpack.c.bf16 %v1617, %v1617
    %v1622 = vpack.c.bf16 %v1618, %v1618
    %v1623 = vld [vmem:[%s3] sm:$0xf]
    %v1624 = vld [vmem:[%s3 + $0x4] sm:$0xf]
    %v1625 = vld [vmem:[%s3 + $0x8] sm:$0xf]
    %v1626 = vld [vmem:[%s3 + $0xc] sm:$0xf]
    %v1627 = vld [vmem:[%s3 + $0x10] sm:$0xf]
    %v1628 = vld [vmem:[%s3 + $0x14] sm:$0xf]
    %v1629 = vld [vmem:[%s3 + $0x18] sm:$0xf]
    %v1630 = vld [vmem:[%s3 + $0x1c] sm:$0xf]
    %v1631 = vld [vmem:[%s3 + $0x20] sm:$0xf]
    %v1632 = vld [vmem:[%s3 + $0x24] sm:$0xf]
    %v1633 = vld [vmem:[%s3 + $0x28] sm:$0xf]
    %v1634 = vld [vmem:[%s3 + $0x2c] sm:$0xf]
    %v1635 = vld [vmem:[%s3 + $0x30] sm:$0xf]
    %v1636 = vld [vmem:[%s3 + $0x34] sm:$0xf]
    %v1637 = vld [vmem:[%s3 + $0x38] sm:$0xf]
    %v1638 = vld [vmem:[%s3 + $0x3c] sm:$0xf]
    %v1639 = vld [vmem:[%s3 + $0x40] sm:$0xf]
    %v1640 = vld [vmem:[%s3 + $0x44] sm:$0xf]
    %v1641 = vld [vmem:[%s3 + $0x48] sm:$0xf]
    %v1642 = vld [vmem:[%s3 + $0x4c] sm:$0xf]
    %v1643 = vld [vmem:[%s3 + $0x50] sm:$0xf]
    %v1644 = vld [vmem:[%s3 + $0x54] sm:$0xf]
    %v1645 = vld [vmem:[%s3 + $0x58] sm:$0xf]
    %v1646 = vld [vmem:[%s3 + $0x5c] sm:$0xf]
    %v1647 = vld [vmem:[%s3 + $0x60] sm:$0xf]
    %v1648 = vld [vmem:[%s3 + $0x64] sm:$0xf]
    %v1649 = vld [vmem:[%s3 + $0x68] sm:$0xf]
    %v1650 = vld [vmem:[%s3 + $0x6c] sm:$0xf]
    %v1651 = vld [vmem:[%s3 + $0x70] sm:$0xf]
    %v1652 = vld [vmem:[%s3 + $0x74] sm:$0xf]
    %v1653 = vld [vmem:[%s3 + $0x78] sm:$0xf]
    %v1654 = vld [vmem:[%s3 + $0x7c] sm:$0xf]
    %v1655 = vld [vmem:[%s3 + $0x80] sm:$0xf]
    %v1656 = vld [vmem:[%s3 + $0x84] sm:$0xf]
    %v1657 = vld [vmem:[%s3 + $0x88] sm:$0xf]
    %v1658 = vld [vmem:[%s3 + $0x8c] sm:$0xf]
    %v1659 = vld [vmem:[%s3 + $0x90] sm:$0xf]
    %v1660 = vld [vmem:[%s3 + $0x94] sm:$0xf]
    %v1661 = vld [vmem:[%s3 + $0x98] sm:$0xf]
    %v1662 = vld [vmem:[%s3 + $0x9c] sm:$0xf]
    %v1663 = vld [vmem:[%s3 + $0xa0] sm:$0xf]
    %v1664 = vld [vmem:[%s3 + $0xa4] sm:$0xf]
    %v1665 = vld [vmem:[%s3 + $0xa8] sm:$0xf]
    %v1666 = vld [vmem:[%s3 + $0xac] sm:$0xf]
    %v1667 = vld [vmem:[%s3 + $0xb0] sm:$0xf]
    %v1668 = vld [vmem:[%s3 + $0xb4] sm:$0xf]
    %v1669 = vld [vmem:[%s3 + $0xb8] sm:$0xf]
    %v1670 = vld [vmem:[%s3 + $0xbc] sm:$0xf]
    %v1671 = vld [vmem:[%s3 + $0xc0] sm:$0xf]
    %v1672 = vld [vmem:[%s3 + $0xc4] sm:$0xf]
    %v1673 = vld [vmem:[%s3 + $0xc8] sm:$0xf]
    %v1674 = vld [vmem:[%s3 + $0xcc] sm:$0xf]
    %v1675 = vld [vmem:[%s3 + $0xd0] sm:$0xf]
    %v1676 = vld [vmem:[%s3 + $0xd4] sm:$0xf]
    %v1677 = vld [vmem:[%s3 + $0xd8] sm:$0xf]
    %v1678 = vld [vmem:[%s3 + $0xdc] sm:$0xf]
    %v1679 = vld [vmem:[%s3 + $0xe0] sm:$0xf]
    %v1680 = vld [vmem:[%s3 + $0xe4] sm:$0xf]
    %v1681 = vld [vmem:[%s3 + $0xe8] sm:$0xf]
    %v1682 = vld [vmem:[%s3 + $0xec] sm:$0xf]
    %v1683 = vld [vmem:[%s3 + $0xf0] sm:$0xf]
    %v1684 = vld [vmem:[%s3 + $0xf4] sm:$0xf]
    %v1685 = vld [vmem:[%s3 + $0xf8] sm:$0x3]
    %v1686 = vld [vmem:[%s4] sm:$0x1]
    %v1688 = vperm.slane %v1686, 0
    %v1753 = vunpack.c.l.b16 %v1623
    %v1754 = vunpack.c.l.b16 %v1624
    %v1755 = vunpack.c.l.b16 %v1625
    %v1756 = vunpack.c.l.b16 %v1626
    %v1757 = vunpack.c.l.b16 %v1627
    %v1758 = vunpack.c.l.b16 %v1628
    %v1759 = vunpack.c.l.b16 %v1629
    %v1760 = vunpack.c.l.b16 %v1630
    %v1761 = vunpack.c.l.b16 %v1631
    %v1762 = vunpack.c.l.b16 %v1632
    %v1763 = vunpack.c.l.b16 %v1633
    %v1764 = vunpack.c.l.b16 %v1634
    %v1765 = vunpack.c.l.b16 %v1635
    %v1766 = vunpack.c.l.b16 %v1636
    %v1767 = vunpack.c.l.b16 %v1637
    %v1768 = vunpack.c.l.b16 %v1638
    %v1769 = vunpack.c.l.b16 %v1639
    %v1770 = vunpack.c.l.b16 %v1640
    %v1771 = vunpack.c.l.b16 %v1641
    %v1772 = vunpack.c.l.b16 %v1642
    %v1773 = vunpack.c.l.b16 %v1643
    %v1774 = vunpack.c.l.b16 %v1644
    %v1775 = vunpack.c.l.b16 %v1645
    %v1776 = vunpack.c.l.b16 %v1646
    %v1777 = vunpack.c.l.b16 %v1647
    %v1778 = vunpack.c.l.b16 %v1648
    %v1779 = vunpack.c.l.b16 %v1649
    %v1780 = vunpack.c.l.b16 %v1650
    %v1781 = vunpack.c.l.b16 %v1651
    %v1782 = vunpack.c.l.b16 %v1652
    %v1783 = vunpack.c.l.b16 %v1653
    %v1784 = vunpack.c.l.b16 %v1654
    %v1785 = vunpack.c.l.b16 %v1655
    %v1786 = vunpack.c.l.b16 %v1656
    %v1787 = vunpack.c.l.b16 %v1657
    %v1788 = vunpack.c.l.b16 %v1658
    %v1789 = vunpack.c.l.b16 %v1659
    %v1790 = vunpack.c.l.b16 %v1660
    %v1791 = vunpack.c.l.b16 %v1661
    %v1792 = vunpack.c.l.b16 %v1662
    %v1793 = vunpack.c.l.b16 %v1663
    %v1794 = vunpack.c.l.b16 %v1664
    %v1795 = vunpack.c.l.b16 %v1665
    %v1796 = vunpack.c.l.b16 %v1666
    %v1797 = vunpack.c.l.b16 %v1667
    %v1798 = vunpack.c.l.b16 %v1668
    %v1799 = vunpack.c.l.b16 %v1669
    %v1800 = vunpack.c.l.b16 %v1670
    %v1801 = vunpack.c.l.b16 %v1671
    %v1802 = vunpack.c.l.b16 %v1672
    %v1803 = vunpack.c.l.b16 %v1673
    %v1804 = vunpack.c.l.b16 %v1674
    %v1805 = vunpack.c.l.b16 %v1675
    %v1806 = vunpack.c.l.b16 %v1676
    %v1807 = vunpack.c.l.b16 %v1677
    %v1808 = vunpack.c.l.b16 %v1678
    %v1809 = vunpack.c.l.b16 %v1679
    %v1810 = vunpack.c.l.b16 %v1680
    %v1811 = vunpack.c.l.b16 %v1681
    %v1812 = vunpack.c.l.b16 %v1682
    %v1813 = vunpack.c.l.b16 %v1683
    %v1814 = vunpack.c.l.b16 %v1684
    %v1815 = vunpack.c.l.b16 %v1685
    %v1816 = vpack.c.b16 %v1754, %v1753
    %v1817 = vpack.c.b16 %v1756, %v1755
    %v1818 = vpack.c.b16 %v1758, %v1757
    %v1819 = vpack.c.b16 %v1760, %v1759
    %v1820 = vpack.c.b16 %v1762, %v1761
    %v1821 = vpack.c.b16 %v1764, %v1763
    %v1822 = vpack.c.b16 %v1766, %v1765
    %v1823 = vpack.c.b16 %v1768, %v1767
    %v1824 = vpack.c.b16 %v1770, %v1769
    %v1825 = vpack.c.b16 %v1772, %v1771
    %v1826 = vpack.c.b16 %v1774, %v1773
    %v1827 = vpack.c.b16 %v1776, %v1775
    %v1828 = vpack.c.b16 %v1778, %v1777
    %v1829 = vpack.c.b16 %v1780, %v1779
    %v1830 = vpack.c.b16 %v1782, %v1781
    %v1831 = vpack.c.b16 %v1784, %v1783
    %v1832 = vpack.c.b16 %v1786, %v1785
    %v1833 = vpack.c.b16 %v1788, %v1787
    %v1834 = vpack.c.b16 %v1790, %v1789
    %v1835 = vpack.c.b16 %v1792, %v1791
    %v1836 = vpack.c.b16 %v1794, %v1793
    %v1837 = vpack.c.b16 %v1796, %v1795
    %v1838 = vpack.c.b16 %v1798, %v1797
    %v1839 = vpack.c.b16 %v1800, %v1799
    %v1840 = vpack.c.b16 %v1802, %v1801
    %v1841 = vpack.c.b16 %v1804, %v1803
    %v1842 = vpack.c.b16 %v1806, %v1805
    %v1843 = vpack.c.b16 %v1808, %v1807
    %v1844 = vpack.c.b16 %v1810, %v1809
    %v1845 = vpack.c.b16 %v1812, %v1811
    %v1846 = vpack.c.b16 %v1814, %v1813
    %v1847 = vpack.c.b16 %v1815, %v1815
    %vm1879 = vcmask 949248
    %v1881 = vsel %vm1879, %v1622, 0
    %vm1883 = vcmask 1041408
    %v1885 = vsel %vm1883, %v1847, 0
    %1887 = vmatpush.bf16.msra.mxu0 %v1823
    %1888 = vmatpush.bf16.msra.mxu0 %v1822
    %1889 = vmatpush.bf16.msra.mxu0 %v1821
    %1890 = vmatpush.bf16.msra.mxu0 %v1820
    %1891 = vmatpush.bf16.msra.mxu0 %v1819
    %1892 = vmatpush.bf16.msra.mxu0 %v1818
    %1893 = vmatpush.bf16.msra.mxu0 %v1817
    %1894 = vmatpush.bf16.msra.mxu0 %v1816
    %1895 = vmatmul.bf16.gmra.mxu0 %v1619
    %v1896 = vpop.f32.mrf.mxu0
    %v1897 = vadd.f32 %v1688, %v1896
    %v1898 = vpop.f32.mrf.mxu0
    %1899 = vdwg.mxu0
    %1900 = vmatpush.bf16.msra.mxu0 %v1831
    %1901 = vmatpush.bf16.msra.mxu0 %v1830
    %1902 = vmatpush.bf16.msra.mxu0 %v1829
    %1903 = vmatpush.bf16.msra.mxu0 %v1828
    %1904 = vmatpush.bf16.msra.mxu0 %v1827
    %1905 = vmatpush.bf16.msra.mxu0 %v1826
    %1906 = vmatpush.bf16.msra.mxu0 %v1825
    %1907 = vmatpush.bf16.msra.mxu0 %v1824
    %1908 = vmatmul.bf16.gmra.mxu0 %v1620
    %v1909 = vpop.f32.mrf.mxu0
    %v1910 = vadd.f32 %v1897, %v1909
    %v1911 = vpop.f32.mrf.mxu0
    %1912 = vdwg.mxu0
    %1913 = vmatpush.bf16.msra.mxu0 %v1839
    %1914 = vmatpush.bf16.msra.mxu0 %v1838
    %1915 = vmatpush.bf16.msra.mxu0 %v1837
    %1916 = vmatpush.bf16.msra.mxu0 %v1836
    %1917 = vmatpush.bf16.msra.mxu0 %v1835
    %1918 = vmatpush.bf16.msra.mxu0 %v1834
    %1919 = vmatpush.bf16.msra.mxu0 %v1833
    %1920 = vmatpush.bf16.msra.mxu0 %v1832
    %1921 = vmatmul.bf16.gmra.mxu0 %v1621
    %v1922 = vpop.f32.mrf.mxu0
    %v1923 = vadd.f32 %v1910, %v1922
    %v1924 = vpop.f32.mrf.mxu0
    %1925 = vdwg.mxu0
    %1926 = vmatpush.bf16.msra.mxu0 %v1885
    %1927 = vmatpush.bf16.msra.mxu0 %v1846
    %1928 = vmatpush.bf16.msra.mxu0 %v1845
    %1929 = vmatpush.bf16.msra.mxu0 %v1844
    %1930 = vmatpush.bf16.msra.mxu0 %v1843
    %1931 = vmatpush.bf16.msra.mxu0 %v1842
    %1932 = vmatpush.bf16.msra.mxu0 %v1841
    %1933 = vmatpush.bf16.msra.mxu0 %v1840
    %1934 = vmatmul.bf16.gmra.mxu0 %v1881
    %v1935 = vpop.f32.mrf.mxu0
    %v1936 = vadd.f32 %v1923, %v1935
    %v1937 = vpop.f32.mrf.mxu0
    %1938 = vdwg.mxu0
    %vm1939 = vcmask 74752
    %v1940 = vsel %vm1939, %v1936, -inf
    %1941 = vmax.xlane.f32.xlu0 %v1940
    %v1942 = vpop.xlane.xlu0 %1941
    %v1943 = vsub.f32 %v1936, %v1942
    %v1944 = vmul.f32 %v1943, 1.442695
    %v1945 = vpow.pop %v1944
    %v1946 = vsel %vm1939, %v1945, 0.0
    %1947 = vadd.xlane.f32.xlu0 %v1946
    %v1948 = vpop.xlane.xlu0 %1947
    %v1949 = vlog2.pop %v1948
    %v1950 = vmul.f32 %v1949, 0.6931472
    %v1951 = vadd.f32 %v1950, %v1942
    %v1952 = vsub.f32 %v1936, %v1951
    %1953 = vst.msk [vmem:[#allocation2] sm:$0x3] %vm1939, %v1952
    // Predicated region
    $region22: #{convnet_forward.5} parent=1 // pred_check
      _
    $region23: #{convnet_forward.5} parent=1 // pred_check_branch
      %1955 = sbr.rel (0) target = $region25
    $region24: #{convnet_forward.5} parent=1 // pred_region
      %1957 = vsyncadd [#allocation3], 0
      %s1959 = sshll.u32 [#allocation2], 4
      %s1960 = int_to_ptr.vmem [resolvable:$true] %s1959
      %s1961 = sshll.u32 %s5, 4
      %s1962 = int_to_ptr.hbm [resolvable:$true] %s1961
      %1964 = dma.vmem_to_hbm [thread:$0]  %s1960, 32, %s1962, [#allocation3]
    $region25: #{convnet_forward.5} parent=1 // pred_fallthru
      _
    // Predicated region
    $region26: #{convnet_forward.5} parent=1 // pred_check
      _
    $region27: #{convnet_forward.5} parent=1 // pred_check_branch
      %1966 = sbr.rel (0) target = $region29
    $region28: #{convnet_forward.5} parent=1 // pred_region
      %1968 = dma.done [#allocation3], 32
    $region29: #{convnet_forward.5} parent=1 // pred_fallthru
      _
    %1969 = vsyncpa [#allocation3], 1

</llo_original>
